<compile_context>
chip_gen: v5e
topology: v5e:2x2
jax: 0.10.0
libtpu: 0.0.40
codegen_flags: <defaults>
</compile_context>

<pallas_src>
import functools

import jax
import jax.numpy as jnp
from jax.experimental import pallas as pl
from jax.experimental.pallas import tpu as pltpu

LANE = 128
SUB = 8


def _round_up(x, m):
    return (x + m - 1) // m * m


def _pick_images_per_block(n):
    """Largest B dividing n with n//B >= 2 (keep both v7x TCs busy), capped at 8."""
    best = 1
    for b in range(1, min(n, 8) + 1):
        if n % b == 0 and n // b >= 2:
            best = b
    return best


# ----------------------------- Pallas kernel --------------------------------


def _fused_backbone_kernel(x_ref, w1_ref, b1_ref, w2_ref, b2_ref, o_ref, y1_ref,
                           *, H, W, B, lead):
    """conv3x3+ReLU -> conv3x3+ReLU -> global-avg-pool for B images (all in VMEM).

    x_ref : (B, P_pad, Cin_p)  f32   zero-framed (H+2)x(W+2) pixel-major images
    w1_ref: (9*Cin_p, Cmid)    bf16  conv1 as a single matmul (tap-major, ch-minor)
    b1_ref: (1, Cmid)          f32
    w2_ref: (9*Cmid, Coutp)    bf16  conv2, output channels lane-padded to 128
    b2_ref: (1, Coutp)         f32
    o_ref : (B, 1, Coutp)      f32   pooled features
    y1_ref: (SROWS, Cmid)      bf16  zero-framed scratch holding conv1 output
    """
    Wp = W + 2
    M = H * Wp                      # rows computed per conv (padded-width layout)
    cmid = b1_ref.shape[-1]
    srows = y1_ref.shape[0]

    # Row-validity mask: rows q with q % (W+2) in {W, W+1} are horizontal-wrap
    # garbage.  Built ONCE per grid step, reused by both convs and the pool.
    q = jax.lax.broadcasted_iota(jnp.int32, (M, 1), 0)
    valid = (q % Wp) < W

    # Zero the frame regions of the y1 scratch once; the middle M rows are
    # fully overwritten for every image, so the frame stays zero afterwards.
    @pl.when(pl.program_id(0) == 0)
    def _():
        y1_ref[pl.ds(0, lead), :] = jnp.zeros((lead, cmid), jnp.bfloat16)
        y1_ref[pl.ds(lead + M, srows - lead - M), :] = jnp.zeros(
            (srows - lead - M, cmid), jnp.bfloat16)

    taps = [(oh, ow) for oh in (-1, 0, 1) for ow in (-1, 0, 1)]

    for b in range(B):
        # ---- conv1: single (M, 9*Cin) x (9*Cin, Cmid) bf16 matmul ----
        xb = x_ref[b].astype(jnp.bfloat16)              # cast once, (P_pad, Cin_p)
        cols1 = []
        for (oh, ow) in taps:
            s = (1 + oh) * Wp + (1 + ow)                # static, frame handles padding
            cols1.append(xb[s:s + M, :])
        im1 = jnp.concatenate(cols1, axis=-1)           # (M, 9*Cin_p) bf16
        y1 = jnp.dot(im1, w1_ref[...], preferred_element_type=jnp.float32)
        y1 = jnp.maximum(y1 + b1_ref[...], 0.0)
        y1 = jnp.where(valid, y1, 0.0)                  # wrap rows become frame zeros
        y1_ref[pl.ds(lead, M), :] = y1.astype(jnp.bfloat16)   # aligned bf16 store

        # ---- conv2: single (M, 9*Cmid) x (9*Cmid, Coutp) bf16 matmul ----
        cols2 = []
        for (oh, ow) in taps:
            s = lead + oh * Wp + ow                     # static slice of framed scratch
            cols2.append(y1_ref[pl.ds(s, M), :])
        im2 = jnp.concatenate(cols2, axis=-1)           # (M, 9*Cmid) bf16
        y2 = jnp.dot(im2, w2_ref[...], preferred_element_type=jnp.float32)
        y2 = jnp.maximum(y2 + b2_ref[...], 0.0)
        y2 = jnp.where(valid, y2, 0.0)

        # ---- fused global-average-pool epilogue (valid rows only), lane-dense ----
        pooled = jnp.sum(y2, axis=0, keepdims=True) * (1.0 / (H * W))
        o_ref[b] = pooled.astype(o_ref.dtype)


def fused_backbone(x_pad, w1, b1, w2, b2, *, H, W):
    """x_pad: (N, P_pad, Cin_p) zero-framed padded pixel-major f32 -> (N, Coutp)."""
    n, p_pad, cin = x_pad.shape
    assert p_pad >= (H + 2) * (W + 2) + 2, (p_pad, H, W)
    assert w1.shape[0] == 9 * cin, (w1.shape, cin)
    cmid = w1.shape[-1]
    coutp = w2.shape[-1]

    M = H * (W + 2)
    B = _pick_images_per_block(n)
    lead = _round_up(W + 3, 32)                      # aligned store offset (f32/bf16)
    srows = _round_up(lead + M + W + 3, 32)          # zero-framed y1 buffer rows

    kernel = functools.partial(_fused_backbone_kernel, H=H, W=W, B=B, lead=lead)

    flops = 2 * n * M * (w1.shape[0] * cmid + w2.shape[0] * coutp)
    bytes_accessed = (x_pad.size * 4 + w1.size * 2 + w2.size * 2
                      + b1.size * 4 + b2.size * 4 + n * coutp * 4)
    # VMEM budget from actual block + temp sizes (fits all gens incl. v7x 64 MiB).
    block_bytes = (B * p_pad * cin * 4 + w1.size * 2 + w2.size * 2
                   + b1.size * 4 + b2.size * 4 + B * coutp * 4)
    temp_bytes = (M * 9 * max(cin, cmid) * 2       # bf16 im2col tiles
                  + M * (cmid + coutp) * 4         # f32 conv outputs
                  + srows * cmid * 2)              # framed y1 scratch
    vmem_limit = int(max(4 * 1024 * 1024, 4 * (2 * block_bytes + temp_bytes)))

    out = pl.pallas_call(
        kernel,
        out_shape=jax.ShapeDtypeStruct((n, 1, coutp), jnp.float32),
        grid_spec=pltpu.PrefetchScalarGridSpec(
            num_scalar_prefetch=0,
            grid=(n // B,),
            in_specs=[
                pl.BlockSpec((B, p_pad, cin), lambda i: (i, 0, 0)),
                pl.BlockSpec((9 * cin, cmid), lambda i: (0, 0)),
                pl.BlockSpec((1, cmid), lambda i: (0, 0)),
                pl.BlockSpec((9 * cmid, coutp), lambda i: (0, 0)),
                pl.BlockSpec((1, coutp), lambda i: (0, 0)),
            ],
            out_specs=pl.BlockSpec((B, 1, coutp), lambda i: (i, 0, 0)),
            scratch_shapes=[pltpu.VMEM((srows, cmid), jnp.bfloat16)],
        ),
        compiler_params=pltpu.CompilerParams(
            dimension_semantics=("parallel",),
            vmem_limit_bytes=vmem_limit,
        ),
        cost_estimate=pl.CostEstimate(
            flops=flops, transcendentals=0, bytes_accessed=bytes_accessed),
    )(x_pad, w1, b1, w2, b2)
    return out[:, 0, :]                                  # (N, Coutp)


# ------------------------------- JAX glue ------------------------------------


def init_backbone_params(key, cin=4, cmid=32, cout=32):
    k1, k2 = jax.random.split(key)
    w1 = jax.random.normal(k1, (cmid, cin, 3, 3), jnp.float32) * (2.0 / (cin * 9)) ** 0.5
    b1 = jnp.zeros((cmid,), jnp.float32)
    w2 = jax.random.normal(k2, (cout, cmid, 3, 3), jnp.float32) * (2.0 / (cmid * 9)) ** 0.5
    b2 = jnp.zeros((cout,), jnp.float32)
    return {"w1": w1, "b1": b1, "w2": w2, "b2": b2}


def pack_backbone_params(params):
    """Hoisted (once, outside jit) weight re-layout: torch OIHW -> single-matmul
    (9*Cin, Cout) tap-major/channel-minor layout, bf16 operands, input channels
    padded to a multiple of 8, conv2 output channels lane-padded to 128."""
    cmid, cin = params["w1"].shape[0], params["w1"].shape[1]
    cout = params["w2"].shape[0]
    cin_p = _round_up(cin, SUB)
    coutp = _round_up(max(cout, LANE), LANE)

    w1 = jnp.transpose(params["w1"], (2, 3, 1, 0))            # (3,3,Cin,Cmid)
    w1 = jnp.pad(w1, ((0, 0), (0, 0), (0, cin_p - cin), (0, 0)))
    w1 = w1.reshape(9 * cin_p, cmid)
    w2 = jnp.transpose(params["w2"], (2, 3, 1, 0)).reshape(9 * cmid, cout)
    w2 = jnp.pad(w2, ((0, 0), (0, coutp - cout)))
    b2 = jnp.pad(params["b2"], (0, coutp - cout))
    return {
        "w1": w1.astype(jnp.bfloat16),
        "b1": params["b1"].reshape(1, cmid).astype(jnp.float32),
        "w2": w2.astype(jnp.bfloat16),
        "b2": b2.reshape(1, coutp).astype(jnp.float32),
        "cout": cout,                      # static python int (for the final slice)
    }


def prototypical_network_forward(packed, x_nchw):
    """forward(x) = backbone(x) with backbone.fc = Identity -> features [N, Cout]."""
    n, c, h, w = x_nchw.shape
    cin_p = _round_up(c, SUB)
    # Layout glue only (all compute is in-kernel): NCHW -> NHWC, zero-frame the
    # spatial dims to (H+2)x(W+2), pad channels to a multiple of 8, flatten to
    # pixel-major rows and pad the row count so every tap slice stays in-bounds.
    xp = jnp.pad(jnp.transpose(x_nchw, (0, 2, 3, 1)),
                 ((0, 0), (1, 1), (1, 1), (0, cin_p - c)))
    xp = xp.reshape(n, (h + 2) * (w + 2), cin_p)
    p_pad = _round_up((h + 2) * (w + 2) + 2, SUB)
    xp = jnp.pad(xp, ((0, 0), (0, p_pad - xp.shape[1]), (0, 0)))

    feats = fused_backbone(xp, packed["w1"], packed["b1"], packed["w2"], packed["b2"],
                           H=h, W=w)
    return feats[:, :packed["cout"]]       # drop lane padding; fc = Identity (no-op)


def reference_forward(params, x_nchw):
    """Pure-JAX f32 reference (torch-equivalent conv semantics) for validation."""
    dn = jax.lax.conv_dimension_numbers(x_nchw.shape, params["w1"].shape,
                                        ("NCHW", "OIHW", "NCHW"))
    y = jax.lax.conv_general_dilated(x_nchw, params["w1"], (1, 1), "SAME",
                                     dimension_numbers=dn)
    y = jnp.maximum(y + params["b1"][None, :, None, None], 0.0)
    y = jax.lax.conv_general_dilated(y, params["w2"], (1, 1), "SAME",
                                     dimension_numbers=dn)
    y = jnp.maximum(y + params["b2"][None, :, None, None], 0.0)
    return jnp.mean(y, axis=(2, 3))


if __name__ == "__main__":
    key = jax.random.PRNGKey(0)
    kx, kp = jax.random.split(key)

    x = jax.random.normal(kx, (2, 4, 16, 16), jnp.float32)   # NCHW, small shapes
    params = init_backbone_params(kp, cin=4, cmid=32, cout=32)
    packed = pack_backbone_params(params)                    # hoisted out of jit

    fwd = jax.jit(functools.partial(prototypical_network_forward, packed))
    out = jax.block_until_ready(fwd(x))

    assert out.shape == (2, 32), out.shape
    assert bool(jnp.all(jnp.isfinite(out)))
    ref = reference_forward(params, x)
    assert bool(jnp.allclose(out, ref, atol=5e-2, rtol=5e-2)), "mismatch vs f32 reference"
    print("KERNEL_OK")
</pallas_src>

<mosaic_0001>
module attributes {stable_mosaic.version = 11 : i64} {
  func.func @_fused_backbone_kernel(%arg0: i32, %arg1: memref<1x328x8xf32, #tpu.memory_space<vmem>>, %arg2: memref<72x32xbf16, #tpu.memory_space<vmem>>, %arg3: memref<1x32xf32, #tpu.memory_space<vmem>>, %arg4: memref<288x128xbf16, #tpu.memory_space<vmem>>, %arg5: memref<1x128xf32, #tpu.memory_space<vmem>>, %arg6: memref<1x1x128xf32, #tpu.memory_space<vmem>>, %arg7: memref<352x32xbf16, #tpu.memory_space<vmem>>) attributes {dimension_semantics = [#tpu.dimension_semantics<parallel>], iteration_bounds = array<i64: 2>, scalar_prefetch = 0 : i64, scratch_operands = 1 : i64, tpu.core_type = #tpu.core_type<tc>, window_params = [{transform_indices = @transform_0, window_bounds = array<i64: 1, 328, 8>}, {pipeline_mode = #tpu.pipeline_mode<synchronous>, transform_indices = @transform_1, window_bounds = array<i64: 72, 32>}, {pipeline_mode = #tpu.pipeline_mode<synchronous>, transform_indices = @transform_2, window_bounds = array<i64: 1, 32>}, {pipeline_mode = #tpu.pipeline_mode<synchronous>, transform_indices = @transform_3, window_bounds = array<i64: 288, 128>}, {pipeline_mode = #tpu.pipeline_mode<synchronous>, transform_indices = @transform_4, window_bounds = array<i64: 1, 128>}, {transform_indices = @transform_5, window_bounds = array<i64: 1, 1, 128>}]} {
    %0 = tpu.iota {dimensions = array<i32: 0>} : vector<288x1xi32>
    %c18_i32 = arith.constant 18 : i32
    %c0_i32 = arith.constant 0 : i32
    %1 = arith.cmpi eq, %c18_i32, %c0_i32 : i32
    %c1_i32 = arith.constant 1 : i32
    %2 = arith.select %1, %c1_i32, %c18_i32 : i32
    %3 = vector.broadcast %2 : i32 to vector<288x1xi32>
    %4 = arith.remsi %0, %3 : vector<288x1xi32>
    %c0_i32_0 = arith.constant 0 : i32
    %5 = vector.broadcast %c0_i32_0 : i32 to vector<288x1xi32>
    %6 = arith.cmpi ne, %4, %5 : vector<288x1xi32>
    %c0_i32_1 = arith.constant 0 : i32
    %7 = vector.broadcast %c0_i32_1 : i32 to vector<288x1xi32>
    %8 = arith.cmpi slt, %4, %7 : vector<288x1xi32>
    %c0_i32_2 = arith.constant 0 : i32
    %9 = arith.cmpi slt, %2, %c0_i32_2 : i32
    %10 = vector.broadcast %9 : i1 to vector<288x1xi1>
    %11 = vector.broadcast %10 : vector<288x1xi1> to vector<288x1xi1>
    %12 = arith.xori %8, %11 : vector<288x1xi1>
    %13 = arith.andi %12, %6 : vector<288x1xi1>
    %14 = vector.broadcast %2 : i32 to vector<288x1xi32>
    %15 = arith.addi %4, %14 : vector<288x1xi32>
    %16 = arith.select %13, %15, %4 : vector<288x1xi1>, vector<288x1xi32>
    %c16_i32 = arith.constant 16 : i32
    %17 = vector.broadcast %c16_i32 : i32 to vector<288x1xi32>
    %18 = arith.cmpi slt, %16, %17 : vector<288x1xi32>
    %c0_i32_3 = arith.constant 0 : i32
    %19 = arith.cmpi eq, %arg0, %c0_i32_3 : i32
    %20 = arith.extui %19 : i1 to i32
    %c0_i32_4 = arith.constant 0 : i32
    %21 = arith.cmpi ne, %20, %c0_i32_4 : i32
    scf.if %21 {
      %cst_36 = arith.constant 0.000000e+00 : bf16
      %76 = vector.broadcast %cst_36 : bf16 to vector<32x32xbf16>
      %c0_37 = arith.constant 0 : index
      %c0_38 = arith.constant 0 : index
      %77 = vector.load %arg7[%c0_37, %c0_38] : memref<352x32xbf16, #tpu.memory_space<vmem>>, vector<32x32xbf16>
      tpu.vector_store %arg7[%c0_37, %c0_38], %76 {strides = array<i32>} : memref<352x32xbf16, #tpu.memory_space<vmem>>, vector<32x32xbf16>,
      %cst_39 = arith.constant 0.000000e+00 : bf16
      %78 = vector.broadcast %cst_39 : bf16 to vector<32x32xbf16>
      %c320 = arith.constant 320 : index
      %c0_40 = arith.constant 0 : index
      %79 = vector.load %arg7[%c320, %c0_40] : memref<352x32xbf16, #tpu.memory_space<vmem>>, vector<32x32xbf16>
      tpu.vector_store %arg7[%c320, %c0_40], %78 {strides = array<i32>} : memref<352x32xbf16, #tpu.memory_space<vmem>>, vector<32x32xbf16>,
    } else {
    }
    %c0 = arith.constant 0 : index
    %c0_5 = arith.constant 0 : index
    %c0_6 = arith.constant 0 : index
    %22 = vector.load %arg1[%c0, %c0_5, %c0_6] : memref<1x328x8xf32, #tpu.memory_space<vmem>>, vector<1x328x8xf32>
    %23 = vector.shape_cast %22 : vector<1x328x8xf32> to vector<328x8xf32>
    %24 = arith.truncf %23 : vector<328x8xf32> to vector<328x8xbf16>
    %25 = vector.extract_strided_slice %24 {offsets = [0, 0], sizes = [288, 8], strides = [1, 1]} : vector<328x8xbf16> to vector<288x8xbf16>
    %26 = vector.extract_strided_slice %24 {offsets = [1, 0], sizes = [288, 8], strides = [1, 1]} : vector<328x8xbf16> to vector<288x8xbf16>
    %27 = vector.extract_strided_slice %24 {offsets = [2, 0], sizes = [288, 8], strides = [1, 1]} : vector<328x8xbf16> to vector<288x8xbf16>
    %28 = vector.extract_strided_slice %24 {offsets = [18, 0], sizes = [288, 8], strides = [1, 1]} : vector<328x8xbf16> to vector<288x8xbf16>
    %29 = vector.extract_strided_slice %24 {offsets = [19, 0], sizes = [288, 8], strides = [1, 1]} : vector<328x8xbf16> to vector<288x8xbf16>
    %30 = vector.extract_strided_slice %24 {offsets = [20, 0], sizes = [288, 8], strides = [1, 1]} : vector<328x8xbf16> to vector<288x8xbf16>
    %31 = vector.extract_strided_slice %24 {offsets = [36, 0], sizes = [288, 8], strides = [1, 1]} : vector<328x8xbf16> to vector<288x8xbf16>
    %32 = vector.extract_strided_slice %24 {offsets = [37, 0], sizes = [288, 8], strides = [1, 1]} : vector<328x8xbf16> to vector<288x8xbf16>
    %33 = vector.extract_strided_slice %24 {offsets = [38, 0], sizes = [288, 8], strides = [1, 1]} : vector<328x8xbf16> to vector<288x8xbf16>
    %34 = tpu.concatenate %25, %26, %27, %28, %29, %30, %31, %32, %33 in 1 : vector<288x8xbf16>, vector<288x8xbf16>, vector<288x8xbf16>, vector<288x8xbf16>, vector<288x8xbf16>, vector<288x8xbf16>, vector<288x8xbf16>, vector<288x8xbf16>, vector<288x8xbf16> -> vector<288x72xbf16>
    %c0_7 = arith.constant 0 : index
    %c0_8 = arith.constant 0 : index
    %35 = vector.load %arg2[%c0_7, %c0_8] : memref<72x32xbf16, #tpu.memory_space<vmem>>, vector<72x32xbf16>
    %cst = arith.constant dense<0.000000e+00> : vector<288x32xf32>
    %36 = tpu.matmul %34, %35, %cst {dimension_numbers = #tpu.dot_dimension_numbers<[1], [0], [0], [1], [0, 0, 1, 1], [], []>} : vector<288x72xbf16>, vector<72x32xbf16>, vector<288x32xf32> -> vector<288x32xf32>
    %c0_9 = arith.constant 0 : index
    %c0_10 = arith.constant 0 : index
    %37 = vector.load %arg3[%c0_9, %c0_10] : memref<1x32xf32, #tpu.memory_space<vmem>>, vector<1x32xf32>
    %38 = vector.broadcast %37 : vector<1x32xf32> to vector<288x32xf32>
    %39 = arith.addf %36, %38 : vector<288x32xf32>
    %cst_11 = arith.constant 0.000000e+00 : f32
    %40 = vector.broadcast %cst_11 : f32 to vector<288x32xf32>
    %41 = arith.maximumf %39, %40 : vector<288x32xf32>
    %cst_12 = arith.constant 0.000000e+00 : f32
    %42 = vector.shape_cast %18 : vector<288x1xi1> to vector<288x1xi1>
    %43 = vector.broadcast %42 : vector<288x1xi1> to vector<288x32xi1>
    %44 = vector.broadcast %cst_12 : f32 to vector<288x32xf32>
    %45 = arith.select %43, %41, %44 : vector<288x32xi1>, vector<288x32xf32>
    %46 = arith.truncf %45 : vector<288x32xf32> to vector<288x32xbf16>
    %c32 = arith.constant 32 : index
    %c0_13 = arith.constant 0 : index
    %47 = vector.load %arg7[%c32, %c0_13] : memref<352x32xbf16, #tpu.memory_space<vmem>>, vector<288x32xbf16>
    tpu.vector_store %arg7[%c32, %c0_13], %46 {strides = array<i32>} : memref<352x32xbf16, #tpu.memory_space<vmem>>, vector<288x32xbf16>,
    %c13 = arith.constant 13 : index
    %c0_14 = arith.constant 0 : index
    %48 = vector.load %arg7[%c13, %c0_14] : memref<352x32xbf16, #tpu.memory_space<vmem>>, vector<288x32xbf16>
    %c14 = arith.constant 14 : index
    %c0_15 = arith.constant 0 : index
    %49 = vector.load %arg7[%c14, %c0_15] : memref<352x32xbf16, #tpu.memory_space<vmem>>, vector<288x32xbf16>
    %c15 = arith.constant 15 : index
    %c0_16 = arith.constant 0 : index
    %50 = vector.load %arg7[%c15, %c0_16] : memref<352x32xbf16, #tpu.memory_space<vmem>>, vector<288x32xbf16>
    %c31 = arith.constant 31 : index
    %c0_17 = arith.constant 0 : index
    %51 = vector.load %arg7[%c31, %c0_17] : memref<352x32xbf16, #tpu.memory_space<vmem>>, vector<288x32xbf16>
    %c32_18 = arith.constant 32 : index
    %c0_19 = arith.constant 0 : index
    %52 = vector.load %arg7[%c32_18, %c0_19] : memref<352x32xbf16, #tpu.memory_space<vmem>>, vector<288x32xbf16>
    %c33 = arith.constant 33 : index
    %c0_20 = arith.constant 0 : index
    %53 = vector.load %arg7[%c33, %c0_20] : memref<352x32xbf16, #tpu.memory_space<vmem>>, vector<288x32xbf16>
    %c49 = arith.constant 49 : index
    %c0_21 = arith.constant 0 : index
    %54 = vector.load %arg7[%c49, %c0_21] : memref<352x32xbf16, #tpu.memory_space<vmem>>, vector<288x32xbf16>
    %c50 = arith.constant 50 : index
    %c0_22 = arith.constant 0 : index
    %55 = vector.load %arg7[%c50, %c0_22] : memref<352x32xbf16, #tpu.memory_space<vmem>>, vector<288x32xbf16>
    %c51 = arith.constant 51 : index
    %c0_23 = arith.constant 0 : index
    %56 = vector.load %arg7[%c51, %c0_23] : memref<352x32xbf16, #tpu.memory_space<vmem>>, vector<288x32xbf16>
    %57 = tpu.concatenate %48, %49, %50, %51, %52, %53, %54, %55, %56 in 1 : vector<288x32xbf16>, vector<288x32xbf16>, vector<288x32xbf16>, vector<288x32xbf16>, vector<288x32xbf16>, vector<288x32xbf16>, vector<288x32xbf16>, vector<288x32xbf16>, vector<288x32xbf16> -> vector<288x288xbf16>
    %c0_24 = arith.constant 0 : index
    %c0_25 = arith.constant 0 : index
    %58 = vector.load %arg4[%c0_24, %c0_25] : memref<288x128xbf16, #tpu.memory_space<vmem>>, vector<288x128xbf16>
    %cst_26 = arith.constant dense<0.000000e+00> : vector<288x128xf32>
    %59 = tpu.matmul %57, %58, %cst_26 {dimension_numbers = #tpu.dot_dimension_numbers<[1], [0], [0], [1], [0, 0, 1, 1], [], []>} : vector<288x288xbf16>, vector<288x128xbf16>, vector<288x128xf32> -> vector<288x128xf32>
    %c0_27 = arith.constant 0 : index
    %c0_28 = arith.constant 0 : index
    %60 = vector.load %arg5[%c0_27, %c0_28] : memref<1x128xf32, #tpu.memory_space<vmem>>, vector<1x128xf32>
    %61 = vector.broadcast %60 : vector<1x128xf32> to vector<288x128xf32>
    %62 = arith.addf %59, %61 : vector<288x128xf32>
    %cst_29 = arith.constant 0.000000e+00 : f32
    %63 = vector.broadcast %cst_29 : f32 to vector<288x128xf32>
    %64 = arith.maximumf %62, %63 : vector<288x128xf32>
    %cst_30 = arith.constant 0.000000e+00 : f32
    %65 = vector.shape_cast %18 : vector<288x1xi1> to vector<288x1xi1>
    %66 = vector.broadcast %65 : vector<288x1xi1> to vector<288x128xi1>
    %67 = vector.broadcast %cst_30 : f32 to vector<288x128xf32>
    %68 = arith.select %66, %64, %67 : vector<288x128xi1>, vector<288x128xf32>
    %cst_31 = arith.constant dense<0.000000e+00> : vector<128xf32>
    %69 = vector.multi_reduction <add>, %68, %cst_31 [0] : vector<288x128xf32> to vector<128xf32>
    %70 = vector.shape_cast %69 : vector<128xf32> to vector<1x128xf32>
    %cst_32 = arith.constant 3.906250e-03 : f32
    %71 = vector.broadcast %cst_32 : f32 to vector<1x128xf32>
    %72 = arith.mulf %70, %71 : vector<1x128xf32>
    %c0_33 = arith.constant 0 : index
    %c0_34 = arith.constant 0 : index
    %c0_35 = arith.constant 0 : index
    %73 = vector.load %arg6[%c0_33, %c0_34, %c0_35] : memref<1x1x128xf32, #tpu.memory_space<vmem>>, vector<1x1x128xf32>
    %74 = vector.shape_cast %73 : vector<1x1x128xf32> to vector<1x128xf32>
    %75 = vector.shape_cast %72 : vector<1x128xf32> to vector<1x1x128xf32>
    tpu.vector_store %arg6[%c0_33, %c0_34, %c0_35], %75 {strides = array<i32>} : memref<1x1x128xf32, #tpu.memory_space<vmem>>, vector<1x1x128xf32>,
    return
  }
  func.func @transform_0(%arg0: i32) -> (i32, i32, i32) {
    %c0_i32 = arith.constant 0 : i32
    %c0_i32_0 = arith.constant 0 : i32
    %c0_i32_1 = arith.constant 0 : i32
    return %arg0, %c0_i32, %c0_i32_0 : i32, i32, i32
  }
  func.func @transform_1(%arg0: i32) -> (i32, i32) {
    %c0_i32 = arith.constant 0 : i32
    %c0_i32_0 = arith.constant 0 : i32
    %c0_i32_1 = arith.constant 0 : i32
    return %c0_i32, %c0_i32_0 : i32, i32
  }
  func.func @transform_2(%arg0: i32) -> (i32, i32) {
    %c0_i32 = arith.constant 0 : i32
    %c0_i32_0 = arith.constant 0 : i32
    %c0_i32_1 = arith.constant 0 : i32
    return %c0_i32, %c0_i32_0 : i32, i32
  }
  func.func @transform_3(%arg0: i32) -> (i32, i32) {
    %c0_i32 = arith.constant 0 : i32
    %c0_i32_0 = arith.constant 0 : i32
    %c0_i32_1 = arith.constant 0 : i32
    return %c0_i32, %c0_i32_0 : i32, i32
  }
  func.func @transform_4(%arg0: i32) -> (i32, i32) {
    %c0_i32 = arith.constant 0 : i32
    %c0_i32_0 = arith.constant 0 : i32
    %c0_i32_1 = arith.constant 0 : i32
    return %c0_i32, %c0_i32_0 : i32, i32
  }
  func.func @transform_5(%arg0: i32) -> (i32, i32, i32) {
    %c0_i32 = arith.constant 0 : i32
    %c0_i32_0 = arith.constant 0 : i32
    %c0_i32_1 = arith.constant 0 : i32
    return %arg0, %c0_i32, %c0_i32_0 : i32, i32, i32
  }
}

</mosaic_0001>

<llo_original>
// kernel: prototypical_network_forward.1
$region0: #{prototypical_network_forward.1}
  #allocation0 [shape = 'u32[]', space=smem, size = 0x4, offset = 0x4, fixed_abs, tag = 'smem constant byte address 0x4 - core index']
  #allocation1 [shape = 'u32[72,128]{1,0:T(1,128)}', space=vmem, size = 0x9000, scoped, tag = 'internal scratch']
  #allocation2 [shape = 'bf16[352,32]{1,0:T(8,128)(2,1)}', space=vmem, size = 0x16000, scoped, tag = 'scratch operand']
  %s0 = inlined_call_operand.vmem [shape: f32[2,328,8], index: 0, kind: input, shape index: {}]
  %s1 = inlined_call_operand.vmem [shape: bf16[72,32], index: 1, kind: input, shape index: {}]
  %s2 = inlined_call_operand.vmem [shape: f32[1,32], index: 2, kind: input, shape index: {}]
  %s3 = inlined_call_operand.vmem [shape: bf16[288,128], index: 3, kind: input, shape index: {}]
  %s4 = inlined_call_operand.vmem [shape: f32[1,128], index: 4, kind: input, shape index: {}]
  %s5 = inlined_call_operand.hbm [shape: f32[2,1,128], index: 5, kind: output, shape index: {}]
  %s6 = sld [smem:[#allocation0]]
  $region57: #{prototypical_network_forward.1} parent=0
    _
  %s8 = ssub.s32 1, %s6
  %s9 = scalar_select 0, %s8, %s6
  $region1: #{prototypical_network_forward.1} parent=0
    #allocation3 [shape = 'u8[1024]{0}', space=vmem, size = 0x400, scoped, tag = 'output window, operand 0']
    #allocation4 [shape = 's32[2]{0}', space=sflag, size = 0x8, scoped, tag = 'scoped memory for prototypical_network_forward.1']
    %10 = vsyncpa [#allocation4], 0
    %s11 = scalar_lea.sflag [#allocation4], 1
    %12 = vsyncpa %s11, 0
    loop: start=0, step=1, limit=4
    $region2: #{prototypical_network_forward.1} parent=1 // loop_pre_header
      _
    $region3: #{prototypical_network_forward.1} parent=1 // loop_header
      %s14 = sphi 0, %s18
      %p15 = scmp.ge.s32.totalorder %s14, 4
      %s24 = sphi 0, %s26
      %s27 = sphi 0, %s24
      %s28 = sphi 0, %s27
      %s44 = sphi 0, %s28
      %s48 = sphi 0, %s48
      %s50 = sphi 0, %s48
      %s51 = sphi 0, %s50
      %s65 = sphi 0, %s51
      %s69 = sphi 0, %s69
      %s71 = sphi 0, %s69
      %s72 = sphi 0, %s71
      %s86 = sphi 0, %s72
      %s90 = sphi 0, %s90
      %s92 = sphi 0, %s90
      %s93 = sphi 0, %s92
      %s107 = sphi 0, %s93
      %s111 = sphi 0, %s111
      %s113 = sphi 0, %s111
      %s114 = sphi 0, %s113
      %s128 = sphi 0, %s114
      %s134 = sphi 0, %s136
      %s137 = sphi 0, %s134
      %s138 = sphi 0, %s137
      %s154 = sphi 0, %s138
    $region4: #{prototypical_network_forward.1} parent=1 // loop_header_branch
      %17 = sbr.rel (%p15) target = $region8
    $region5: #{prototypical_network_forward.1} parent=1 // loop_body
      %s19 = ssub.s32 %s14, 1
      %s20 = ssub.s32 %s14, 2
      %s21 = sadd.s32 %s14, 1
      %s22 = ssub.s32 %s14, %s21
      %p23 = scmp.eq.s32.totalorder %s22, 0
      %s25 = sadd.s32 %s24, 1
      %s26 = scalar_select %p23, %s24, %s25
      %p29 = pneg %p23
      %p30 = scmp.eq.s32.totalorder %s14, 1
      %p31 = por %p29, %p30
      %p32 = scmp.ne.s32.totalorder %s24, %s27
      %p33 = scmp.eq.s32.totalorder %s14, 0
      %p34 = por %p32, %p33
      %p35 = scmp.ne.s32.totalorder %s24, %s27
      %p36 = scmp.eq.s32.totalorder %s19, 1
      %p37 = por %p35, %p36
      %p38 = scmp.ne.s32.totalorder %s27, %s28
      %p39 = scmp.eq.s32.totalorder %s19, 0
      %p40 = por %p38, %p39
      %p41 = scmp.ne.s32.totalorder %s27, %s28
      %p42 = scmp.eq.s32.totalorder %s20, 1
      %p43 = por %p41, %p42
      %p45 = scmp.ne.s32.totalorder %s28, %s44
      %p46 = scmp.eq.s32.totalorder %s20, 0
      %p47 = por %p45, %p46
      %s49 = sadd.s32 %s48, 1
      %p52 = scmp.eq.s32.totalorder %s14, 1
      %p53 = scmp.ne.s32.totalorder %s48, %s50
      %p54 = scmp.eq.s32.totalorder %s14, 0
      %p55 = por %p53, %p54
      %p56 = scmp.ne.s32.totalorder %s48, %s50
      %p57 = scmp.eq.s32.totalorder %s19, 1
      %p58 = por %p56, %p57
      %p59 = scmp.ne.s32.totalorder %s50, %s51
      %p60 = scmp.eq.s32.totalorder %s19, 0
      %p61 = por %p59, %p60
      %p62 = scmp.ne.s32.totalorder %s50, %s51
      %p63 = scmp.eq.s32.totalorder %s20, 1
      %p64 = por %p62, %p63
      %p66 = scmp.ne.s32.totalorder %s51, %s65
      %p67 = scmp.eq.s32.totalorder %s20, 0
      %p68 = por %p66, %p67
      %s70 = sadd.s32 %s69, 1
      %p73 = scmp.eq.s32.totalorder %s14, 1
      %p74 = scmp.ne.s32.totalorder %s69, %s71
      %p75 = scmp.eq.s32.totalorder %s14, 0
      %p76 = por %p74, %p75
      %p77 = scmp.ne.s32.totalorder %s69, %s71
      %p78 = scmp.eq.s32.totalorder %s19, 1
      %p79 = por %p77, %p78
      %p80 = scmp.ne.s32.totalorder %s71, %s72
      %p81 = scmp.eq.s32.totalorder %s19, 0
      %p82 = por %p80, %p81
      %p83 = scmp.ne.s32.totalorder %s71, %s72
      %p84 = scmp.eq.s32.totalorder %s20, 1
      %p85 = por %p83, %p84
      %p87 = scmp.ne.s32.totalorder %s72, %s86
      %p88 = scmp.eq.s32.totalorder %s20, 0
      %p89 = por %p87, %p88
      %s91 = sadd.s32 %s90, 1
      %p94 = scmp.eq.s32.totalorder %s14, 1
      %p95 = scmp.ne.s32.totalorder %s90, %s92
      %p96 = scmp.eq.s32.totalorder %s14, 0
      %p97 = por %p95, %p96
      %p98 = scmp.ne.s32.totalorder %s90, %s92
      %p99 = scmp.eq.s32.totalorder %s19, 1
      %p100 = por %p98, %p99
      %p101 = scmp.ne.s32.totalorder %s92, %s93
      %p102 = scmp.eq.s32.totalorder %s19, 0
      %p103 = por %p101, %p102
      %p104 = scmp.ne.s32.totalorder %s92, %s93
      %p105 = scmp.eq.s32.totalorder %s20, 1
      %p106 = por %p104, %p105
      %p108 = scmp.ne.s32.totalorder %s93, %s107
      %p109 = scmp.eq.s32.totalorder %s20, 0
      %p110 = por %p108, %p109
      %s112 = sadd.s32 %s111, 1
      %p115 = scmp.eq.s32.totalorder %s14, 1
      %p116 = scmp.ne.s32.totalorder %s111, %s113
      %p117 = scmp.eq.s32.totalorder %s14, 0
      %p118 = por %p116, %p117
      %p119 = scmp.ne.s32.totalorder %s111, %s113
      %p120 = scmp.eq.s32.totalorder %s19, 1
      %p121 = por %p119, %p120
      %p122 = scmp.ne.s32.totalorder %s113, %s114
      %p123 = scmp.eq.s32.totalorder %s19, 0
      %p124 = por %p122, %p123
      %p125 = scmp.ne.s32.totalorder %s113, %s114
      %p126 = scmp.eq.s32.totalorder %s20, 1
      %p127 = por %p125, %p126
      %p129 = scmp.ne.s32.totalorder %s114, %s128
      %p130 = scmp.eq.s32.totalorder %s20, 0
      %p131 = por %p129, %p130
      %s132 = ssub.s32 %s14, %s21
      %p133 = scmp.eq.s32.totalorder %s132, 0
      %s135 = sadd.s32 %s134, 1
      %s136 = scalar_select %p133, %s134, %s135
      %p139 = pneg %p133
      %p140 = scmp.eq.s32.totalorder %s14, 1
      %p141 = por %p139, %p140
      %p142 = scmp.ne.s32.totalorder %s134, %s137
      %p143 = scmp.eq.s32.totalorder %s14, 0
      %p144 = por %p142, %p143
      %p145 = scmp.ne.s32.totalorder %s134, %s137
      %p146 = scmp.eq.s32.totalorder %s19, 1
      %p147 = por %p145, %p146
      %p148 = scmp.ne.s32.totalorder %s137, %s138
      %p149 = scmp.eq.s32.totalorder %s19, 0
      %p150 = por %p148, %p149
      %p151 = scmp.ne.s32.totalorder %s137, %s138
      %p152 = scmp.eq.s32.totalorder %s20, 1
      %p153 = por %p151, %p152
      %p155 = scmp.ne.s32.totalorder %s138, %s154
      %p156 = scmp.eq.s32.totalorder %s20, 0
      %p157 = por %p155, %p156
      %p158 = scmp.le.s32.totalorder 1, %s14
      %p159 = scmp.lt.s32.totalorder %s14, 3
      %p160 = pnand %p158, %p159
      %p161 = pneg %p160
      // Predicated region
      $region9: #{prototypical_network_forward.1} parent=5 // pred_check
        _
      $region10: #{prototypical_network_forward.1} parent=5 // pred_check_branch
        %163 = sbr.rel (%p160) target = $region12
      $region11: #{prototypical_network_forward.1} parent=5 // pred_region
        %s164 = ssub.s32 %s14, 1
        // Predicated region
        $region13: #{prototypical_network_forward.1} parent=11 // pred_check
          %p165 = pneg %p61
        $region14: #{prototypical_network_forward.1} parent=11 // pred_check_branch
          %167 = sbr.rel (%p165) target = $region16
        $region15: #{prototypical_network_forward.1} parent=11 // pred_region
          _
        $region16: #{prototypical_network_forward.1} parent=11 // pred_fallthru
          _
        // Predicated region
        $region17: #{prototypical_network_forward.1} parent=11 // pred_check
          %p168 = pneg %p82
        $region18: #{prototypical_network_forward.1} parent=11 // pred_check_branch
          %170 = sbr.rel (%p168) target = $region20
        $region19: #{prototypical_network_forward.1} parent=11 // pred_region
          _
        $region20: #{prototypical_network_forward.1} parent=11 // pred_fallthru
          _
        // Predicated region
        $region21: #{prototypical_network_forward.1} parent=11 // pred_check
          %p171 = pneg %p103
        $region22: #{prototypical_network_forward.1} parent=11 // pred_check_branch
          %173 = sbr.rel (%p171) target = $region24
        $region23: #{prototypical_network_forward.1} parent=11 // pred_region
          _
        $region24: #{prototypical_network_forward.1} parent=11 // pred_fallthru
          _
        // Predicated region
        $region25: #{prototypical_network_forward.1} parent=11 // pred_check
          %p174 = pneg %p124
        $region26: #{prototypical_network_forward.1} parent=11 // pred_check_branch
          %176 = sbr.rel (%p174) target = $region28
        $region27: #{prototypical_network_forward.1} parent=11 // pred_region
          _
        $region28: #{prototypical_network_forward.1} parent=11 // pred_fallthru
          _
      $region12: #{prototypical_network_forward.1} parent=5 // pred_fallthru
        _
      %p177 = scmp.lt.s32.totalorder %s14, 2
      // Predicated region
      $region29: #{prototypical_network_forward.1} parent=5 // pred_check
        %p178 = pneg %p177
      $region30: #{prototypical_network_forward.1} parent=5 // pred_check_branch
        %180 = sbr.rel (%p178) target = $region32
      $region31: #{prototypical_network_forward.1} parent=5 // pred_region
        // Predicated region
        $region33: #{prototypical_network_forward.1} parent=31 // pred_check
          %p181 = pneg %p34
        $region34: #{prototypical_network_forward.1} parent=31 // pred_check_branch
          %183 = sbr.rel (%p181) target = $region36
        $region35: #{prototypical_network_forward.1} parent=31 // pred_region
          %p184 = scmp.lt.s32.totalorder %s14, 1
          %s185 = scalar_select %p184, %s14, 1
          %s186 = smul.addr %s185, 41
          %s187 = smul.addr %s186, 8
          %s188 = scalar_lea.vmem %s0, %s187
        $region36: #{prototypical_network_forward.1} parent=31 // pred_fallthru
          _
      $region32: #{prototypical_network_forward.1} parent=5 // pred_fallthru
        _
      %p189 = scmp.le.s32.totalorder 1, %s14
      %p190 = scmp.lt.s32.totalorder %s14, 3
      %p191 = pnand %p189, %p190
      %p192 = pneg %p191
      // Predicated region
      $region37: #{prototypical_network_forward.1} parent=5 // pred_check
        _
      $region38: #{prototypical_network_forward.1} parent=5 // pred_check_branch
        %194 = sbr.rel (%p191) target = $region40
      $region39: #{prototypical_network_forward.1} parent=5 // pred_region
        %s195 = ssub.s32 %s14, 1
        %p196 = scmp.lt.s32.totalorder %s19, 1
        %s197 = scalar_select %p196, %s19, 1
        %s198 = smul.addr %s197, 41
        %s199 = smul.addr %s198, 8
        %s200 = scalar_lea.vmem %s0, %s199
        %p201 = pneg %p40
        %p202 = pneg %p37
        %p203 = pneg %p61
        %p204 = pneg %p58
        %p205 = pneg %p82
        %p206 = pneg %p79
        %p207 = pneg %p103
        %p208 = pneg %p100
        %p209 = pneg %p124
        %p210 = pneg %p121
        %p211 = pneg %p150
        %p212 = pneg %p147
        %s213 = sand.u32 %s137, 1
        %s214 = scalar_lea.sflag [#allocation4], %s213
        %s215 = sand.u32 %s137, 1
        %s216 = scalar_lea.vmem [#allocation3], %s215
        %p217 = scmp.lt.s32.totalorder %s19, 1
        %s218 = scalar_select %p217, %s19, 1
        %s219 = smul.addr %s218, 41
        %s220 = smul.addr %s219, 8
        %s221 = scalar_lea.vmem %s0, %s220
        %v223 = vlaneseq
        %v224 = vshrl.u32 %v223, 7
        %v225 = vadd.s32 %v224, 8
        %v226 = vadd.s32 %v224, 16
        %v227 = vadd.s32 %v224, 24
        %v228 = vadd.s32 %v224, 32
        %v229 = vadd.s32 %v224, 40
        %v230 = vadd.s32 %v224, 48
        %v231 = vadd.s32 %v224, 56
        %v232 = vadd.s32 %v224, 64
        %v233 = vadd.s32 %v224, 72
        %v234 = vadd.s32 %v224, 80
        %v235 = vadd.s32 %v224, 88
        %v236 = vadd.s32 %v224, 96
        %v237 = vadd.s32 %v224, 104
        %v238 = vadd.s32 %v224, 112
        %v239 = vadd.s32 %v224, 120
        %v240 = vadd.s32 %v224, 128
        %v241 = vadd.s32 %v224, 136
        %v242 = vadd.s32 %v224, 144
        %v243 = vadd.s32 %v224, 152
        %v244 = vadd.s32 %v224, 160
        %v245 = vadd.s32 %v224, 168
        %v246 = vadd.s32 %v224, 176
        %v247 = vadd.s32 %v224, 184
        %v248 = vadd.s32 %v224, 192
        %v249 = vadd.s32 %v224, 200
        %v250 = vadd.s32 %v224, 208
        %v251 = vadd.s32 %v224, 216
        %v252 = vadd.s32 %v224, 224
        %v253 = vadd.s32 %v224, 232
        %v254 = vadd.s32 %v224, 240
        %v255 = vadd.s32 %v224, 248
        %v256 = vadd.s32 %v224, 256
        %v257 = vadd.s32 %v224, 264
        %v258 = vadd.s32 %v224, 272
        %v259 = vadd.s32 %v224, 280
        %vm260 = vcmp.lt.s32.totalorder %v224, 0
        %v261 = vsub.s32 0, %v224
        %v262 = vsel %vm260, %v261, %v224
        %v263 = vand.u32 %v262, 65535
        %v264 = vshrl.u32 %v262, 16
        %v266 = vmul.u32 %v263, 14564
        %v267 = vmul.u32 %v263, 58254
        %v268 = vmul.u32 %v264, 14564
        %v269 = vmul.u32 %v264, 58254
        %v270 = vshll.u32 %v267, 16
        %v271 = vshrl.u32 %v267, 16
        %v272 = vshll.u32 %v268, 16
        %v273 = vshrl.u32 %v268, 16
        %vm274 = vc.u32 %v266, %v270
        %v275 = vsel %vm274, 1, 0
        %v276 = vadd.s32 %v266, %v270
        %v277 = vadd.s32 %v269, %v275
        %vm278 = vc.u32 %v276, %v272
        %v279 = vsel %vm278, 1, 0
        %v280 = vadd.s32 %v276, %v272
        %v281 = vadd.s32 %v277, %v279
        %v282 = vadd.s32 %v281, %v271
        %v283 = vadd.s32 %v282, %v273
        %v284 = vshrl.u32 %v283, 4
        %v285 = vmul.u32 %v284, 18
        %v286 = vsub.s32 %v262, %v285
        %v287 = vsub.s32 0, %v286
        %v288 = vsel %vm260, %v287, %v286
        %vm289 = vcmp.lt.s32.totalorder %v225, 0
        %v290 = vsub.s32 0, %v225
        %v291 = vsel %vm289, %v290, %v225
        %v292 = vand.u32 %v291, 65535
        %v293 = vshrl.u32 %v291, 16
        %v295 = vmul.u32 %v292, 14564
        %v296 = vmul.u32 %v292, 58254
        %v297 = vmul.u32 %v293, 14564
        %v298 = vmul.u32 %v293, 58254
        %v299 = vshll.u32 %v296, 16
        %v300 = vshrl.u32 %v296, 16
        %v301 = vshll.u32 %v297, 16
        %v302 = vshrl.u32 %v297, 16
        %vm303 = vc.u32 %v295, %v299
        %v304 = vsel %vm303, 1, 0
        %v305 = vadd.s32 %v295, %v299
        %v306 = vadd.s32 %v298, %v304
        %vm307 = vc.u32 %v305, %v301
        %v308 = vsel %vm307, 1, 0
        %v309 = vadd.s32 %v305, %v301
        %v310 = vadd.s32 %v306, %v308
        %v311 = vadd.s32 %v310, %v300
        %v312 = vadd.s32 %v311, %v302
        %v313 = vshrl.u32 %v312, 4
        %v314 = vmul.u32 %v313, 18
        %v315 = vsub.s32 %v291, %v314
        %v316 = vsub.s32 0, %v315
        %v317 = vsel %vm289, %v316, %v315
        %vm318 = vcmp.lt.s32.totalorder %v226, 0
        %v319 = vsub.s32 0, %v226
        %v320 = vsel %vm318, %v319, %v226
        %v321 = vand.u32 %v320, 65535
        %v322 = vshrl.u32 %v320, 16
        %v324 = vmul.u32 %v321, 14564
        %v325 = vmul.u32 %v321, 58254
        %v326 = vmul.u32 %v322, 14564
        %v327 = vmul.u32 %v322, 58254
        %v328 = vshll.u32 %v325, 16
        %v329 = vshrl.u32 %v325, 16
        %v330 = vshll.u32 %v326, 16
        %v331 = vshrl.u32 %v326, 16
        %vm332 = vc.u32 %v324, %v328
        %v333 = vsel %vm332, 1, 0
        %v334 = vadd.s32 %v324, %v328
        %v335 = vadd.s32 %v327, %v333
        %vm336 = vc.u32 %v334, %v330
        %v337 = vsel %vm336, 1, 0
        %v338 = vadd.s32 %v334, %v330
        %v339 = vadd.s32 %v335, %v337
        %v340 = vadd.s32 %v339, %v329
        %v341 = vadd.s32 %v340, %v331
        %v342 = vshrl.u32 %v341, 4
        %v343 = vmul.u32 %v342, 18
        %v344 = vsub.s32 %v320, %v343
        %v345 = vsub.s32 0, %v344
        %v346 = vsel %vm318, %v345, %v344
        %vm347 = vcmp.lt.s32.totalorder %v227, 0
        %v348 = vsub.s32 0, %v227
        %v349 = vsel %vm347, %v348, %v227
        %v350 = vand.u32 %v349, 65535
        %v351 = vshrl.u32 %v349, 16
        %v353 = vmul.u32 %v350, 14564
        %v354 = vmul.u32 %v350, 58254
        %v355 = vmul.u32 %v351, 14564
        %v356 = vmul.u32 %v351, 58254
        %v357 = vshll.u32 %v354, 16
        %v358 = vshrl.u32 %v354, 16
        %v359 = vshll.u32 %v355, 16
        %v360 = vshrl.u32 %v355, 16
        %vm361 = vc.u32 %v353, %v357
        %v362 = vsel %vm361, 1, 0
        %v363 = vadd.s32 %v353, %v357
        %v364 = vadd.s32 %v356, %v362
        %vm365 = vc.u32 %v363, %v359
        %v366 = vsel %vm365, 1, 0
        %v367 = vadd.s32 %v363, %v359
        %v368 = vadd.s32 %v364, %v366
        %v369 = vadd.s32 %v368, %v358
        %v370 = vadd.s32 %v369, %v360
        %v371 = vshrl.u32 %v370, 4
        %v372 = vmul.u32 %v371, 18
        %v373 = vsub.s32 %v349, %v372
        %v374 = vsub.s32 0, %v373
        %v375 = vsel %vm347, %v374, %v373
        %vm376 = vcmp.lt.s32.totalorder %v228, 0
        %v377 = vsub.s32 0, %v228
        %v378 = vsel %vm376, %v377, %v228
        %v379 = vand.u32 %v378, 65535
        %v380 = vshrl.u32 %v378, 16
        %v382 = vmul.u32 %v379, 14564
        %v383 = vmul.u32 %v379, 58254
        %v384 = vmul.u32 %v380, 14564
        %v385 = vmul.u32 %v380, 58254
        %v386 = vshll.u32 %v383, 16
        %v387 = vshrl.u32 %v383, 16
        %v388 = vshll.u32 %v384, 16
        %v389 = vshrl.u32 %v384, 16
        %vm390 = vc.u32 %v382, %v386
        %v391 = vsel %vm390, 1, 0
        %v392 = vadd.s32 %v382, %v386
        %v393 = vadd.s32 %v385, %v391
        %vm394 = vc.u32 %v392, %v388
        %v395 = vsel %vm394, 1, 0
        %v396 = vadd.s32 %v392, %v388
        %v397 = vadd.s32 %v393, %v395
        %v398 = vadd.s32 %v397, %v387
        %v399 = vadd.s32 %v398, %v389
        %v400 = vshrl.u32 %v399, 4
        %v401 = vmul.u32 %v400, 18
        %v402 = vsub.s32 %v378, %v401
        %v403 = vsub.s32 0, %v402
        %v404 = vsel %vm376, %v403, %v402
        %vm405 = vcmp.lt.s32.totalorder %v229, 0
        %v406 = vsub.s32 0, %v229
        %v407 = vsel %vm405, %v406, %v229
        %v408 = vand.u32 %v407, 65535
        %v409 = vshrl.u32 %v407, 16
        %v411 = vmul.u32 %v408, 14564
        %v412 = vmul.u32 %v408, 58254
        %v413 = vmul.u32 %v409, 14564
        %v414 = vmul.u32 %v409, 58254
        %v415 = vshll.u32 %v412, 16
        %v416 = vshrl.u32 %v412, 16
        %v417 = vshll.u32 %v413, 16
        %v418 = vshrl.u32 %v413, 16
        %vm419 = vc.u32 %v411, %v415
        %v420 = vsel %vm419, 1, 0
        %v421 = vadd.s32 %v411, %v415
        %v422 = vadd.s32 %v414, %v420
        %vm423 = vc.u32 %v421, %v417
        %v424 = vsel %vm423, 1, 0
        %v425 = vadd.s32 %v421, %v417
        %v426 = vadd.s32 %v422, %v424
        %v427 = vadd.s32 %v426, %v416
        %v428 = vadd.s32 %v427, %v418
        %v429 = vshrl.u32 %v428, 4
        %v430 = vmul.u32 %v429, 18
        %v431 = vsub.s32 %v407, %v430
        %v432 = vsub.s32 0, %v431
        %v433 = vsel %vm405, %v432, %v431
        %vm434 = vcmp.lt.s32.totalorder %v230, 0
        %v435 = vsub.s32 0, %v230
        %v436 = vsel %vm434, %v435, %v230
        %v437 = vand.u32 %v436, 65535
        %v438 = vshrl.u32 %v436, 16
        %v440 = vmul.u32 %v437, 14564
        %v441 = vmul.u32 %v437, 58254
        %v442 = vmul.u32 %v438, 14564
        %v443 = vmul.u32 %v438, 58254
        %v444 = vshll.u32 %v441, 16
        %v445 = vshrl.u32 %v441, 16
        %v446 = vshll.u32 %v442, 16
        %v447 = vshrl.u32 %v442, 16
        %vm448 = vc.u32 %v440, %v444
        %v449 = vsel %vm448, 1, 0
        %v450 = vadd.s32 %v440, %v444
        %v451 = vadd.s32 %v443, %v449
        %vm452 = vc.u32 %v450, %v446
        %v453 = vsel %vm452, 1, 0
        %v454 = vadd.s32 %v450, %v446
        %v455 = vadd.s32 %v451, %v453
        %v456 = vadd.s32 %v455, %v445
        %v457 = vadd.s32 %v456, %v447
        %v458 = vshrl.u32 %v457, 4
        %v459 = vmul.u32 %v458, 18
        %v460 = vsub.s32 %v436, %v459
        %v461 = vsub.s32 0, %v460
        %v462 = vsel %vm434, %v461, %v460
        %vm463 = vcmp.lt.s32.totalorder %v231, 0
        %v464 = vsub.s32 0, %v231
        %v465 = vsel %vm463, %v464, %v231
        %v466 = vand.u32 %v465, 65535
        %v467 = vshrl.u32 %v465, 16
        %v469 = vmul.u32 %v466, 14564
        %v470 = vmul.u32 %v466, 58254
        %v471 = vmul.u32 %v467, 14564
        %v472 = vmul.u32 %v467, 58254
        %v473 = vshll.u32 %v470, 16
        %v474 = vshrl.u32 %v470, 16
        %v475 = vshll.u32 %v471, 16
        %v476 = vshrl.u32 %v471, 16
        %vm477 = vc.u32 %v469, %v473
        %v478 = vsel %vm477, 1, 0
        %v479 = vadd.s32 %v469, %v473
        %v480 = vadd.s32 %v472, %v478
        %vm481 = vc.u32 %v479, %v475
        %v482 = vsel %vm481, 1, 0
        %v483 = vadd.s32 %v479, %v475
        %v484 = vadd.s32 %v480, %v482
        %v485 = vadd.s32 %v484, %v474
        %v486 = vadd.s32 %v485, %v476
        %v487 = vshrl.u32 %v486, 4
        %v488 = vmul.u32 %v487, 18
        %v489 = vsub.s32 %v465, %v488
        %v490 = vsub.s32 0, %v489
        %v491 = vsel %vm463, %v490, %v489
        %vm492 = vcmp.lt.s32.totalorder %v232, 0
        %v493 = vsub.s32 0, %v232
        %v494 = vsel %vm492, %v493, %v232
        %v495 = vand.u32 %v494, 65535
        %v496 = vshrl.u32 %v494, 16
        %v498 = vmul.u32 %v495, 14564
        %v499 = vmul.u32 %v495, 58254
        %v500 = vmul.u32 %v496, 14564
        %v501 = vmul.u32 %v496, 58254
        %v502 = vshll.u32 %v499, 16
        %v503 = vshrl.u32 %v499, 16
        %v504 = vshll.u32 %v500, 16
        %v505 = vshrl.u32 %v500, 16
        %vm506 = vc.u32 %v498, %v502
        %v507 = vsel %vm506, 1, 0
        %v508 = vadd.s32 %v498, %v502
        %v509 = vadd.s32 %v501, %v507
        %vm510 = vc.u32 %v508, %v504
        %v511 = vsel %vm510, 1, 0
        %v512 = vadd.s32 %v508, %v504
        %v513 = vadd.s32 %v509, %v511
        %v514 = vadd.s32 %v513, %v503
        %v515 = vadd.s32 %v514, %v505
        %v516 = vshrl.u32 %v515, 4
        %v517 = vmul.u32 %v516, 18
        %v518 = vsub.s32 %v494, %v517
        %v519 = vsub.s32 0, %v518
        %v520 = vsel %vm492, %v519, %v518
        %vm521 = vcmp.lt.s32.totalorder %v233, 0
        %v522 = vsub.s32 0, %v233
        %v523 = vsel %vm521, %v522, %v233
        %v524 = vand.u32 %v523, 65535
        %v525 = vshrl.u32 %v523, 16
        %v527 = vmul.u32 %v524, 14564
        %v528 = vmul.u32 %v524, 58254
        %v529 = vmul.u32 %v525, 14564
        %v530 = vmul.u32 %v525, 58254
        %v531 = vshll.u32 %v528, 16
        %v532 = vshrl.u32 %v528, 16
        %v533 = vshll.u32 %v529, 16
        %v534 = vshrl.u32 %v529, 16
        %vm535 = vc.u32 %v527, %v531
        %v536 = vsel %vm535, 1, 0
        %v537 = vadd.s32 %v527, %v531
        %v538 = vadd.s32 %v530, %v536
        %vm539 = vc.u32 %v537, %v533
        %v540 = vsel %vm539, 1, 0
        %v541 = vadd.s32 %v537, %v533
        %v542 = vadd.s32 %v538, %v540
        %v543 = vadd.s32 %v542, %v532
        %v544 = vadd.s32 %v543, %v534
        %v545 = vshrl.u32 %v544, 4
        %v546 = vmul.u32 %v545, 18
        %v547 = vsub.s32 %v523, %v546
        %v548 = vsub.s32 0, %v547
        %v549 = vsel %vm521, %v548, %v547
        %vm550 = vcmp.lt.s32.totalorder %v234, 0
        %v551 = vsub.s32 0, %v234
        %v552 = vsel %vm550, %v551, %v234
        %v553 = vand.u32 %v552, 65535
        %v554 = vshrl.u32 %v552, 16
        %v556 = vmul.u32 %v553, 14564
        %v557 = vmul.u32 %v553, 58254
        %v558 = vmul.u32 %v554, 14564
        %v559 = vmul.u32 %v554, 58254
        %v560 = vshll.u32 %v557, 16
        %v561 = vshrl.u32 %v557, 16
        %v562 = vshll.u32 %v558, 16
        %v563 = vshrl.u32 %v558, 16
        %vm564 = vc.u32 %v556, %v560
        %v565 = vsel %vm564, 1, 0
        %v566 = vadd.s32 %v556, %v560
        %v567 = vadd.s32 %v559, %v565
        %vm568 = vc.u32 %v566, %v562
        %v569 = vsel %vm568, 1, 0
        %v570 = vadd.s32 %v566, %v562
        %v571 = vadd.s32 %v567, %v569
        %v572 = vadd.s32 %v571, %v561
        %v573 = vadd.s32 %v572, %v563
        %v574 = vshrl.u32 %v573, 4
        %v575 = vmul.u32 %v574, 18
        %v576 = vsub.s32 %v552, %v575
        %v577 = vsub.s32 0, %v576
        %v578 = vsel %vm550, %v577, %v576
        %vm579 = vcmp.lt.s32.totalorder %v235, 0
        %v580 = vsub.s32 0, %v235
        %v581 = vsel %vm579, %v580, %v235
        %v582 = vand.u32 %v581, 65535
        %v583 = vshrl.u32 %v581, 16
        %v585 = vmul.u32 %v582, 14564
        %v586 = vmul.u32 %v582, 58254
        %v587 = vmul.u32 %v583, 14564
        %v588 = vmul.u32 %v583, 58254
        %v589 = vshll.u32 %v586, 16
        %v590 = vshrl.u32 %v586, 16
        %v591 = vshll.u32 %v587, 16
        %v592 = vshrl.u32 %v587, 16
        %vm593 = vc.u32 %v585, %v589
        %v594 = vsel %vm593, 1, 0
        %v595 = vadd.s32 %v585, %v589
        %v596 = vadd.s32 %v588, %v594
        %vm597 = vc.u32 %v595, %v591
        %v598 = vsel %vm597, 1, 0
        %v599 = vadd.s32 %v595, %v591
        %v600 = vadd.s32 %v596, %v598
        %v601 = vadd.s32 %v600, %v590
        %v602 = vadd.s32 %v601, %v592
        %v603 = vshrl.u32 %v602, 4
        %v604 = vmul.u32 %v603, 18
        %v605 = vsub.s32 %v581, %v604
        %v606 = vsub.s32 0, %v605
        %v607 = vsel %vm579, %v606, %v605
        %vm608 = vcmp.lt.s32.totalorder %v236, 0
        %v609 = vsub.s32 0, %v236
        %v610 = vsel %vm608, %v609, %v236
        %v611 = vand.u32 %v610, 65535
        %v612 = vshrl.u32 %v610, 16
        %v614 = vmul.u32 %v611, 14564
        %v615 = vmul.u32 %v611, 58254
        %v616 = vmul.u32 %v612, 14564
        %v617 = vmul.u32 %v612, 58254
        %v618 = vshll.u32 %v615, 16
        %v619 = vshrl.u32 %v615, 16
        %v620 = vshll.u32 %v616, 16
        %v621 = vshrl.u32 %v616, 16
        %vm622 = vc.u32 %v614, %v618
        %v623 = vsel %vm622, 1, 0
        %v624 = vadd.s32 %v614, %v618
        %v625 = vadd.s32 %v617, %v623
        %vm626 = vc.u32 %v624, %v620
        %v627 = vsel %vm626, 1, 0
        %v628 = vadd.s32 %v624, %v620
        %v629 = vadd.s32 %v625, %v627
        %v630 = vadd.s32 %v629, %v619
        %v631 = vadd.s32 %v630, %v621
        %v632 = vshrl.u32 %v631, 4
        %v633 = vmul.u32 %v632, 18
        %v634 = vsub.s32 %v610, %v633
        %v635 = vsub.s32 0, %v634
        %v636 = vsel %vm608, %v635, %v634
        %vm637 = vcmp.lt.s32.totalorder %v237, 0
        %v638 = vsub.s32 0, %v237
        %v639 = vsel %vm637, %v638, %v237
        %v640 = vand.u32 %v639, 65535
        %v641 = vshrl.u32 %v639, 16
        %v643 = vmul.u32 %v640, 14564
        %v644 = vmul.u32 %v640, 58254
        %v645 = vmul.u32 %v641, 14564
        %v646 = vmul.u32 %v641, 58254
        %v647 = vshll.u32 %v644, 16
        %v648 = vshrl.u32 %v644, 16
        %v649 = vshll.u32 %v645, 16
        %v650 = vshrl.u32 %v645, 16
        %vm651 = vc.u32 %v643, %v647
        %v652 = vsel %vm651, 1, 0
        %v653 = vadd.s32 %v643, %v647
        %v654 = vadd.s32 %v646, %v652
        %vm655 = vc.u32 %v653, %v649
        %v656 = vsel %vm655, 1, 0
        %v657 = vadd.s32 %v653, %v649
        %v658 = vadd.s32 %v654, %v656
        %v659 = vadd.s32 %v658, %v648
        %v660 = vadd.s32 %v659, %v650
        %v661 = vshrl.u32 %v660, 4
        %v662 = vmul.u32 %v661, 18
        %v663 = vsub.s32 %v639, %v662
        %v664 = vsub.s32 0, %v663
        %v665 = vsel %vm637, %v664, %v663
        %vm666 = vcmp.lt.s32.totalorder %v238, 0
        %v667 = vsub.s32 0, %v238
        %v668 = vsel %vm666, %v667, %v238
        %v669 = vand.u32 %v668, 65535
        %v670 = vshrl.u32 %v668, 16
        %v672 = vmul.u32 %v669, 14564
        %v673 = vmul.u32 %v669, 58254
        %v674 = vmul.u32 %v670, 14564
        %v675 = vmul.u32 %v670, 58254
        %v676 = vshll.u32 %v673, 16
        %v677 = vshrl.u32 %v673, 16
        %v678 = vshll.u32 %v674, 16
        %v679 = vshrl.u32 %v674, 16
        %vm680 = vc.u32 %v672, %v676
        %v681 = vsel %vm680, 1, 0
        %v682 = vadd.s32 %v672, %v676
        %v683 = vadd.s32 %v675, %v681
        %vm684 = vc.u32 %v682, %v678
        %v685 = vsel %vm684, 1, 0
        %v686 = vadd.s32 %v682, %v678
        %v687 = vadd.s32 %v683, %v685
        %v688 = vadd.s32 %v687, %v677
        %v689 = vadd.s32 %v688, %v679
        %v690 = vshrl.u32 %v689, 4
        %v691 = vmul.u32 %v690, 18
        %v692 = vsub.s32 %v668, %v691
        %v693 = vsub.s32 0, %v692
        %v694 = vsel %vm666, %v693, %v692
        %vm695 = vcmp.lt.s32.totalorder %v239, 0
        %v696 = vsub.s32 0, %v239
        %v697 = vsel %vm695, %v696, %v239
        %v698 = vand.u32 %v697, 65535
        %v699 = vshrl.u32 %v697, 16
        %v701 = vmul.u32 %v698, 14564
        %v702 = vmul.u32 %v698, 58254
        %v703 = vmul.u32 %v699, 14564
        %v704 = vmul.u32 %v699, 58254
        %v705 = vshll.u32 %v702, 16
        %v706 = vshrl.u32 %v702, 16
        %v707 = vshll.u32 %v703, 16
        %v708 = vshrl.u32 %v703, 16
        %vm709 = vc.u32 %v701, %v705
        %v710 = vsel %vm709, 1, 0
        %v711 = vadd.s32 %v701, %v705
        %v712 = vadd.s32 %v704, %v710
        %vm713 = vc.u32 %v711, %v707
        %v714 = vsel %vm713, 1, 0
        %v715 = vadd.s32 %v711, %v707
        %v716 = vadd.s32 %v712, %v714
        %v717 = vadd.s32 %v716, %v706
        %v718 = vadd.s32 %v717, %v708
        %v719 = vshrl.u32 %v718, 4
        %v720 = vmul.u32 %v719, 18
        %v721 = vsub.s32 %v697, %v720
        %v722 = vsub.s32 0, %v721
        %v723 = vsel %vm695, %v722, %v721
        %vm724 = vcmp.lt.s32.totalorder %v240, 0
        %v725 = vsub.s32 0, %v240
        %v726 = vsel %vm724, %v725, %v240
        %v727 = vand.u32 %v726, 65535
        %v728 = vshrl.u32 %v726, 16
        %v730 = vmul.u32 %v727, 14564
        %v731 = vmul.u32 %v727, 58254
        %v732 = vmul.u32 %v728, 14564
        %v733 = vmul.u32 %v728, 58254
        %v734 = vshll.u32 %v731, 16
        %v735 = vshrl.u32 %v731, 16
        %v736 = vshll.u32 %v732, 16
        %v737 = vshrl.u32 %v732, 16
        %vm738 = vc.u32 %v730, %v734
        %v739 = vsel %vm738, 1, 0
        %v740 = vadd.s32 %v730, %v734
        %v741 = vadd.s32 %v733, %v739
        %vm742 = vc.u32 %v740, %v736
        %v743 = vsel %vm742, 1, 0
        %v744 = vadd.s32 %v740, %v736
        %v745 = vadd.s32 %v741, %v743
        %v746 = vadd.s32 %v745, %v735
        %v747 = vadd.s32 %v746, %v737
        %v748 = vshrl.u32 %v747, 4
        %v749 = vmul.u32 %v748, 18
        %v750 = vsub.s32 %v726, %v749
        %v751 = vsub.s32 0, %v750
        %v752 = vsel %vm724, %v751, %v750
        %vm753 = vcmp.lt.s32.totalorder %v241, 0
        %v754 = vsub.s32 0, %v241
        %v755 = vsel %vm753, %v754, %v241
        %v756 = vand.u32 %v755, 65535
        %v757 = vshrl.u32 %v755, 16
        %v759 = vmul.u32 %v756, 14564
        %v760 = vmul.u32 %v756, 58254
        %v761 = vmul.u32 %v757, 14564
        %v762 = vmul.u32 %v757, 58254
        %v763 = vshll.u32 %v760, 16
        %v764 = vshrl.u32 %v760, 16
        %v765 = vshll.u32 %v761, 16
        %v766 = vshrl.u32 %v761, 16
        %vm767 = vc.u32 %v759, %v763
        %v768 = vsel %vm767, 1, 0
        %v769 = vadd.s32 %v759, %v763
        %v770 = vadd.s32 %v762, %v768
        %vm771 = vc.u32 %v769, %v765
        %v772 = vsel %vm771, 1, 0
        %v773 = vadd.s32 %v769, %v765
        %v774 = vadd.s32 %v770, %v772
        %v775 = vadd.s32 %v774, %v764
        %v776 = vadd.s32 %v775, %v766
        %v777 = vshrl.u32 %v776, 4
        %v778 = vmul.u32 %v777, 18
        %v779 = vsub.s32 %v755, %v778
        %v780 = vsub.s32 0, %v779
        %v781 = vsel %vm753, %v780, %v779
        %vm782 = vcmp.lt.s32.totalorder %v242, 0
        %v783 = vsub.s32 0, %v242
        %v784 = vsel %vm782, %v783, %v242
        %v785 = vand.u32 %v784, 65535
        %v786 = vshrl.u32 %v784, 16
        %v788 = vmul.u32 %v785, 14564
        %v789 = vmul.u32 %v785, 58254
        %v790 = vmul.u32 %v786, 14564
        %v791 = vmul.u32 %v786, 58254
        %v792 = vshll.u32 %v789, 16
        %v793 = vshrl.u32 %v789, 16
        %v794 = vshll.u32 %v790, 16
        %v795 = vshrl.u32 %v790, 16
        %vm796 = vc.u32 %v788, %v792
        %v797 = vsel %vm796, 1, 0
        %v798 = vadd.s32 %v788, %v792
        %v799 = vadd.s32 %v791, %v797
        %vm800 = vc.u32 %v798, %v794
        %v801 = vsel %vm800, 1, 0
        %v802 = vadd.s32 %v798, %v794
        %v803 = vadd.s32 %v799, %v801
        %v804 = vadd.s32 %v803, %v793
        %v805 = vadd.s32 %v804, %v795
        %v806 = vshrl.u32 %v805, 4
        %v807 = vmul.u32 %v806, 18
        %v808 = vsub.s32 %v784, %v807
        %v809 = vsub.s32 0, %v808
        %v810 = vsel %vm782, %v809, %v808
        %vm811 = vcmp.lt.s32.totalorder %v243, 0
        %v812 = vsub.s32 0, %v243
        %v813 = vsel %vm811, %v812, %v243
        %v814 = vand.u32 %v813, 65535
        %v815 = vshrl.u32 %v813, 16
        %v817 = vmul.u32 %v814, 14564
        %v818 = vmul.u32 %v814, 58254
        %v819 = vmul.u32 %v815, 14564
        %v820 = vmul.u32 %v815, 58254
        %v821 = vshll.u32 %v818, 16
        %v822 = vshrl.u32 %v818, 16
        %v823 = vshll.u32 %v819, 16
        %v824 = vshrl.u32 %v819, 16
        %vm825 = vc.u32 %v817, %v821
        %v826 = vsel %vm825, 1, 0
        %v827 = vadd.s32 %v817, %v821
        %v828 = vadd.s32 %v820, %v826
        %vm829 = vc.u32 %v827, %v823
        %v830 = vsel %vm829, 1, 0
        %v831 = vadd.s32 %v827, %v823
        %v832 = vadd.s32 %v828, %v830
        %v833 = vadd.s32 %v832, %v822
        %v834 = vadd.s32 %v833, %v824
        %v835 = vshrl.u32 %v834, 4
        %v836 = vmul.u32 %v835, 18
        %v837 = vsub.s32 %v813, %v836
        %v838 = vsub.s32 0, %v837
        %v839 = vsel %vm811, %v838, %v837
        %vm840 = vcmp.lt.s32.totalorder %v244, 0
        %v841 = vsub.s32 0, %v244
        %v842 = vsel %vm840, %v841, %v244
        %v843 = vand.u32 %v842, 65535
        %v844 = vshrl.u32 %v842, 16
        %v846 = vmul.u32 %v843, 14564
        %v847 = vmul.u32 %v843, 58254
        %v848 = vmul.u32 %v844, 14564
        %v849 = vmul.u32 %v844, 58254
        %v850 = vshll.u32 %v847, 16
        %v851 = vshrl.u32 %v847, 16
        %v852 = vshll.u32 %v848, 16
        %v853 = vshrl.u32 %v848, 16
        %vm854 = vc.u32 %v846, %v850
        %v855 = vsel %vm854, 1, 0
        %v856 = vadd.s32 %v846, %v850
        %v857 = vadd.s32 %v849, %v855
        %vm858 = vc.u32 %v856, %v852
        %v859 = vsel %vm858, 1, 0
        %v860 = vadd.s32 %v856, %v852
        %v861 = vadd.s32 %v857, %v859
        %v862 = vadd.s32 %v861, %v851
        %v863 = vadd.s32 %v862, %v853
        %v864 = vshrl.u32 %v863, 4
        %v865 = vmul.u32 %v864, 18
        %v866 = vsub.s32 %v842, %v865
        %v867 = vsub.s32 0, %v866
        %v868 = vsel %vm840, %v867, %v866
        %vm869 = vcmp.lt.s32.totalorder %v245, 0
        %v870 = vsub.s32 0, %v245
        %v871 = vsel %vm869, %v870, %v245
        %v872 = vand.u32 %v871, 65535
        %v873 = vshrl.u32 %v871, 16
        %v875 = vmul.u32 %v872, 14564
        %v876 = vmul.u32 %v872, 58254
        %v877 = vmul.u32 %v873, 14564
        %v878 = vmul.u32 %v873, 58254
        %v879 = vshll.u32 %v876, 16
        %v880 = vshrl.u32 %v876, 16
        %v881 = vshll.u32 %v877, 16
        %v882 = vshrl.u32 %v877, 16
        %vm883 = vc.u32 %v875, %v879
        %v884 = vsel %vm883, 1, 0
        %v885 = vadd.s32 %v875, %v879
        %v886 = vadd.s32 %v878, %v884
        %vm887 = vc.u32 %v885, %v881
        %v888 = vsel %vm887, 1, 0
        %v889 = vadd.s32 %v885, %v881
        %v890 = vadd.s32 %v886, %v888
        %v891 = vadd.s32 %v890, %v880
        %v892 = vadd.s32 %v891, %v882
        %v893 = vshrl.u32 %v892, 4
        %v894 = vmul.u32 %v893, 18
        %v895 = vsub.s32 %v871, %v894
        %v896 = vsub.s32 0, %v895
        %v897 = vsel %vm869, %v896, %v895
        %vm898 = vcmp.lt.s32.totalorder %v246, 0
        %v899 = vsub.s32 0, %v246
        %v900 = vsel %vm898, %v899, %v246
        %v901 = vand.u32 %v900, 65535
        %v902 = vshrl.u32 %v900, 16
        %v904 = vmul.u32 %v901, 14564
        %v905 = vmul.u32 %v901, 58254
        %v906 = vmul.u32 %v902, 14564
        %v907 = vmul.u32 %v902, 58254
        %v908 = vshll.u32 %v905, 16
        %v909 = vshrl.u32 %v905, 16
        %v910 = vshll.u32 %v906, 16
        %v911 = vshrl.u32 %v906, 16
        %vm912 = vc.u32 %v904, %v908
        %v913 = vsel %vm912, 1, 0
        %v914 = vadd.s32 %v904, %v908
        %v915 = vadd.s32 %v907, %v913
        %vm916 = vc.u32 %v914, %v910
        %v917 = vsel %vm916, 1, 0
        %v918 = vadd.s32 %v914, %v910
        %v919 = vadd.s32 %v915, %v917
        %v920 = vadd.s32 %v919, %v909
        %v921 = vadd.s32 %v920, %v911
        %v922 = vshrl.u32 %v921, 4
        %v923 = vmul.u32 %v922, 18
        %v924 = vsub.s32 %v900, %v923
        %v925 = vsub.s32 0, %v924
        %v926 = vsel %vm898, %v925, %v924
        %vm927 = vcmp.lt.s32.totalorder %v247, 0
        %v928 = vsub.s32 0, %v247
        %v929 = vsel %vm927, %v928, %v247
        %v930 = vand.u32 %v929, 65535
        %v931 = vshrl.u32 %v929, 16
        %v933 = vmul.u32 %v930, 14564
        %v934 = vmul.u32 %v930, 58254
        %v935 = vmul.u32 %v931, 14564
        %v936 = vmul.u32 %v931, 58254
        %v937 = vshll.u32 %v934, 16
        %v938 = vshrl.u32 %v934, 16
        %v939 = vshll.u32 %v935, 16
        %v940 = vshrl.u32 %v935, 16
        %vm941 = vc.u32 %v933, %v937
        %v942 = vsel %vm941, 1, 0
        %v943 = vadd.s32 %v933, %v937
        %v944 = vadd.s32 %v936, %v942
        %vm945 = vc.u32 %v943, %v939
        %v946 = vsel %vm945, 1, 0
        %v947 = vadd.s32 %v943, %v939
        %v948 = vadd.s32 %v944, %v946
        %v949 = vadd.s32 %v948, %v938
        %v950 = vadd.s32 %v949, %v940
        %v951 = vshrl.u32 %v950, 4
        %v952 = vmul.u32 %v951, 18
        %v953 = vsub.s32 %v929, %v952
        %v954 = vsub.s32 0, %v953
        %v955 = vsel %vm927, %v954, %v953
        %vm956 = vcmp.lt.s32.totalorder %v248, 0
        %v957 = vsub.s32 0, %v248
        %v958 = vsel %vm956, %v957, %v248
        %v959 = vand.u32 %v958, 65535
        %v960 = vshrl.u32 %v958, 16
        %v962 = vmul.u32 %v959, 14564
        %v963 = vmul.u32 %v959, 58254
        %v964 = vmul.u32 %v960, 14564
        %v965 = vmul.u32 %v960, 58254
        %v966 = vshll.u32 %v963, 16
        %v967 = vshrl.u32 %v963, 16
        %v968 = vshll.u32 %v964, 16
        %v969 = vshrl.u32 %v964, 16
        %vm970 = vc.u32 %v962, %v966
        %v971 = vsel %vm970, 1, 0
        %v972 = vadd.s32 %v962, %v966
        %v973 = vadd.s32 %v965, %v971
        %vm974 = vc.u32 %v972, %v968
        %v975 = vsel %vm974, 1, 0
        %v976 = vadd.s32 %v972, %v968
        %v977 = vadd.s32 %v973, %v975
        %v978 = vadd.s32 %v977, %v967
        %v979 = vadd.s32 %v978, %v969
        %v980 = vshrl.u32 %v979, 4
        %v981 = vmul.u32 %v980, 18
        %v982 = vsub.s32 %v958, %v981
        %v983 = vsub.s32 0, %v982
        %v984 = vsel %vm956, %v983, %v982
        %vm985 = vcmp.lt.s32.totalorder %v249, 0
        %v986 = vsub.s32 0, %v249
        %v987 = vsel %vm985, %v986, %v249
        %v988 = vand.u32 %v987, 65535
        %v989 = vshrl.u32 %v987, 16
        %v991 = vmul.u32 %v988, 14564
        %v992 = vmul.u32 %v988, 58254
        %v993 = vmul.u32 %v989, 14564
        %v994 = vmul.u32 %v989, 58254
        %v995 = vshll.u32 %v992, 16
        %v996 = vshrl.u32 %v992, 16
        %v997 = vshll.u32 %v993, 16
        %v998 = vshrl.u32 %v993, 16
        %vm999 = vc.u32 %v991, %v995
        %v1000 = vsel %vm999, 1, 0
        %v1001 = vadd.s32 %v991, %v995
        %v1002 = vadd.s32 %v994, %v1000
        %vm1003 = vc.u32 %v1001, %v997
        %v1004 = vsel %vm1003, 1, 0
        %v1005 = vadd.s32 %v1001, %v997
        %v1006 = vadd.s32 %v1002, %v1004
        %v1007 = vadd.s32 %v1006, %v996
        %v1008 = vadd.s32 %v1007, %v998
        %v1009 = vshrl.u32 %v1008, 4
        %v1010 = vmul.u32 %v1009, 18
        %v1011 = vsub.s32 %v987, %v1010
        %v1012 = vsub.s32 0, %v1011
        %v1013 = vsel %vm985, %v1012, %v1011
        %vm1014 = vcmp.lt.s32.totalorder %v250, 0
        %v1015 = vsub.s32 0, %v250
        %v1016 = vsel %vm1014, %v1015, %v250
        %v1017 = vand.u32 %v1016, 65535
        %v1018 = vshrl.u32 %v1016, 16
        %v1020 = vmul.u32 %v1017, 14564
        %v1021 = vmul.u32 %v1017, 58254
        %v1022 = vmul.u32 %v1018, 14564
        %v1023 = vmul.u32 %v1018, 58254
        %v1024 = vshll.u32 %v1021, 16
        %v1025 = vshrl.u32 %v1021, 16
        %v1026 = vshll.u32 %v1022, 16
        %v1027 = vshrl.u32 %v1022, 16
        %vm1028 = vc.u32 %v1020, %v1024
        %v1029 = vsel %vm1028, 1, 0
        %v1030 = vadd.s32 %v1020, %v1024
        %v1031 = vadd.s32 %v1023, %v1029
        %vm1032 = vc.u32 %v1030, %v1026
        %v1033 = vsel %vm1032, 1, 0
        %v1034 = vadd.s32 %v1030, %v1026
        %v1035 = vadd.s32 %v1031, %v1033
        %v1036 = vadd.s32 %v1035, %v1025
        %v1037 = vadd.s32 %v1036, %v1027
        %v1038 = vshrl.u32 %v1037, 4
        %v1039 = vmul.u32 %v1038, 18
        %v1040 = vsub.s32 %v1016, %v1039
        %v1041 = vsub.s32 0, %v1040
        %v1042 = vsel %vm1014, %v1041, %v1040
        %vm1043 = vcmp.lt.s32.totalorder %v251, 0
        %v1044 = vsub.s32 0, %v251
        %v1045 = vsel %vm1043, %v1044, %v251
        %v1046 = vand.u32 %v1045, 65535
        %v1047 = vshrl.u32 %v1045, 16
        %v1049 = vmul.u32 %v1046, 14564
        %v1050 = vmul.u32 %v1046, 58254
        %v1051 = vmul.u32 %v1047, 14564
        %v1052 = vmul.u32 %v1047, 58254
        %v1053 = vshll.u32 %v1050, 16
        %v1054 = vshrl.u32 %v1050, 16
        %v1055 = vshll.u32 %v1051, 16
        %v1056 = vshrl.u32 %v1051, 16
        %vm1057 = vc.u32 %v1049, %v1053
        %v1058 = vsel %vm1057, 1, 0
        %v1059 = vadd.s32 %v1049, %v1053
        %v1060 = vadd.s32 %v1052, %v1058
        %vm1061 = vc.u32 %v1059, %v1055
        %v1062 = vsel %vm1061, 1, 0
        %v1063 = vadd.s32 %v1059, %v1055
        %v1064 = vadd.s32 %v1060, %v1062
        %v1065 = vadd.s32 %v1064, %v1054
        %v1066 = vadd.s32 %v1065, %v1056
        %v1067 = vshrl.u32 %v1066, 4
        %v1068 = vmul.u32 %v1067, 18
        %v1069 = vsub.s32 %v1045, %v1068
        %v1070 = vsub.s32 0, %v1069
        %v1071 = vsel %vm1043, %v1070, %v1069
        %vm1072 = vcmp.lt.s32.totalorder %v252, 0
        %v1073 = vsub.s32 0, %v252
        %v1074 = vsel %vm1072, %v1073, %v252
        %v1075 = vand.u32 %v1074, 65535
        %v1076 = vshrl.u32 %v1074, 16
        %v1078 = vmul.u32 %v1075, 14564
        %v1079 = vmul.u32 %v1075, 58254
        %v1080 = vmul.u32 %v1076, 14564
        %v1081 = vmul.u32 %v1076, 58254
        %v1082 = vshll.u32 %v1079, 16
        %v1083 = vshrl.u32 %v1079, 16
        %v1084 = vshll.u32 %v1080, 16
        %v1085 = vshrl.u32 %v1080, 16
        %vm1086 = vc.u32 %v1078, %v1082
        %v1087 = vsel %vm1086, 1, 0
        %v1088 = vadd.s32 %v1078, %v1082
        %v1089 = vadd.s32 %v1081, %v1087
        %vm1090 = vc.u32 %v1088, %v1084
        %v1091 = vsel %vm1090, 1, 0
        %v1092 = vadd.s32 %v1088, %v1084
        %v1093 = vadd.s32 %v1089, %v1091
        %v1094 = vadd.s32 %v1093, %v1083
        %v1095 = vadd.s32 %v1094, %v1085
        %v1096 = vshrl.u32 %v1095, 4
        %v1097 = vmul.u32 %v1096, 18
        %v1098 = vsub.s32 %v1074, %v1097
        %v1099 = vsub.s32 0, %v1098
        %v1100 = vsel %vm1072, %v1099, %v1098
        %vm1101 = vcmp.lt.s32.totalorder %v253, 0
        %v1102 = vsub.s32 0, %v253
        %v1103 = vsel %vm1101, %v1102, %v253
        %v1104 = vand.u32 %v1103, 65535
        %v1105 = vshrl.u32 %v1103, 16
        %v1107 = vmul.u32 %v1104, 14564
        %v1108 = vmul.u32 %v1104, 58254
        %v1109 = vmul.u32 %v1105, 14564
        %v1110 = vmul.u32 %v1105, 58254
        %v1111 = vshll.u32 %v1108, 16
        %v1112 = vshrl.u32 %v1108, 16
        %v1113 = vshll.u32 %v1109, 16
        %v1114 = vshrl.u32 %v1109, 16
        %vm1115 = vc.u32 %v1107, %v1111
        %v1116 = vsel %vm1115, 1, 0
        %v1117 = vadd.s32 %v1107, %v1111
        %v1118 = vadd.s32 %v1110, %v1116
        %vm1119 = vc.u32 %v1117, %v1113
        %v1120 = vsel %vm1119, 1, 0
        %v1121 = vadd.s32 %v1117, %v1113
        %v1122 = vadd.s32 %v1118, %v1120
        %v1123 = vadd.s32 %v1122, %v1112
        %v1124 = vadd.s32 %v1123, %v1114
        %v1125 = vshrl.u32 %v1124, 4
        %v1126 = vmul.u32 %v1125, 18
        %v1127 = vsub.s32 %v1103, %v1126
        %v1128 = vsub.s32 0, %v1127
        %v1129 = vsel %vm1101, %v1128, %v1127
        %vm1130 = vcmp.lt.s32.totalorder %v254, 0
        %v1131 = vsub.s32 0, %v254
        %v1132 = vsel %vm1130, %v1131, %v254
        %v1133 = vand.u32 %v1132, 65535
        %v1134 = vshrl.u32 %v1132, 16
        %v1136 = vmul.u32 %v1133, 14564
        %v1137 = vmul.u32 %v1133, 58254
        %v1138 = vmul.u32 %v1134, 14564
        %v1139 = vmul.u32 %v1134, 58254
        %v1140 = vshll.u32 %v1137, 16
        %v1141 = vshrl.u32 %v1137, 16
        %v1142 = vshll.u32 %v1138, 16
        %v1143 = vshrl.u32 %v1138, 16
        %vm1144 = vc.u32 %v1136, %v1140
        %v1145 = vsel %vm1144, 1, 0
        %v1146 = vadd.s32 %v1136, %v1140
        %v1147 = vadd.s32 %v1139, %v1145
        %vm1148 = vc.u32 %v1146, %v1142
        %v1149 = vsel %vm1148, 1, 0
        %v1150 = vadd.s32 %v1146, %v1142
        %v1151 = vadd.s32 %v1147, %v1149
        %v1152 = vadd.s32 %v1151, %v1141
        %v1153 = vadd.s32 %v1152, %v1143
        %v1154 = vshrl.u32 %v1153, 4
        %v1155 = vmul.u32 %v1154, 18
        %v1156 = vsub.s32 %v1132, %v1155
        %v1157 = vsub.s32 0, %v1156
        %v1158 = vsel %vm1130, %v1157, %v1156
        %vm1159 = vcmp.lt.s32.totalorder %v255, 0
        %v1160 = vsub.s32 0, %v255
        %v1161 = vsel %vm1159, %v1160, %v255
        %v1162 = vand.u32 %v1161, 65535
        %v1163 = vshrl.u32 %v1161, 16
        %v1165 = vmul.u32 %v1162, 14564
        %v1166 = vmul.u32 %v1162, 58254
        %v1167 = vmul.u32 %v1163, 14564
        %v1168 = vmul.u32 %v1163, 58254
        %v1169 = vshll.u32 %v1166, 16
        %v1170 = vshrl.u32 %v1166, 16
        %v1171 = vshll.u32 %v1167, 16
        %v1172 = vshrl.u32 %v1167, 16
        %vm1173 = vc.u32 %v1165, %v1169
        %v1174 = vsel %vm1173, 1, 0
        %v1175 = vadd.s32 %v1165, %v1169
        %v1176 = vadd.s32 %v1168, %v1174
        %vm1177 = vc.u32 %v1175, %v1171
        %v1178 = vsel %vm1177, 1, 0
        %v1179 = vadd.s32 %v1175, %v1171
        %v1180 = vadd.s32 %v1176, %v1178
        %v1181 = vadd.s32 %v1180, %v1170
        %v1182 = vadd.s32 %v1181, %v1172
        %v1183 = vshrl.u32 %v1182, 4
        %v1184 = vmul.u32 %v1183, 18
        %v1185 = vsub.s32 %v1161, %v1184
        %v1186 = vsub.s32 0, %v1185
        %v1187 = vsel %vm1159, %v1186, %v1185
        %vm1188 = vcmp.lt.s32.totalorder %v256, 0
        %v1189 = vsub.s32 0, %v256
        %v1190 = vsel %vm1188, %v1189, %v256
        %v1191 = vand.u32 %v1190, 65535
        %v1192 = vshrl.u32 %v1190, 16
        %v1194 = vmul.u32 %v1191, 14564
        %v1195 = vmul.u32 %v1191, 58254
        %v1196 = vmul.u32 %v1192, 14564
        %v1197 = vmul.u32 %v1192, 58254
        %v1198 = vshll.u32 %v1195, 16
        %v1199 = vshrl.u32 %v1195, 16
        %v1200 = vshll.u32 %v1196, 16
        %v1201 = vshrl.u32 %v1196, 16
        %vm1202 = vc.u32 %v1194, %v1198
        %v1203 = vsel %vm1202, 1, 0
        %v1204 = vadd.s32 %v1194, %v1198
        %v1205 = vadd.s32 %v1197, %v1203
        %vm1206 = vc.u32 %v1204, %v1200
        %v1207 = vsel %vm1206, 1, 0
        %v1208 = vadd.s32 %v1204, %v1200
        %v1209 = vadd.s32 %v1205, %v1207
        %v1210 = vadd.s32 %v1209, %v1199
        %v1211 = vadd.s32 %v1210, %v1201
        %v1212 = vshrl.u32 %v1211, 4
        %v1213 = vmul.u32 %v1212, 18
        %v1214 = vsub.s32 %v1190, %v1213
        %v1215 = vsub.s32 0, %v1214
        %v1216 = vsel %vm1188, %v1215, %v1214
        %vm1217 = vcmp.lt.s32.totalorder %v257, 0
        %v1218 = vsub.s32 0, %v257
        %v1219 = vsel %vm1217, %v1218, %v257
        %v1220 = vand.u32 %v1219, 65535
        %v1221 = vshrl.u32 %v1219, 16
        %v1223 = vmul.u32 %v1220, 14564
        %v1224 = vmul.u32 %v1220, 58254
        %v1225 = vmul.u32 %v1221, 14564
        %v1226 = vmul.u32 %v1221, 58254
        %v1227 = vshll.u32 %v1224, 16
        %v1228 = vshrl.u32 %v1224, 16
        %v1229 = vshll.u32 %v1225, 16
        %v1230 = vshrl.u32 %v1225, 16
        %vm1231 = vc.u32 %v1223, %v1227
        %v1232 = vsel %vm1231, 1, 0
        %v1233 = vadd.s32 %v1223, %v1227
        %v1234 = vadd.s32 %v1226, %v1232
        %vm1235 = vc.u32 %v1233, %v1229
        %v1236 = vsel %vm1235, 1, 0
        %v1237 = vadd.s32 %v1233, %v1229
        %v1238 = vadd.s32 %v1234, %v1236
        %v1239 = vadd.s32 %v1238, %v1228
        %v1240 = vadd.s32 %v1239, %v1230
        %v1241 = vshrl.u32 %v1240, 4
        %v1242 = vmul.u32 %v1241, 18
        %v1243 = vsub.s32 %v1219, %v1242
        %v1244 = vsub.s32 0, %v1243
        %v1245 = vsel %vm1217, %v1244, %v1243
        %vm1246 = vcmp.lt.s32.totalorder %v258, 0
        %v1247 = vsub.s32 0, %v258
        %v1248 = vsel %vm1246, %v1247, %v258
        %v1249 = vand.u32 %v1248, 65535
        %v1250 = vshrl.u32 %v1248, 16
        %v1252 = vmul.u32 %v1249, 14564
        %v1253 = vmul.u32 %v1249, 58254
        %v1254 = vmul.u32 %v1250, 14564
        %v1255 = vmul.u32 %v1250, 58254
        %v1256 = vshll.u32 %v1253, 16
        %v1257 = vshrl.u32 %v1253, 16
        %v1258 = vshll.u32 %v1254, 16
        %v1259 = vshrl.u32 %v1254, 16
        %vm1260 = vc.u32 %v1252, %v1256
        %v1261 = vsel %vm1260, 1, 0
        %v1262 = vadd.s32 %v1252, %v1256
        %v1263 = vadd.s32 %v1255, %v1261
        %vm1264 = vc.u32 %v1262, %v1258
        %v1265 = vsel %vm1264, 1, 0
        %v1266 = vadd.s32 %v1262, %v1258
        %v1267 = vadd.s32 %v1263, %v1265
        %v1268 = vadd.s32 %v1267, %v1257
        %v1269 = vadd.s32 %v1268, %v1259
        %v1270 = vshrl.u32 %v1269, 4
        %v1271 = vmul.u32 %v1270, 18
        %v1272 = vsub.s32 %v1248, %v1271
        %v1273 = vsub.s32 0, %v1272
        %v1274 = vsel %vm1246, %v1273, %v1272
        %vm1275 = vcmp.lt.s32.totalorder %v259, 0
        %v1276 = vsub.s32 0, %v259
        %v1277 = vsel %vm1275, %v1276, %v259
        %v1278 = vand.u32 %v1277, 65535
        %v1279 = vshrl.u32 %v1277, 16
        %v1281 = vmul.u32 %v1278, 14564
        %v1282 = vmul.u32 %v1278, 58254
        %v1283 = vmul.u32 %v1279, 14564
        %v1284 = vmul.u32 %v1279, 58254
        %v1285 = vshll.u32 %v1282, 16
        %v1286 = vshrl.u32 %v1282, 16
        %v1287 = vshll.u32 %v1283, 16
        %v1288 = vshrl.u32 %v1283, 16
        %vm1289 = vc.u32 %v1281, %v1285
        %v1290 = vsel %vm1289, 1, 0
        %v1291 = vadd.s32 %v1281, %v1285
        %v1292 = vadd.s32 %v1284, %v1290
        %vm1293 = vc.u32 %v1291, %v1287
        %v1294 = vsel %vm1293, 1, 0
        %v1295 = vadd.s32 %v1291, %v1287
        %v1296 = vadd.s32 %v1292, %v1294
        %v1297 = vadd.s32 %v1296, %v1286
        %v1298 = vadd.s32 %v1297, %v1288
        %v1299 = vshrl.u32 %v1298, 4
        %v1300 = vmul.u32 %v1299, 18
        %v1301 = vsub.s32 %v1277, %v1300
        %v1302 = vsub.s32 0, %v1301
        %v1303 = vsel %vm1275, %v1302, %v1301
        %vm1304 = vcmp.ne.s32.totalorder %v288, 0
        %vm1305 = vcmp.ne.s32.totalorder %v317, 0
        %vm1306 = vcmp.ne.s32.totalorder %v346, 0
        %vm1307 = vcmp.ne.s32.totalorder %v375, 0
        %vm1308 = vcmp.ne.s32.totalorder %v404, 0
        %vm1309 = vcmp.ne.s32.totalorder %v433, 0
        %vm1310 = vcmp.ne.s32.totalorder %v462, 0
        %vm1311 = vcmp.ne.s32.totalorder %v491, 0
        %vm1312 = vcmp.ne.s32.totalorder %v520, 0
        %vm1313 = vcmp.ne.s32.totalorder %v549, 0
        %vm1314 = vcmp.ne.s32.totalorder %v578, 0
        %vm1315 = vcmp.ne.s32.totalorder %v607, 0
        %vm1316 = vcmp.ne.s32.totalorder %v636, 0
        %vm1317 = vcmp.ne.s32.totalorder %v665, 0
        %vm1318 = vcmp.ne.s32.totalorder %v694, 0
        %vm1319 = vcmp.ne.s32.totalorder %v723, 0
        %vm1320 = vcmp.ne.s32.totalorder %v752, 0
        %vm1321 = vcmp.ne.s32.totalorder %v781, 0
        %vm1322 = vcmp.ne.s32.totalorder %v810, 0
        %vm1323 = vcmp.ne.s32.totalorder %v839, 0
        %vm1324 = vcmp.ne.s32.totalorder %v868, 0
        %vm1325 = vcmp.ne.s32.totalorder %v897, 0
        %vm1326 = vcmp.ne.s32.totalorder %v926, 0
        %vm1327 = vcmp.ne.s32.totalorder %v955, 0
        %vm1328 = vcmp.ne.s32.totalorder %v984, 0
        %vm1329 = vcmp.ne.s32.totalorder %v1013, 0
        %vm1330 = vcmp.ne.s32.totalorder %v1042, 0
        %vm1331 = vcmp.ne.s32.totalorder %v1071, 0
        %vm1332 = vcmp.ne.s32.totalorder %v1100, 0
        %vm1333 = vcmp.ne.s32.totalorder %v1129, 0
        %vm1334 = vcmp.ne.s32.totalorder %v1158, 0
        %vm1335 = vcmp.ne.s32.totalorder %v1187, 0
        %vm1336 = vcmp.ne.s32.totalorder %v1216, 0
        %vm1337 = vcmp.ne.s32.totalorder %v1245, 0
        %vm1338 = vcmp.ne.s32.totalorder %v1274, 0
        %vm1339 = vcmp.ne.s32.totalorder %v1303, 0
        %vm1340 = vcmp.lt.s32.totalorder %v288, 0
        %vm1341 = vcmp.lt.s32.totalorder %v317, 0
        %vm1342 = vcmp.lt.s32.totalorder %v346, 0
        %vm1343 = vcmp.lt.s32.totalorder %v375, 0
        %vm1344 = vcmp.lt.s32.totalorder %v404, 0
        %vm1345 = vcmp.lt.s32.totalorder %v433, 0
        %vm1346 = vcmp.lt.s32.totalorder %v462, 0
        %vm1347 = vcmp.lt.s32.totalorder %v491, 0
        %vm1348 = vcmp.lt.s32.totalorder %v520, 0
        %vm1349 = vcmp.lt.s32.totalorder %v549, 0
        %vm1350 = vcmp.lt.s32.totalorder %v578, 0
        %vm1351 = vcmp.lt.s32.totalorder %v607, 0
        %vm1352 = vcmp.lt.s32.totalorder %v636, 0
        %vm1353 = vcmp.lt.s32.totalorder %v665, 0
        %vm1354 = vcmp.lt.s32.totalorder %v694, 0
        %vm1355 = vcmp.lt.s32.totalorder %v723, 0
        %vm1356 = vcmp.lt.s32.totalorder %v752, 0
        %vm1357 = vcmp.lt.s32.totalorder %v781, 0
        %vm1358 = vcmp.lt.s32.totalorder %v810, 0
        %vm1359 = vcmp.lt.s32.totalorder %v839, 0
        %vm1360 = vcmp.lt.s32.totalorder %v868, 0
        %vm1361 = vcmp.lt.s32.totalorder %v897, 0
        %vm1362 = vcmp.lt.s32.totalorder %v926, 0
        %vm1363 = vcmp.lt.s32.totalorder %v955, 0
        %vm1364 = vcmp.lt.s32.totalorder %v984, 0
        %vm1365 = vcmp.lt.s32.totalorder %v1013, 0
        %vm1366 = vcmp.lt.s32.totalorder %v1042, 0
        %vm1367 = vcmp.lt.s32.totalorder %v1071, 0
        %vm1368 = vcmp.lt.s32.totalorder %v1100, 0
        %vm1369 = vcmp.lt.s32.totalorder %v1129, 0
        %vm1370 = vcmp.lt.s32.totalorder %v1158, 0
        %vm1371 = vcmp.lt.s32.totalorder %v1187, 0
        %vm1372 = vcmp.lt.s32.totalorder %v1216, 0
        %vm1373 = vcmp.lt.s32.totalorder %v1245, 0
        %vm1374 = vcmp.lt.s32.totalorder %v1274, 0
        %vm1375 = vcmp.lt.s32.totalorder %v1303, 0
        %vm1376 = vmand %vm1340, %vm1304
        %vm1377 = vmand %vm1341, %vm1305
        %vm1378 = vmand %vm1342, %vm1306
        %vm1379 = vmand %vm1343, %vm1307
        %vm1380 = vmand %vm1344, %vm1308
        %vm1381 = vmand %vm1345, %vm1309
        %vm1382 = vmand %vm1346, %vm1310
        %vm1383 = vmand %vm1347, %vm1311
        %vm1384 = vmand %vm1348, %vm1312
        %vm1385 = vmand %vm1349, %vm1313
        %vm1386 = vmand %vm1350, %vm1314
        %vm1387 = vmand %vm1351, %vm1315
        %vm1388 = vmand %vm1352, %vm1316
        %vm1389 = vmand %vm1353, %vm1317
        %vm1390 = vmand %vm1354, %vm1318
        %vm1391 = vmand %vm1355, %vm1319
        %vm1392 = vmand %vm1356, %vm1320
        %vm1393 = vmand %vm1357, %vm1321
        %vm1394 = vmand %vm1358, %vm1322
        %vm1395 = vmand %vm1359, %vm1323
        %vm1396 = vmand %vm1360, %vm1324
        %vm1397 = vmand %vm1361, %vm1325
        %vm1398 = vmand %vm1362, %vm1326
        %vm1399 = vmand %vm1363, %vm1327
        %vm1400 = vmand %vm1364, %vm1328
        %vm1401 = vmand %vm1365, %vm1329
        %vm1402 = vmand %vm1366, %vm1330
        %vm1403 = vmand %vm1367, %vm1331
        %vm1404 = vmand %vm1368, %vm1332
        %vm1405 = vmand %vm1369, %vm1333
        %vm1406 = vmand %vm1370, %vm1334
        %vm1407 = vmand %vm1371, %vm1335
        %vm1408 = vmand %vm1372, %vm1336
        %vm1409 = vmand %vm1373, %vm1337
        %vm1410 = vmand %vm1374, %vm1338
        %vm1411 = vmand %vm1375, %vm1339
        %v1412 = vadd.s32 %v288, 18
        %v1413 = vadd.s32 %v317, 18
        %v1414 = vadd.s32 %v346, 18
        %v1415 = vadd.s32 %v375, 18
        %v1416 = vadd.s32 %v404, 18
        %v1417 = vadd.s32 %v433, 18
        %v1418 = vadd.s32 %v462, 18
        %v1419 = vadd.s32 %v491, 18
        %v1420 = vadd.s32 %v520, 18
        %v1421 = vadd.s32 %v549, 18
        %v1422 = vadd.s32 %v578, 18
        %v1423 = vadd.s32 %v607, 18
        %v1424 = vadd.s32 %v636, 18
        %v1425 = vadd.s32 %v665, 18
        %v1426 = vadd.s32 %v694, 18
        %v1427 = vadd.s32 %v723, 18
        %v1428 = vadd.s32 %v752, 18
        %v1429 = vadd.s32 %v781, 18
        %v1430 = vadd.s32 %v810, 18
        %v1431 = vadd.s32 %v839, 18
        %v1432 = vadd.s32 %v868, 18
        %v1433 = vadd.s32 %v897, 18
        %v1434 = vadd.s32 %v926, 18
        %v1435 = vadd.s32 %v955, 18
        %v1436 = vadd.s32 %v984, 18
        %v1437 = vadd.s32 %v1013, 18
        %v1438 = vadd.s32 %v1042, 18
        %v1439 = vadd.s32 %v1071, 18
        %v1440 = vadd.s32 %v1100, 18
        %v1441 = vadd.s32 %v1129, 18
        %v1442 = vadd.s32 %v1158, 18
        %v1443 = vadd.s32 %v1187, 18
        %v1444 = vadd.s32 %v1216, 18
        %v1445 = vadd.s32 %v1245, 18
        %v1446 = vadd.s32 %v1274, 18
        %v1447 = vadd.s32 %v1303, 18
        %v1448 = vsel %vm1376, %v1412, %v288
        %v1449 = vsel %vm1377, %v1413, %v317
        %v1450 = vsel %vm1378, %v1414, %v346
        %v1451 = vsel %vm1379, %v1415, %v375
        %v1452 = vsel %vm1380, %v1416, %v404
        %v1453 = vsel %vm1381, %v1417, %v433
        %v1454 = vsel %vm1382, %v1418, %v462
        %v1455 = vsel %vm1383, %v1419, %v491
        %v1456 = vsel %vm1384, %v1420, %v520
        %v1457 = vsel %vm1385, %v1421, %v549
        %v1458 = vsel %vm1386, %v1422, %v578
        %v1459 = vsel %vm1387, %v1423, %v607
        %v1460 = vsel %vm1388, %v1424, %v636
        %v1461 = vsel %vm1389, %v1425, %v665
        %v1462 = vsel %vm1390, %v1426, %v694
        %v1463 = vsel %vm1391, %v1427, %v723
        %v1464 = vsel %vm1392, %v1428, %v752
        %v1465 = vsel %vm1393, %v1429, %v781
        %v1466 = vsel %vm1394, %v1430, %v810
        %v1467 = vsel %vm1395, %v1431, %v839
        %v1468 = vsel %vm1396, %v1432, %v868
        %v1469 = vsel %vm1397, %v1433, %v897
        %v1470 = vsel %vm1398, %v1434, %v926
        %v1471 = vsel %vm1399, %v1435, %v955
        %v1472 = vsel %vm1400, %v1436, %v984
        %v1473 = vsel %vm1401, %v1437, %v1013
        %v1474 = vsel %vm1402, %v1438, %v1042
        %v1475 = vsel %vm1403, %v1439, %v1071
        %v1476 = vsel %vm1404, %v1440, %v1100
        %v1477 = vsel %vm1405, %v1441, %v1129
        %v1478 = vsel %vm1406, %v1442, %v1158
        %v1479 = vsel %vm1407, %v1443, %v1187
        %v1480 = vsel %vm1408, %v1444, %v1216
        %v1481 = vsel %vm1409, %v1445, %v1245
        %v1482 = vsel %vm1410, %v1446, %v1274
        %v1483 = vsel %vm1411, %v1447, %v1303
        %vm1484 = vcmp.lt.s32.totalorder %v1448, 16
        %vm1485 = vcmp.lt.s32.totalorder %v1449, 16
        %vm1486 = vcmp.lt.s32.totalorder %v1450, 16
        %vm1487 = vcmp.lt.s32.totalorder %v1451, 16
        %vm1488 = vcmp.lt.s32.totalorder %v1452, 16
        %vm1489 = vcmp.lt.s32.totalorder %v1453, 16
        %vm1490 = vcmp.lt.s32.totalorder %v1454, 16
        %vm1491 = vcmp.lt.s32.totalorder %v1455, 16
        %vm1492 = vcmp.lt.s32.totalorder %v1456, 16
        %vm1493 = vcmp.lt.s32.totalorder %v1457, 16
        %vm1494 = vcmp.lt.s32.totalorder %v1458, 16
        %vm1495 = vcmp.lt.s32.totalorder %v1459, 16
        %vm1496 = vcmp.lt.s32.totalorder %v1460, 16
        %vm1497 = vcmp.lt.s32.totalorder %v1461, 16
        %vm1498 = vcmp.lt.s32.totalorder %v1462, 16
        %vm1499 = vcmp.lt.s32.totalorder %v1463, 16
        %vm1500 = vcmp.lt.s32.totalorder %v1464, 16
        %vm1501 = vcmp.lt.s32.totalorder %v1465, 16
        %vm1502 = vcmp.lt.s32.totalorder %v1466, 16
        %vm1503 = vcmp.lt.s32.totalorder %v1467, 16
        %vm1504 = vcmp.lt.s32.totalorder %v1468, 16
        %vm1505 = vcmp.lt.s32.totalorder %v1469, 16
        %vm1506 = vcmp.lt.s32.totalorder %v1470, 16
        %vm1507 = vcmp.lt.s32.totalorder %v1471, 16
        %vm1508 = vcmp.lt.s32.totalorder %v1472, 16
        %vm1509 = vcmp.lt.s32.totalorder %v1473, 16
        %vm1510 = vcmp.lt.s32.totalorder %v1474, 16
        %vm1511 = vcmp.lt.s32.totalorder %v1475, 16
        %vm1512 = vcmp.lt.s32.totalorder %v1476, 16
        %vm1513 = vcmp.lt.s32.totalorder %v1477, 16
        %vm1514 = vcmp.lt.s32.totalorder %v1478, 16
        %vm1515 = vcmp.lt.s32.totalorder %v1479, 16
        %vm1516 = vcmp.lt.s32.totalorder %v1480, 16
        %vm1517 = vcmp.lt.s32.totalorder %v1481, 16
        %vm1518 = vcmp.lt.s32.totalorder %v1482, 16
        %vm1519 = vcmp.lt.s32.totalorder %v1483, 16
        %p1520 = scmp.eq.s32.totalorder %s19, 0
        // Predicated region
        $region41: #{prototypical_network_forward.1} parent=39 // pred_check
          %p1521 = pneg %p1520
        $region42: #{prototypical_network_forward.1} parent=39 // pred_check_branch
          %1523 = sbr.rel (%p1521) target = $region44
        $region43: #{prototypical_network_forward.1} parent=39 // pred_region
          %vm1524 = vcmask 257024
          %1525 = vst.msk [vmem:[#allocation2] sm:$0xf] %vm1524, 0
          %1526 = vst.msk [vmem:[#allocation2 + $0x4] sm:$0xf] %vm1524, 0
          %1527 = vst.msk [vmem:[#allocation2 + $0x8] sm:$0xf] %vm1524, 0
          %1528 = vst.msk [vmem:[#allocation2 + $0xc] sm:$0xf] %vm1524, 0
          %1529 = vst.msk [vmem:[#allocation2 + $0xa0] sm:$0xf] %vm1524, 0
          %1530 = vst.msk [vmem:[#allocation2 + $0xa4] sm:$0xf] %vm1524, 0
          %1531 = vst.msk [vmem:[#allocation2 + $0xa8] sm:$0xf] %vm1524, 0
          %1532 = vst.msk [vmem:[#allocation2 + $0xac] sm:$0xf] %vm1524, 0
        $region44: #{prototypical_network_forward.1} parent=39 // pred_fallthru
          _
        %v1533 = vld [vmem:[%s221] sm:$0xff]
        %v1534 = vld [vmem:[%s221 + $0x8] sm:$0xff]
        %v1535 = vld [vmem:[%s221 + $0x10] sm:$0xff]
        %v1536 = vld [vmem:[%s221 + $0x18] sm:$0xff]
        %v1537 = vld [vmem:[%s221 + $0x20] sm:$0xff]
        %v1538 = vld [vmem:[%s221 + $0x28] sm:$0xff]
        %v1539 = vld [vmem:[%s221 + $0x30] sm:$0xff]
        %v1540 = vld [vmem:[%s221 + $0x38] sm:$0xff]
        %v1541 = vld [vmem:[%s221 + $0x40] sm:$0xff]
        %v1542 = vld [vmem:[%s221 + $0x48] sm:$0xff]
        %v1543 = vld [vmem:[%s221 + $0x50] sm:$0xff]
        %v1544 = vld [vmem:[%s221 + $0x58] sm:$0xff]
        %v1545 = vld [vmem:[%s221 + $0x60] sm:$0xff]
        %v1546 = vld [vmem:[%s221 + $0x68] sm:$0xff]
        %v1547 = vld [vmem:[%s221 + $0x70] sm:$0xff]
        %v1548 = vld [vmem:[%s221 + $0x78] sm:$0xff]
        %v1549 = vld [vmem:[%s221 + $0x80] sm:$0xff]
        %v1550 = vld [vmem:[%s221 + $0x88] sm:$0xff]
        %v1551 = vld [vmem:[%s221 + $0x90] sm:$0xff]
        %v1552 = vld [vmem:[%s221 + $0x98] sm:$0xff]
        %v1553 = vld [vmem:[%s221 + $0xa0] sm:$0xff]
        %v1554 = vld [vmem:[%s221 + $0xa8] sm:$0xff]
        %v1555 = vld [vmem:[%s221 + $0xb0] sm:$0xff]
        %v1556 = vld [vmem:[%s221 + $0xb8] sm:$0xff]
        %v1557 = vld [vmem:[%s221 + $0xc0] sm:$0xff]
        %v1558 = vld [vmem:[%s221 + $0xc8] sm:$0xff]
        %v1559 = vld [vmem:[%s221 + $0xd0] sm:$0xff]
        %v1560 = vld [vmem:[%s221 + $0xd8] sm:$0xff]
        %v1561 = vld [vmem:[%s221 + $0xe0] sm:$0xff]
        %v1562 = vld [vmem:[%s221 + $0xe8] sm:$0xff]
        %v1563 = vld [vmem:[%s221 + $0xf0] sm:$0xff]
        %v1564 = vld [vmem:[%s221 + $0xf8] sm:$0xff]
        %v1565 = vld [vmem:[%s221 + $0x100] sm:$0xff]
        %v1566 = vld [vmem:[%s221 + $0x108] sm:$0xff]
        %v1567 = vld [vmem:[%s221 + $0x110] sm:$0xff]
        %v1568 = vld [vmem:[%s221 + $0x118] sm:$0xff]
        %v1569 = vld [vmem:[%s221 + $0x120] sm:$0xff]
        %v1570 = vld [vmem:[%s221 + $0x128] sm:$0xff]
        %v1571 = vld [vmem:[%s221 + $0x130] sm:$0xff]
        %v1572 = vld [vmem:[%s221 + $0x138] sm:$0xff]
        %v1573 = vld [vmem:[%s221 + $0x140] sm:$0xff]
        %v1574 = vpack.c.bf16 %v1533, %v1533
        %v1575 = vpack.c.bf16 %v1534, %v1534
        %v1576 = vpack.c.bf16 %v1535, %v1535
        %v1577 = vpack.c.bf16 %v1536, %v1536
        %v1578 = vpack.c.bf16 %v1537, %v1537
        %v1579 = vpack.c.bf16 %v1538, %v1538
        %v1580 = vpack.c.bf16 %v1539, %v1539
        %v1581 = vpack.c.bf16 %v1540, %v1540
        %v1582 = vpack.c.bf16 %v1541, %v1541
        %v1583 = vpack.c.bf16 %v1542, %v1542
        %v1584 = vpack.c.bf16 %v1543, %v1543
        %v1585 = vpack.c.bf16 %v1544, %v1544
        %v1586 = vpack.c.bf16 %v1545, %v1545
        %v1587 = vpack.c.bf16 %v1546, %v1546
        %v1588 = vpack.c.bf16 %v1547, %v1547
        %v1589 = vpack.c.bf16 %v1548, %v1548
        %v1590 = vpack.c.bf16 %v1549, %v1549
        %v1591 = vpack.c.bf16 %v1550, %v1550
        %v1592 = vpack.c.bf16 %v1551, %v1551
        %v1593 = vpack.c.bf16 %v1552, %v1552
        %v1594 = vpack.c.bf16 %v1553, %v1553
        %v1595 = vpack.c.bf16 %v1554, %v1554
        %v1596 = vpack.c.bf16 %v1555, %v1555
        %v1597 = vpack.c.bf16 %v1556, %v1556
        %v1598 = vpack.c.bf16 %v1557, %v1557
        %v1599 = vpack.c.bf16 %v1558, %v1558
        %v1600 = vpack.c.bf16 %v1559, %v1559
        %v1601 = vpack.c.bf16 %v1560, %v1560
        %v1602 = vpack.c.bf16 %v1561, %v1561
        %v1603 = vpack.c.bf16 %v1562, %v1562
        %v1604 = vpack.c.bf16 %v1563, %v1563
        %v1605 = vpack.c.bf16 %v1564, %v1564
        %v1606 = vpack.c.bf16 %v1565, %v1565
        %v1607 = vpack.c.bf16 %v1566, %v1566
        %v1608 = vpack.c.bf16 %v1567, %v1567
        %v1609 = vpack.c.bf16 %v1568, %v1568
        %v1610 = vpack.c.bf16 %v1569, %v1569
        %v1611 = vpack.c.bf16 %v1570, %v1570
        %v1612 = vpack.c.bf16 %v1571, %v1571
        %v1613 = vpack.c.bf16 %v1572, %v1572
        %v1614 = vpack.c.bf16 %v1573, %v1573
        %v1651 = vunpack.c.l.b16 %v1574
        %v1652 = vunpack.c.l.b16 %v1575
        %v1653 = vunpack.c.l.b16 %v1576
        %v1654 = vunpack.c.l.b16 %v1577
        %v1655 = vunpack.c.l.b16 %v1578
        %v1656 = vunpack.c.l.b16 %v1579
        %v1657 = vunpack.c.l.b16 %v1580
        %v1658 = vunpack.c.l.b16 %v1581
        %v1659 = vunpack.c.l.b16 %v1582
        %v1660 = vunpack.c.l.b16 %v1583
        %v1661 = vunpack.c.l.b16 %v1584
        %v1662 = vunpack.c.l.b16 %v1585
        %v1663 = vunpack.c.l.b16 %v1586
        %v1664 = vunpack.c.l.b16 %v1587
        %v1665 = vunpack.c.l.b16 %v1588
        %v1666 = vunpack.c.l.b16 %v1589
        %v1667 = vunpack.c.l.b16 %v1590
        %v1668 = vunpack.c.l.b16 %v1591
        %v1669 = vunpack.c.l.b16 %v1592
        %v1670 = vunpack.c.l.b16 %v1593
        %v1671 = vunpack.c.l.b16 %v1594
        %v1672 = vunpack.c.l.b16 %v1595
        %v1673 = vunpack.c.l.b16 %v1596
        %v1674 = vunpack.c.l.b16 %v1597
        %v1675 = vunpack.c.l.b16 %v1598
        %v1676 = vunpack.c.l.b16 %v1599
        %v1677 = vunpack.c.l.b16 %v1600
        %v1678 = vunpack.c.l.b16 %v1601
        %v1679 = vunpack.c.l.b16 %v1602
        %v1680 = vunpack.c.l.b16 %v1603
        %v1681 = vunpack.c.l.b16 %v1604
        %v1682 = vunpack.c.l.b16 %v1605
        %v1683 = vunpack.c.l.b16 %v1606
        %v1684 = vunpack.c.l.b16 %v1607
        %v1685 = vunpack.c.l.b16 %v1608
        %v1686 = vunpack.c.l.b16 %v1609
        %v1687 = vpack.c.b16 %v1652, %v1651
        %v1688 = vpack.c.b16 %v1654, %v1653
        %v1689 = vpack.c.b16 %v1656, %v1655
        %v1690 = vpack.c.b16 %v1658, %v1657
        %v1691 = vpack.c.b16 %v1660, %v1659
        %v1692 = vpack.c.b16 %v1662, %v1661
        %v1693 = vpack.c.b16 %v1664, %v1663
        %v1694 = vpack.c.b16 %v1666, %v1665
        %v1695 = vpack.c.b16 %v1668, %v1667
        %v1696 = vpack.c.b16 %v1670, %v1669
        %v1697 = vpack.c.b16 %v1672, %v1671
        %v1698 = vpack.c.b16 %v1674, %v1673
        %v1699 = vpack.c.b16 %v1676, %v1675
        %v1700 = vpack.c.b16 %v1678, %v1677
        %v1701 = vpack.c.b16 %v1680, %v1679
        %v1702 = vpack.c.b16 %v1682, %v1681
        %v1703 = vpack.c.b16 %v1684, %v1683
        %v1704 = vpack.c.b16 %v1686, %v1685
        %v1706 = vunpack.c.l.b16 %v1610
        %v1707 = vpack.c.b16 %v1706, %v1706
        %vm1708 = vsmask.f32 7424
        %v1710 = vshrl.u32 %v1687, 16
        %v1712 = vshll.u32 %v1687, 16
        %v1714 = vrot.slane %v1712, 1
        %v1715 = vor.u32 %v1710, %v1714
        %v1717 = vshll.u32 %v1688, 16
        %v1719 = vrot.slane %v1717, 1
        %v1720 = vsel %vm1708, %v1715, %v1719
        %v1721 = vshrl.u32 %v1688, 16
        %v1723 = vor.u32 %v1721, %v1719
        %v1725 = vshll.u32 %v1689, 16
        %v1727 = vrot.slane %v1725, 1
        %v1728 = vsel %vm1708, %v1723, %v1727
        %v1729 = vshrl.u32 %v1689, 16
        %v1731 = vor.u32 %v1729, %v1727
        %v1733 = vshll.u32 %v1690, 16
        %v1735 = vrot.slane %v1733, 1
        %v1736 = vsel %vm1708, %v1731, %v1735
        %v1737 = vshrl.u32 %v1690, 16
        %v1739 = vor.u32 %v1737, %v1735
        %v1741 = vshll.u32 %v1691, 16
        %v1743 = vrot.slane %v1741, 1
        %v1744 = vsel %vm1708, %v1739, %v1743
        %v1745 = vshrl.u32 %v1691, 16
        %v1747 = vor.u32 %v1745, %v1743
        %v1749 = vshll.u32 %v1692, 16
        %v1751 = vrot.slane %v1749, 1
        %v1752 = vsel %vm1708, %v1747, %v1751
        %v1753 = vshrl.u32 %v1692, 16
        %v1755 = vor.u32 %v1753, %v1751
        %v1757 = vshll.u32 %v1693, 16
        %v1759 = vrot.slane %v1757, 1
        %v1760 = vsel %vm1708, %v1755, %v1759
        %v1761 = vshrl.u32 %v1693, 16
        %v1763 = vor.u32 %v1761, %v1759
        %v1765 = vshll.u32 %v1694, 16
        %v1767 = vrot.slane %v1765, 1
        %v1768 = vsel %vm1708, %v1763, %v1767
        %v1769 = vshrl.u32 %v1694, 16
        %v1771 = vor.u32 %v1769, %v1767
        %v1773 = vshll.u32 %v1695, 16
        %v1775 = vrot.slane %v1773, 1
        %v1776 = vsel %vm1708, %v1771, %v1775
        %v1777 = vshrl.u32 %v1695, 16
        %v1779 = vor.u32 %v1777, %v1775
        %v1781 = vshll.u32 %v1696, 16
        %v1783 = vrot.slane %v1781, 1
        %v1784 = vsel %vm1708, %v1779, %v1783
        %v1785 = vshrl.u32 %v1696, 16
        %v1787 = vor.u32 %v1785, %v1783
        %v1789 = vshll.u32 %v1697, 16
        %v1791 = vrot.slane %v1789, 1
        %v1792 = vsel %vm1708, %v1787, %v1791
        %v1793 = vshrl.u32 %v1697, 16
        %v1795 = vor.u32 %v1793, %v1791
        %v1797 = vshll.u32 %v1698, 16
        %v1799 = vrot.slane %v1797, 1
        %v1800 = vsel %vm1708, %v1795, %v1799
        %v1801 = vshrl.u32 %v1698, 16
        %v1803 = vor.u32 %v1801, %v1799
        %v1805 = vshll.u32 %v1699, 16
        %v1807 = vrot.slane %v1805, 1
        %v1808 = vsel %vm1708, %v1803, %v1807
        %v1809 = vshrl.u32 %v1699, 16
        %v1811 = vor.u32 %v1809, %v1807
        %v1813 = vshll.u32 %v1700, 16
        %v1815 = vrot.slane %v1813, 1
        %v1816 = vsel %vm1708, %v1811, %v1815
        %v1817 = vshrl.u32 %v1700, 16
        %v1819 = vor.u32 %v1817, %v1815
        %v1821 = vshll.u32 %v1701, 16
        %v1823 = vrot.slane %v1821, 1
        %v1824 = vsel %vm1708, %v1819, %v1823
        %v1825 = vshrl.u32 %v1701, 16
        %v1827 = vor.u32 %v1825, %v1823
        %v1829 = vshll.u32 %v1702, 16
        %v1831 = vrot.slane %v1829, 1
        %v1832 = vsel %vm1708, %v1827, %v1831
        %v1833 = vshrl.u32 %v1702, 16
        %v1835 = vor.u32 %v1833, %v1831
        %v1837 = vshll.u32 %v1703, 16
        %v1839 = vrot.slane %v1837, 1
        %v1840 = vsel %vm1708, %v1835, %v1839
        %v1841 = vshrl.u32 %v1703, 16
        %v1843 = vor.u32 %v1841, %v1839
        %v1845 = vshll.u32 %v1704, 16
        %v1847 = vrot.slane %v1845, 1
        %v1848 = vsel %vm1708, %v1843, %v1847
        %v1849 = vshrl.u32 %v1704, 16
        %v1851 = vor.u32 %v1849, %v1847
        %v1853 = vshll.u32 %v1707, 16
        %v1855 = vrot.slane %v1853, 1
        %v1856 = vsel %vm1708, %v1851, %v1855
        %1857 = vrot.lane.b32.xlu0 %v1720, 8
        %v1858 = vpop.permute.xlu0 %1857
        %1859 = vrot.lane.b32.xlu0 %v1728, 8
        %v1860 = vpop.permute.xlu0 %1859
        %1861 = vrot.lane.b32.xlu0 %v1736, 8
        %v1862 = vpop.permute.xlu0 %1861
        %1863 = vrot.lane.b32.xlu0 %v1744, 8
        %v1864 = vpop.permute.xlu0 %1863
        %1865 = vrot.lane.b32.xlu0 %v1752, 8
        %v1866 = vpop.permute.xlu0 %1865
        %1867 = vrot.lane.b32.xlu0 %v1760, 8
        %v1868 = vpop.permute.xlu0 %1867
        %1869 = vrot.lane.b32.xlu0 %v1768, 8
        %v1870 = vpop.permute.xlu0 %1869
        %1871 = vrot.lane.b32.xlu0 %v1776, 8
        %v1872 = vpop.permute.xlu0 %1871
        %1873 = vrot.lane.b32.xlu0 %v1784, 8
        %v1874 = vpop.permute.xlu0 %1873
        %1875 = vrot.lane.b32.xlu0 %v1792, 8
        %v1876 = vpop.permute.xlu0 %1875
        %1877 = vrot.lane.b32.xlu0 %v1800, 8
        %v1878 = vpop.permute.xlu0 %1877
        %1879 = vrot.lane.b32.xlu0 %v1808, 8
        %v1880 = vpop.permute.xlu0 %1879
        %1881 = vrot.lane.b32.xlu0 %v1816, 8
        %v1882 = vpop.permute.xlu0 %1881
        %1883 = vrot.lane.b32.xlu0 %v1824, 8
        %v1884 = vpop.permute.xlu0 %1883
        %1885 = vrot.lane.b32.xlu0 %v1832, 8
        %v1886 = vpop.permute.xlu0 %1885
        %1887 = vrot.lane.b32.xlu0 %v1840, 8
        %v1888 = vpop.permute.xlu0 %1887
        %1889 = vrot.lane.b32.xlu0 %v1848, 8
        %v1890 = vpop.permute.xlu0 %1889
        %1891 = vrot.lane.b32.xlu0 %v1856, 8
        %v1892 = vpop.permute.xlu0 %1891
        %vm1893 = vcmask 1046528
        %v1894 = vrot.slane %v1687, 1
        %v1895 = vrot.slane %v1688, 1
        %v1896 = vsel %vm1893, %v1894, %v1895
        %v1897 = vrot.slane %v1689, 1
        %v1898 = vsel %vm1893, %v1895, %v1897
        %v1899 = vrot.slane %v1690, 1
        %v1900 = vsel %vm1893, %v1897, %v1899
        %v1901 = vrot.slane %v1691, 1
        %v1902 = vsel %vm1893, %v1899, %v1901
        %v1903 = vrot.slane %v1692, 1
        %v1904 = vsel %vm1893, %v1901, %v1903
        %v1905 = vrot.slane %v1693, 1
        %v1906 = vsel %vm1893, %v1903, %v1905
        %v1907 = vrot.slane %v1694, 1
        %v1908 = vsel %vm1893, %v1905, %v1907
        %v1909 = vrot.slane %v1695, 1
        %v1910 = vsel %vm1893, %v1907, %v1909
        %v1911 = vrot.slane %v1696, 1
        %v1912 = vsel %vm1893, %v1909, %v1911
        %v1913 = vrot.slane %v1697, 1
        %v1914 = vsel %vm1893, %v1911, %v1913
        %v1915 = vrot.slane %v1698, 1
        %v1916 = vsel %vm1893, %v1913, %v1915
        %v1917 = vrot.slane %v1699, 1
        %v1918 = vsel %vm1893, %v1915, %v1917
        %v1919 = vrot.slane %v1700, 1
        %v1920 = vsel %vm1893, %v1917, %v1919
        %v1921 = vrot.slane %v1701, 1
        %v1922 = vsel %vm1893, %v1919, %v1921
        %v1923 = vrot.slane %v1702, 1
        %v1924 = vsel %vm1893, %v1921, %v1923
        %v1925 = vrot.slane %v1703, 1
        %v1926 = vsel %vm1893, %v1923, %v1925
        %v1927 = vrot.slane %v1704, 1
        %v1928 = vsel %vm1893, %v1925, %v1927
        %v1929 = vrot.slane %v1707, 1
        %v1930 = vsel %vm1893, %v1927, %v1929
        %1931 = vrot.lane.b32.xlu0 %v1896, 16
        %v1932 = vpop.permute.xlu0 %1931
        %1933 = vrot.lane.b32.xlu0 %v1898, 16
        %v1934 = vpop.permute.xlu0 %1933
        %1935 = vrot.lane.b32.xlu0 %v1900, 16
        %v1936 = vpop.permute.xlu0 %1935
        %1937 = vrot.lane.b32.xlu0 %v1902, 16
        %v1938 = vpop.permute.xlu0 %1937
        %1939 = vrot.lane.b32.xlu0 %v1904, 16
        %v1940 = vpop.permute.xlu0 %1939
        %1941 = vrot.lane.b32.xlu0 %v1906, 16
        %v1942 = vpop.permute.xlu0 %1941
        %1943 = vrot.lane.b32.xlu0 %v1908, 16
        %v1944 = vpop.permute.xlu0 %1943
        %1945 = vrot.lane.b32.xlu0 %v1910, 16
        %v1946 = vpop.permute.xlu0 %1945
        %1947 = vrot.lane.b32.xlu0 %v1912, 16
        %v1948 = vpop.permute.xlu0 %1947
        %1949 = vrot.lane.b32.xlu0 %v1914, 16
        %v1950 = vpop.permute.xlu0 %1949
        %1951 = vrot.lane.b32.xlu0 %v1916, 16
        %v1952 = vpop.permute.xlu0 %1951
        %1953 = vrot.lane.b32.xlu0 %v1918, 16
        %v1954 = vpop.permute.xlu0 %1953
        %1955 = vrot.lane.b32.xlu0 %v1920, 16
        %v1956 = vpop.permute.xlu0 %1955
        %1957 = vrot.lane.b32.xlu0 %v1922, 16
        %v1958 = vpop.permute.xlu0 %1957
        %1959 = vrot.lane.b32.xlu0 %v1924, 16
        %v1960 = vpop.permute.xlu0 %1959
        %1961 = vrot.lane.b32.xlu0 %v1926, 16
        %v1962 = vpop.permute.xlu0 %1961
        %1963 = vrot.lane.b32.xlu0 %v1928, 16
        %v1964 = vpop.permute.xlu0 %1963
        %1965 = vrot.lane.b32.xlu0 %v1930, 16
        %v1966 = vpop.permute.xlu0 %1965
        %v1969 = vunpack.c.l.b16 %v1611
        %v1970 = vunpack.c.l.b16 %v1612
        %v1971 = vpack.c.b16 %v1969, %v1706
        %v1972 = vpack.c.b16 %v1970, %v1970
        %v1973 = vrot.slane %v1971, 1
        %v1974 = vsel %vm1893, %v1927, %v1973
        %v1975 = vrot.slane %v1972, 1
        %v1976 = vsel %vm1893, %v1973, %v1975
        %1977 = vrot.lane.b32.xlu0 %v1898, 24
        %v1978 = vpop.permute.xlu0 %1977
        %1979 = vrot.lane.b32.xlu0 %v1900, 24
        %v1980 = vpop.permute.xlu0 %1979
        %1981 = vrot.lane.b32.xlu0 %v1902, 24
        %v1982 = vpop.permute.xlu0 %1981
        %1983 = vrot.lane.b32.xlu0 %v1904, 24
        %v1984 = vpop.permute.xlu0 %1983
        %1985 = vrot.lane.b32.xlu0 %v1906, 24
        %v1986 = vpop.permute.xlu0 %1985
        %1987 = vrot.lane.b32.xlu0 %v1908, 24
        %v1988 = vpop.permute.xlu0 %1987
        %1989 = vrot.lane.b32.xlu0 %v1910, 24
        %v1990 = vpop.permute.xlu0 %1989
        %1991 = vrot.lane.b32.xlu0 %v1912, 24
        %v1992 = vpop.permute.xlu0 %1991
        %1993 = vrot.lane.b32.xlu0 %v1914, 24
        %v1994 = vpop.permute.xlu0 %1993
        %1995 = vrot.lane.b32.xlu0 %v1916, 24
        %v1996 = vpop.permute.xlu0 %1995
        %1997 = vrot.lane.b32.xlu0 %v1918, 24
        %v1998 = vpop.permute.xlu0 %1997
        %1999 = vrot.lane.b32.xlu0 %v1920, 24
        %v2000 = vpop.permute.xlu0 %1999
        %2001 = vrot.lane.b32.xlu0 %v1922, 24
        %v2002 = vpop.permute.xlu0 %2001
        %2003 = vrot.lane.b32.xlu0 %v1924, 24
        %v2004 = vpop.permute.xlu0 %2003
        %2005 = vrot.lane.b32.xlu0 %v1926, 24
        %v2006 = vpop.permute.xlu0 %2005
        %2007 = vrot.lane.b32.xlu0 %v1928, 24
        %v2008 = vpop.permute.xlu0 %2007
        %2009 = vrot.lane.b32.xlu0 %v1974, 24
        %v2010 = vpop.permute.xlu0 %2009
        %2011 = vrot.lane.b32.xlu0 %v1976, 24
        %v2012 = vpop.permute.xlu0 %2011
        %vm2013 = vsmask.f32 6400
        %v2014 = vrot.slane %v1721, 1
        %v2015 = vrot.slane %v1717, 2
        %v2016 = vor.u32 %v2014, %v2015
        %v2017 = vrot.slane %v1729, 1
        %v2018 = vrot.slane %v1725, 2
        %v2019 = vor.u32 %v2017, %v2018
        %v2020 = vsel %vm2013, %v2016, %v2019
        %v2021 = vrot.slane %v1737, 1
        %v2022 = vrot.slane %v1733, 2
        %v2023 = vor.u32 %v2021, %v2022
        %v2024 = vsel %vm2013, %v2019, %v2023
        %v2025 = vrot.slane %v1745, 1
        %v2026 = vrot.slane %v1741, 2
        %v2027 = vor.u32 %v2025, %v2026
        %v2028 = vsel %vm2013, %v2023, %v2027
        %v2029 = vrot.slane %v1753, 1
        %v2030 = vrot.slane %v1749, 2
        %v2031 = vor.u32 %v2029, %v2030
        %v2032 = vsel %vm2013, %v2027, %v2031
        %v2033 = vrot.slane %v1761, 1
        %v2034 = vrot.slane %v1757, 2
        %v2035 = vor.u32 %v2033, %v2034
        %v2036 = vsel %vm2013, %v2031, %v2035
        %v2037 = vrot.slane %v1769, 1
        %v2038 = vrot.slane %v1765, 2
        %v2039 = vor.u32 %v2037, %v2038
        %v2040 = vsel %vm2013, %v2035, %v2039
        %v2041 = vrot.slane %v1777, 1
        %v2042 = vrot.slane %v1773, 2
        %v2043 = vor.u32 %v2041, %v2042
        %v2044 = vsel %vm2013, %v2039, %v2043
        %v2045 = vrot.slane %v1785, 1
        %v2046 = vrot.slane %v1781, 2
        %v2047 = vor.u32 %v2045, %v2046
        %v2048 = vsel %vm2013, %v2043, %v2047
        %v2049 = vrot.slane %v1793, 1
        %v2050 = vrot.slane %v1789, 2
        %v2051 = vor.u32 %v2049, %v2050
        %v2052 = vsel %vm2013, %v2047, %v2051
        %v2053 = vrot.slane %v1801, 1
        %v2054 = vrot.slane %v1797, 2
        %v2055 = vor.u32 %v2053, %v2054
        %v2056 = vsel %vm2013, %v2051, %v2055
        %v2057 = vrot.slane %v1809, 1
        %v2058 = vrot.slane %v1805, 2
        %v2059 = vor.u32 %v2057, %v2058
        %v2060 = vsel %vm2013, %v2055, %v2059
        %v2061 = vrot.slane %v1817, 1
        %v2062 = vrot.slane %v1813, 2
        %v2063 = vor.u32 %v2061, %v2062
        %v2064 = vsel %vm2013, %v2059, %v2063
        %v2065 = vrot.slane %v1825, 1
        %v2066 = vrot.slane %v1821, 2
        %v2067 = vor.u32 %v2065, %v2066
        %v2068 = vsel %vm2013, %v2063, %v2067
        %v2069 = vrot.slane %v1833, 1
        %v2070 = vrot.slane %v1829, 2
        %v2071 = vor.u32 %v2069, %v2070
        %v2072 = vsel %vm2013, %v2067, %v2071
        %v2073 = vrot.slane %v1841, 1
        %v2074 = vrot.slane %v1837, 2
        %v2075 = vor.u32 %v2073, %v2074
        %v2076 = vsel %vm2013, %v2071, %v2075
        %v2077 = vrot.slane %v1849, 1
        %v2078 = vrot.slane %v1845, 2
        %v2079 = vor.u32 %v2077, %v2078
        %v2080 = vsel %vm2013, %v2075, %v2079
        %v2082 = vshrl.u32 %v1971, 16
        %v2084 = vrot.slane %v2082, 1
        %v2085 = vshll.u32 %v1971, 16
        %v2087 = vrot.slane %v2085, 2
        %v2088 = vor.u32 %v2084, %v2087
        %v2089 = vsel %vm2013, %v2079, %v2088
        %v2091 = vshrl.u32 %v1972, 16
        %v2093 = vrot.slane %v2091, 1
        %v2094 = vshll.u32 %v1972, 16
        %v2096 = vrot.slane %v2094, 2
        %v2097 = vor.u32 %v2093, %v2096
        %v2098 = vsel %vm2013, %v2088, %v2097
        %2099 = vrot.lane.b32.xlu0 %v2020, 32
        %v2100 = vpop.permute.xlu0 %2099
        %2101 = vrot.lane.b32.xlu0 %v2024, 32
        %v2102 = vpop.permute.xlu0 %2101
        %2103 = vrot.lane.b32.xlu0 %v2028, 32
        %v2104 = vpop.permute.xlu0 %2103
        %2105 = vrot.lane.b32.xlu0 %v2032, 32
        %v2106 = vpop.permute.xlu0 %2105
        %2107 = vrot.lane.b32.xlu0 %v2036, 32
        %v2108 = vpop.permute.xlu0 %2107
        %2109 = vrot.lane.b32.xlu0 %v2040, 32
        %v2110 = vpop.permute.xlu0 %2109
        %2111 = vrot.lane.b32.xlu0 %v2044, 32
        %v2112 = vpop.permute.xlu0 %2111
        %2113 = vrot.lane.b32.xlu0 %v2048, 32
        %v2114 = vpop.permute.xlu0 %2113
        %2115 = vrot.lane.b32.xlu0 %v2052, 32
        %v2116 = vpop.permute.xlu0 %2115
        %2117 = vrot.lane.b32.xlu0 %v2056, 32
        %v2118 = vpop.permute.xlu0 %2117
        %2119 = vrot.lane.b32.xlu0 %v2060, 32
        %v2120 = vpop.permute.xlu0 %2119
        %2121 = vrot.lane.b32.xlu0 %v2064, 32
        %v2122 = vpop.permute.xlu0 %2121
        %2123 = vrot.lane.b32.xlu0 %v2068, 32
        %v2124 = vpop.permute.xlu0 %2123
        %2125 = vrot.lane.b32.xlu0 %v2072, 32
        %v2126 = vpop.permute.xlu0 %2125
        %2127 = vrot.lane.b32.xlu0 %v2076, 32
        %v2128 = vpop.permute.xlu0 %2127
        %2129 = vrot.lane.b32.xlu0 %v2080, 32
        %v2130 = vpop.permute.xlu0 %2129
        %2131 = vrot.lane.b32.xlu0 %v2089, 32
        %v2132 = vpop.permute.xlu0 %2131
        %2133 = vrot.lane.b32.xlu0 %v2098, 32
        %v2134 = vpop.permute.xlu0 %2133
        %vm2135 = vcmask 1045504
        %v2136 = vrot.slane %v1688, 2
        %v2137 = vrot.slane %v1689, 2
        %v2138 = vsel %vm2135, %v2136, %v2137
        %v2139 = vrot.slane %v1690, 2
        %v2140 = vsel %vm2135, %v2137, %v2139
        %v2141 = vrot.slane %v1691, 2
        %v2142 = vsel %vm2135, %v2139, %v2141
        %v2143 = vrot.slane %v1692, 2
        %v2144 = vsel %vm2135, %v2141, %v2143
        %v2145 = vrot.slane %v1693, 2
        %v2146 = vsel %vm2135, %v2143, %v2145
        %v2147 = vrot.slane %v1694, 2
        %v2148 = vsel %vm2135, %v2145, %v2147
        %v2149 = vrot.slane %v1695, 2
        %v2150 = vsel %vm2135, %v2147, %v2149
        %v2151 = vrot.slane %v1696, 2
        %v2152 = vsel %vm2135, %v2149, %v2151
        %v2153 = vrot.slane %v1697, 2
        %v2154 = vsel %vm2135, %v2151, %v2153
        %v2155 = vrot.slane %v1698, 2
        %v2156 = vsel %vm2135, %v2153, %v2155
        %v2157 = vrot.slane %v1699, 2
        %v2158 = vsel %vm2135, %v2155, %v2157
        %v2159 = vrot.slane %v1700, 2
        %v2160 = vsel %vm2135, %v2157, %v2159
        %v2161 = vrot.slane %v1701, 2
        %v2162 = vsel %vm2135, %v2159, %v2161
        %v2163 = vrot.slane %v1702, 2
        %v2164 = vsel %vm2135, %v2161, %v2163
        %v2165 = vrot.slane %v1703, 2
        %v2166 = vsel %vm2135, %v2163, %v2165
        %v2167 = vrot.slane %v1704, 2
        %v2168 = vsel %vm2135, %v2165, %v2167
        %v2169 = vrot.slane %v1971, 2
        %v2170 = vsel %vm2135, %v2167, %v2169
        %v2171 = vrot.slane %v1972, 2
        %v2172 = vsel %vm2135, %v2169, %v2171
        %2173 = vrot.lane.b32.xlu0 %v2138, 40
        %v2174 = vpop.permute.xlu0 %2173
        %2175 = vrot.lane.b32.xlu0 %v2140, 40
        %v2176 = vpop.permute.xlu0 %2175
        %2177 = vrot.lane.b32.xlu0 %v2142, 40
        %v2178 = vpop.permute.xlu0 %2177
        %2179 = vrot.lane.b32.xlu0 %v2144, 40
        %v2180 = vpop.permute.xlu0 %2179
        %2181 = vrot.lane.b32.xlu0 %v2146, 40
        %v2182 = vpop.permute.xlu0 %2181
        %2183 = vrot.lane.b32.xlu0 %v2148, 40
        %v2184 = vpop.permute.xlu0 %2183
        %2185 = vrot.lane.b32.xlu0 %v2150, 40
        %v2186 = vpop.permute.xlu0 %2185
        %2187 = vrot.lane.b32.xlu0 %v2152, 40
        %v2188 = vpop.permute.xlu0 %2187
        %2189 = vrot.lane.b32.xlu0 %v2154, 40
        %v2190 = vpop.permute.xlu0 %2189
        %2191 = vrot.lane.b32.xlu0 %v2156, 40
        %v2192 = vpop.permute.xlu0 %2191
        %2193 = vrot.lane.b32.xlu0 %v2158, 40
        %v2194 = vpop.permute.xlu0 %2193
        %2195 = vrot.lane.b32.xlu0 %v2160, 40
        %v2196 = vpop.permute.xlu0 %2195
        %2197 = vrot.lane.b32.xlu0 %v2162, 40
        %v2198 = vpop.permute.xlu0 %2197
        %2199 = vrot.lane.b32.xlu0 %v2164, 40
        %v2200 = vpop.permute.xlu0 %2199
        %2201 = vrot.lane.b32.xlu0 %v2166, 40
        %v2202 = vpop.permute.xlu0 %2201
        %2203 = vrot.lane.b32.xlu0 %v2168, 40
        %v2204 = vpop.permute.xlu0 %2203
        %2205 = vrot.lane.b32.xlu0 %v2170, 40
        %v2206 = vpop.permute.xlu0 %2205
        %2207 = vrot.lane.b32.xlu0 %v2172, 40
        %v2208 = vpop.permute.xlu0 %2207
        %v2211 = vunpack.c.l.b16 %v1613
        %v2212 = vunpack.c.l.b16 %v1614
        %v2213 = vpack.c.b16 %v2211, %v1970
        %v2214 = vpack.c.b16 %v2212, %v2212
        %v2215 = vrot.slane %v2213, 2
        %v2216 = vsel %vm2135, %v2169, %v2215
        %v2217 = vrot.slane %v2214, 2
        %v2218 = vsel %vm2135, %v2215, %v2217
        %2219 = vrot.lane.b32.xlu0 %v2140, 48
        %v2220 = vpop.permute.xlu0 %2219
        %2221 = vrot.lane.b32.xlu0 %v2142, 48
        %v2222 = vpop.permute.xlu0 %2221
        %2223 = vrot.lane.b32.xlu0 %v2144, 48
        %v2224 = vpop.permute.xlu0 %2223
        %2225 = vrot.lane.b32.xlu0 %v2146, 48
        %v2226 = vpop.permute.xlu0 %2225
        %2227 = vrot.lane.b32.xlu0 %v2148, 48
        %v2228 = vpop.permute.xlu0 %2227
        %2229 = vrot.lane.b32.xlu0 %v2150, 48
        %v2230 = vpop.permute.xlu0 %2229
        %2231 = vrot.lane.b32.xlu0 %v2152, 48
        %v2232 = vpop.permute.xlu0 %2231
        %2233 = vrot.lane.b32.xlu0 %v2154, 48
        %v2234 = vpop.permute.xlu0 %2233
        %2235 = vrot.lane.b32.xlu0 %v2156, 48
        %v2236 = vpop.permute.xlu0 %2235
        %2237 = vrot.lane.b32.xlu0 %v2158, 48
        %v2238 = vpop.permute.xlu0 %2237
        %2239 = vrot.lane.b32.xlu0 %v2160, 48
        %v2240 = vpop.permute.xlu0 %2239
        %2241 = vrot.lane.b32.xlu0 %v2162, 48
        %v2242 = vpop.permute.xlu0 %2241
        %2243 = vrot.lane.b32.xlu0 %v2164, 48
        %v2244 = vpop.permute.xlu0 %2243
        %2245 = vrot.lane.b32.xlu0 %v2166, 48
        %v2246 = vpop.permute.xlu0 %2245
        %2247 = vrot.lane.b32.xlu0 %v2168, 48
        %v2248 = vpop.permute.xlu0 %2247
        %2249 = vrot.lane.b32.xlu0 %v2170, 48
        %v2250 = vpop.permute.xlu0 %2249
        %2251 = vrot.lane.b32.xlu0 %v2216, 48
        %v2252 = vpop.permute.xlu0 %2251
        %2253 = vrot.lane.b32.xlu0 %v2218, 48
        %v2254 = vpop.permute.xlu0 %2253
        %vm2255 = vsmask.f32 5376
        %v2256 = vrot.slane %v1729, 2
        %v2257 = vrot.slane %v1725, 3
        %v2258 = vor.u32 %v2256, %v2257
        %v2259 = vrot.slane %v1737, 2
        %v2260 = vrot.slane %v1733, 3
        %v2261 = vor.u32 %v2259, %v2260
        %v2262 = vsel %vm2255, %v2258, %v2261
        %v2263 = vrot.slane %v1745, 2
        %v2264 = vrot.slane %v1741, 3
        %v2265 = vor.u32 %v2263, %v2264
        %v2266 = vsel %vm2255, %v2261, %v2265
        %v2267 = vrot.slane %v1753, 2
        %v2268 = vrot.slane %v1749, 3
        %v2269 = vor.u32 %v2267, %v2268
        %v2270 = vsel %vm2255, %v2265, %v2269
        %v2271 = vrot.slane %v1761, 2
        %v2272 = vrot.slane %v1757, 3
        %v2273 = vor.u32 %v2271, %v2272
        %v2274 = vsel %vm2255, %v2269, %v2273
        %v2275 = vrot.slane %v1769, 2
        %v2276 = vrot.slane %v1765, 3
        %v2277 = vor.u32 %v2275, %v2276
        %v2278 = vsel %vm2255, %v2273, %v2277
        %v2279 = vrot.slane %v1777, 2
        %v2280 = vrot.slane %v1773, 3
        %v2281 = vor.u32 %v2279, %v2280
        %v2282 = vsel %vm2255, %v2277, %v2281
        %v2283 = vrot.slane %v1785, 2
        %v2284 = vrot.slane %v1781, 3
        %v2285 = vor.u32 %v2283, %v2284
        %v2286 = vsel %vm2255, %v2281, %v2285
        %v2287 = vrot.slane %v1793, 2
        %v2288 = vrot.slane %v1789, 3
        %v2289 = vor.u32 %v2287, %v2288
        %v2290 = vsel %vm2255, %v2285, %v2289
        %v2291 = vrot.slane %v1801, 2
        %v2292 = vrot.slane %v1797, 3
        %v2293 = vor.u32 %v2291, %v2292
        %v2294 = vsel %vm2255, %v2289, %v2293
        %v2295 = vrot.slane %v1809, 2
        %v2296 = vrot.slane %v1805, 3
        %v2297 = vor.u32 %v2295, %v2296
        %v2298 = vsel %vm2255, %v2293, %v2297
        %v2299 = vrot.slane %v1817, 2
        %v2300 = vrot.slane %v1813, 3
        %v2301 = vor.u32 %v2299, %v2300
        %v2302 = vsel %vm2255, %v2297, %v2301
        %v2303 = vrot.slane %v1825, 2
        %v2304 = vrot.slane %v1821, 3
        %v2305 = vor.u32 %v2303, %v2304
        %v2306 = vsel %vm2255, %v2301, %v2305
        %v2307 = vrot.slane %v1833, 2
        %v2308 = vrot.slane %v1829, 3
        %v2309 = vor.u32 %v2307, %v2308
        %v2310 = vsel %vm2255, %v2305, %v2309
        %v2311 = vrot.slane %v1841, 2
        %v2312 = vrot.slane %v1837, 3
        %v2313 = vor.u32 %v2311, %v2312
        %v2314 = vsel %vm2255, %v2309, %v2313
        %v2315 = vrot.slane %v1849, 2
        %v2316 = vrot.slane %v1845, 3
        %v2317 = vor.u32 %v2315, %v2316
        %v2318 = vsel %vm2255, %v2313, %v2317
        %v2319 = vrot.slane %v2082, 2
        %v2320 = vrot.slane %v2085, 3
        %v2321 = vor.u32 %v2319, %v2320
        %v2322 = vsel %vm2255, %v2317, %v2321
        %v2324 = vshrl.u32 %v2213, 16
        %v2326 = vrot.slane %v2324, 2
        %v2327 = vshll.u32 %v2213, 16
        %v2329 = vrot.slane %v2327, 3
        %v2330 = vor.u32 %v2326, %v2329
        %v2331 = vsel %vm2255, %v2321, %v2330
        %v2333 = vshrl.u32 %v2214, 16
        %v2335 = vrot.slane %v2333, 2
        %v2336 = vshll.u32 %v2214, 16
        %v2338 = vrot.slane %v2336, 3
        %v2339 = vor.u32 %v2335, %v2338
        %v2340 = vsel %vm2255, %v2330, %v2339
        %2341 = vrot.lane.b32.xlu0 %v2262, 56
        %v2342 = vpop.permute.xlu0 %2341
        %2343 = vrot.lane.b32.xlu0 %v2266, 56
        %v2344 = vpop.permute.xlu0 %2343
        %2345 = vrot.lane.b32.xlu0 %v2270, 56
        %v2346 = vpop.permute.xlu0 %2345
        %2347 = vrot.lane.b32.xlu0 %v2274, 56
        %v2348 = vpop.permute.xlu0 %2347
        %2349 = vrot.lane.b32.xlu0 %v2278, 56
        %v2350 = vpop.permute.xlu0 %2349
        %2351 = vrot.lane.b32.xlu0 %v2282, 56
        %v2352 = vpop.permute.xlu0 %2351
        %2353 = vrot.lane.b32.xlu0 %v2286, 56
        %v2354 = vpop.permute.xlu0 %2353
        %2355 = vrot.lane.b32.xlu0 %v2290, 56
        %v2356 = vpop.permute.xlu0 %2355
        %2357 = vrot.lane.b32.xlu0 %v2294, 56
        %v2358 = vpop.permute.xlu0 %2357
        %2359 = vrot.lane.b32.xlu0 %v2298, 56
        %v2360 = vpop.permute.xlu0 %2359
        %2361 = vrot.lane.b32.xlu0 %v2302, 56
        %v2362 = vpop.permute.xlu0 %2361
        %2363 = vrot.lane.b32.xlu0 %v2306, 56
        %v2364 = vpop.permute.xlu0 %2363
        %2365 = vrot.lane.b32.xlu0 %v2310, 56
        %v2366 = vpop.permute.xlu0 %2365
        %2367 = vrot.lane.b32.xlu0 %v2314, 56
        %v2368 = vpop.permute.xlu0 %2367
        %2369 = vrot.lane.b32.xlu0 %v2318, 56
        %v2370 = vpop.permute.xlu0 %2369
        %2371 = vrot.lane.b32.xlu0 %v2322, 56
        %v2372 = vpop.permute.xlu0 %2371
        %2373 = vrot.lane.b32.xlu0 %v2331, 56
        %v2374 = vpop.permute.xlu0 %2373
        %2375 = vrot.lane.b32.xlu0 %v2340, 56
        %v2376 = vpop.permute.xlu0 %2375
        %vm2377 = vcmask 1044480
        %v2378 = vrot.slane %v1689, 3
        %v2379 = vrot.slane %v1690, 3
        %v2380 = vsel %vm2377, %v2378, %v2379
        %v2381 = vrot.slane %v1691, 3
        %v2382 = vsel %vm2377, %v2379, %v2381
        %v2383 = vrot.slane %v1692, 3
        %v2384 = vsel %vm2377, %v2381, %v2383
        %v2385 = vrot.slane %v1693, 3
        %v2386 = vsel %vm2377, %v2383, %v2385
        %v2387 = vrot.slane %v1694, 3
        %v2388 = vsel %vm2377, %v2385, %v2387
        %v2389 = vrot.slane %v1695, 3
        %v2390 = vsel %vm2377, %v2387, %v2389
        %v2391 = vrot.slane %v1696, 3
        %v2392 = vsel %vm2377, %v2389, %v2391
        %v2393 = vrot.slane %v1697, 3
        %v2394 = vsel %vm2377, %v2391, %v2393
        %v2395 = vrot.slane %v1698, 3
        %v2396 = vsel %vm2377, %v2393, %v2395
        %v2397 = vrot.slane %v1699, 3
        %v2398 = vsel %vm2377, %v2395, %v2397
        %v2399 = vrot.slane %v1700, 3
        %v2400 = vsel %vm2377, %v2397, %v2399
        %v2401 = vrot.slane %v1701, 3
        %v2402 = vsel %vm2377, %v2399, %v2401
        %v2403 = vrot.slane %v1702, 3
        %v2404 = vsel %vm2377, %v2401, %v2403
        %v2405 = vrot.slane %v1703, 3
        %v2406 = vsel %vm2377, %v2403, %v2405
        %v2407 = vrot.slane %v1704, 3
        %v2408 = vsel %vm2377, %v2405, %v2407
        %v2409 = vrot.slane %v1971, 3
        %v2410 = vsel %vm2377, %v2407, %v2409
        %v2411 = vrot.slane %v2213, 3
        %v2412 = vsel %vm2377, %v2409, %v2411
        %v2413 = vrot.slane %v2214, 3
        %v2414 = vsel %vm2377, %v2411, %v2413
        %2415 = vrot.lane.b32.xlu0 %v2380, 64
        %v2416 = vpop.permute.xlu0 %2415
        %2417 = vrot.lane.b32.xlu0 %v2382, 64
        %v2418 = vpop.permute.xlu0 %2417
        %2419 = vrot.lane.b32.xlu0 %v2384, 64
        %v2420 = vpop.permute.xlu0 %2419
        %2421 = vrot.lane.b32.xlu0 %v2386, 64
        %v2422 = vpop.permute.xlu0 %2421
        %2423 = vrot.lane.b32.xlu0 %v2388, 64
        %v2424 = vpop.permute.xlu0 %2423
        %2425 = vrot.lane.b32.xlu0 %v2390, 64
        %v2426 = vpop.permute.xlu0 %2425
        %2427 = vrot.lane.b32.xlu0 %v2392, 64
        %v2428 = vpop.permute.xlu0 %2427
        %2429 = vrot.lane.b32.xlu0 %v2394, 64
        %v2430 = vpop.permute.xlu0 %2429
        %2431 = vrot.lane.b32.xlu0 %v2396, 64
        %v2432 = vpop.permute.xlu0 %2431
        %2433 = vrot.lane.b32.xlu0 %v2398, 64
        %v2434 = vpop.permute.xlu0 %2433
        %2435 = vrot.lane.b32.xlu0 %v2400, 64
        %v2436 = vpop.permute.xlu0 %2435
        %2437 = vrot.lane.b32.xlu0 %v2402, 64
        %v2438 = vpop.permute.xlu0 %2437
        %2439 = vrot.lane.b32.xlu0 %v2404, 64
        %v2440 = vpop.permute.xlu0 %2439
        %2441 = vrot.lane.b32.xlu0 %v2406, 64
        %v2442 = vpop.permute.xlu0 %2441
        %2443 = vrot.lane.b32.xlu0 %v2408, 64
        %v2444 = vpop.permute.xlu0 %2443
        %2445 = vrot.lane.b32.xlu0 %v2410, 64
        %v2446 = vpop.permute.xlu0 %2445
        %2447 = vrot.lane.b32.xlu0 %v2412, 64
        %v2448 = vpop.permute.xlu0 %2447
        %2449 = vrot.lane.b32.xlu0 %v2414, 64
        %v2450 = vpop.permute.xlu0 %2449
        %vm2451 = vcmask 64512
        %v2453 = vsel %vm2451, %v1687, %v1858
        %v2455 = vsel %vm2451, %v1688, %v1860
        %v2457 = vsel %vm2451, %v1689, %v1862
        %v2459 = vsel %vm2451, %v1690, %v1864
        %v2461 = vsel %vm2451, %v1691, %v1866
        %v2463 = vsel %vm2451, %v1692, %v1868
        %v2465 = vsel %vm2451, %v1693, %v1870
        %v2467 = vsel %vm2451, %v1694, %v1872
        %v2469 = vsel %vm2451, %v1695, %v1874
        %v2471 = vsel %vm2451, %v1696, %v1876
        %v2473 = vsel %vm2451, %v1697, %v1878
        %v2475 = vsel %vm2451, %v1698, %v1880
        %v2477 = vsel %vm2451, %v1699, %v1882
        %v2479 = vsel %vm2451, %v1700, %v1884
        %v2481 = vsel %vm2451, %v1701, %v1886
        %v2483 = vsel %vm2451, %v1702, %v1888
        %v2485 = vsel %vm2451, %v1703, %v1890
        %v2487 = vsel %vm2451, %v1704, %v1892
        %vm2488 = vcmask 130048
        %v2490 = vsel %vm2488, %v2453, %v1932
        %v2492 = vsel %vm2488, %v2455, %v1934
        %v2494 = vsel %vm2488, %v2457, %v1936
        %v2496 = vsel %vm2488, %v2459, %v1938
        %v2498 = vsel %vm2488, %v2461, %v1940
        %v2500 = vsel %vm2488, %v2463, %v1942
        %v2502 = vsel %vm2488, %v2465, %v1944
        %v2504 = vsel %vm2488, %v2467, %v1946
        %v2506 = vsel %vm2488, %v2469, %v1948
        %v2508 = vsel %vm2488, %v2471, %v1950
        %v2510 = vsel %vm2488, %v2473, %v1952
        %v2512 = vsel %vm2488, %v2475, %v1954
        %v2514 = vsel %vm2488, %v2477, %v1956
        %v2516 = vsel %vm2488, %v2479, %v1958
        %v2518 = vsel %vm2488, %v2481, %v1960
        %v2520 = vsel %vm2488, %v2483, %v1962
        %v2522 = vsel %vm2488, %v2485, %v1964
        %v2524 = vsel %vm2488, %v2487, %v1966
        %vm2525 = vcmask 195584
        %v2527 = vsel %vm2525, %v2490, %v1978
        %v2529 = vsel %vm2525, %v2492, %v1980
        %v2531 = vsel %vm2525, %v2494, %v1982
        %v2533 = vsel %vm2525, %v2496, %v1984
        %v2535 = vsel %vm2525, %v2498, %v1986
        %v2537 = vsel %vm2525, %v2500, %v1988
        %v2539 = vsel %vm2525, %v2502, %v1990
        %v2541 = vsel %vm2525, %v2504, %v1992
        %v2543 = vsel %vm2525, %v2506, %v1994
        %v2545 = vsel %vm2525, %v2508, %v1996
        %v2547 = vsel %vm2525, %v2510, %v1998
        %v2549 = vsel %vm2525, %v2512, %v2000
        %v2551 = vsel %vm2525, %v2514, %v2002
        %v2553 = vsel %vm2525, %v2516, %v2004
        %v2555 = vsel %vm2525, %v2518, %v2006
        %v2557 = vsel %vm2525, %v2520, %v2008
        %v2559 = vsel %vm2525, %v2522, %v2010
        %v2561 = vsel %vm2525, %v2524, %v2012
        %vm2562 = vcmask 261120
        %v2564 = vsel %vm2562, %v2527, %v2100
        %v2566 = vsel %vm2562, %v2529, %v2102
        %v2568 = vsel %vm2562, %v2531, %v2104
        %v2570 = vsel %vm2562, %v2533, %v2106
        %v2572 = vsel %vm2562, %v2535, %v2108
        %v2574 = vsel %vm2562, %v2537, %v2110
        %v2576 = vsel %vm2562, %v2539, %v2112
        %v2578 = vsel %vm2562, %v2541, %v2114
        %v2580 = vsel %vm2562, %v2543, %v2116
        %v2582 = vsel %vm2562, %v2545, %v2118
        %v2584 = vsel %vm2562, %v2547, %v2120
        %v2586 = vsel %vm2562, %v2549, %v2122
        %v2588 = vsel %vm2562, %v2551, %v2124
        %v2590 = vsel %vm2562, %v2553, %v2126
        %v2592 = vsel %vm2562, %v2555, %v2128
        %v2594 = vsel %vm2562, %v2557, %v2130
        %v2596 = vsel %vm2562, %v2559, %v2132
        %v2598 = vsel %vm2562, %v2561, %v2134
        %vm2599 = vcmask 326656
        %v2601 = vsel %vm2599, %v2564, %v2174
        %v2603 = vsel %vm2599, %v2566, %v2176
        %v2605 = vsel %vm2599, %v2568, %v2178
        %v2607 = vsel %vm2599, %v2570, %v2180
        %v2609 = vsel %vm2599, %v2572, %v2182
        %v2611 = vsel %vm2599, %v2574, %v2184
        %v2613 = vsel %vm2599, %v2576, %v2186
        %v2615 = vsel %vm2599, %v2578, %v2188
        %v2617 = vsel %vm2599, %v2580, %v2190
        %v2619 = vsel %vm2599, %v2582, %v2192
        %v2621 = vsel %vm2599, %v2584, %v2194
        %v2623 = vsel %vm2599, %v2586, %v2196
        %v2625 = vsel %vm2599, %v2588, %v2198
        %v2627 = vsel %vm2599, %v2590, %v2200
        %v2629 = vsel %vm2599, %v2592, %v2202
        %v2631 = vsel %vm2599, %v2594, %v2204
        %v2633 = vsel %vm2599, %v2596, %v2206
        %v2635 = vsel %vm2599, %v2598, %v2208
        %vm2636 = vcmask 392192
        %v2638 = vsel %vm2636, %v2601, %v2220
        %v2640 = vsel %vm2636, %v2603, %v2222
        %v2642 = vsel %vm2636, %v2605, %v2224
        %v2644 = vsel %vm2636, %v2607, %v2226
        %v2646 = vsel %vm2636, %v2609, %v2228
        %v2648 = vsel %vm2636, %v2611, %v2230
        %v2650 = vsel %vm2636, %v2613, %v2232
        %v2652 = vsel %vm2636, %v2615, %v2234
        %v2654 = vsel %vm2636, %v2617, %v2236
        %v2656 = vsel %vm2636, %v2619, %v2238
        %v2658 = vsel %vm2636, %v2621, %v2240
        %v2660 = vsel %vm2636, %v2623, %v2242
        %v2662 = vsel %vm2636, %v2625, %v2244
        %v2664 = vsel %vm2636, %v2627, %v2246
        %v2666 = vsel %vm2636, %v2629, %v2248
        %v2668 = vsel %vm2636, %v2631, %v2250
        %v2670 = vsel %vm2636, %v2633, %v2252
        %v2672 = vsel %vm2636, %v2635, %v2254
        %vm2673 = vcmask 457728
        %v2675 = vsel %vm2673, %v2638, %v2342
        %v2677 = vsel %vm2673, %v2640, %v2344
        %v2679 = vsel %vm2673, %v2642, %v2346
        %v2681 = vsel %vm2673, %v2644, %v2348
        %v2683 = vsel %vm2673, %v2646, %v2350
        %v2685 = vsel %vm2673, %v2648, %v2352
        %v2687 = vsel %vm2673, %v2650, %v2354
        %v2689 = vsel %vm2673, %v2652, %v2356
        %v2691 = vsel %vm2673, %v2654, %v2358
        %v2693 = vsel %vm2673, %v2656, %v2360
        %v2695 = vsel %vm2673, %v2658, %v2362
        %v2697 = vsel %vm2673, %v2660, %v2364
        %v2699 = vsel %vm2673, %v2662, %v2366
        %v2701 = vsel %vm2673, %v2664, %v2368
        %v2703 = vsel %vm2673, %v2666, %v2370
        %v2705 = vsel %vm2673, %v2668, %v2372
        %v2707 = vsel %vm2673, %v2670, %v2374
        %v2709 = vsel %vm2673, %v2672, %v2376
        %vm2710 = vcmask 523264
        %v2712 = vsel %vm2710, %v2675, %v2416
        %v2714 = vsel %vm2710, %v2677, %v2418
        %v2716 = vsel %vm2710, %v2679, %v2420
        %v2718 = vsel %vm2710, %v2681, %v2422
        %v2720 = vsel %vm2710, %v2683, %v2424
        %v2722 = vsel %vm2710, %v2685, %v2426
        %v2724 = vsel %vm2710, %v2687, %v2428
        %v2726 = vsel %vm2710, %v2689, %v2430
        %v2728 = vsel %vm2710, %v2691, %v2432
        %v2730 = vsel %vm2710, %v2693, %v2434
        %v2732 = vsel %vm2710, %v2695, %v2436
        %v2734 = vsel %vm2710, %v2697, %v2438
        %v2736 = vsel %vm2710, %v2699, %v2440
        %v2738 = vsel %vm2710, %v2701, %v2442
        %v2740 = vsel %vm2710, %v2703, %v2444
        %v2742 = vsel %vm2710, %v2705, %v2446
        %v2744 = vsel %vm2710, %v2707, %v2448
        %v2746 = vsel %vm2710, %v2709, %v2450
        %v2747 = vld [vmem:[%s1] sm:$0xf]
        %v2748 = vld [vmem:[%s1 + $0x4] sm:$0xf]
        %v2749 = vld [vmem:[%s1 + $0x8] sm:$0xf]
        %v2750 = vld [vmem:[%s1 + $0xc] sm:$0xf]
        %v2751 = vld [vmem:[%s1 + $0x10] sm:$0xf]
        %v2752 = vld [vmem:[%s1 + $0x14] sm:$0xf]
        %v2753 = vld [vmem:[%s1 + $0x18] sm:$0xf]
        %v2754 = vld [vmem:[%s1 + $0x1c] sm:$0xf]
        %v2755 = vld [vmem:[%s1 + $0x20] sm:$0xf]
        %v2756 = vld [vmem:[%s2] sm:$0x1]
        %v2758 = vperm.slane %v2756, 0
        %v2769 = vunpack.c.l.b16 %v2747
        %v2770 = vunpack.c.l.b16 %v2748
        %v2771 = vunpack.c.l.b16 %v2749
        %v2772 = vunpack.c.l.b16 %v2750
        %v2773 = vunpack.c.l.b16 %v2751
        %v2774 = vunpack.c.l.b16 %v2752
        %v2775 = vunpack.c.l.b16 %v2753
        %v2776 = vunpack.c.l.b16 %v2754
        %v2777 = vunpack.c.l.b16 %v2755
        %v2778 = vpack.c.b16 %v2770, %v2769
        %v2779 = vpack.c.b16 %v2772, %v2771
        %v2780 = vpack.c.b16 %v2774, %v2773
        %v2781 = vpack.c.b16 %v2776, %v2775
        %v2782 = vpack.c.b16 %v2777, %v2777
        %vm2787 = vcmask 588800
        %v2788 = vsel %vm2787, %v2712, 0
        %v2790 = vsel %vm2787, %v2714, 0
        %v2792 = vsel %vm2787, %v2716, 0
        %v2794 = vsel %vm2787, %v2718, 0
        %v2796 = vsel %vm2787, %v2720, 0
        %v2798 = vsel %vm2787, %v2722, 0
        %v2800 = vsel %vm2787, %v2724, 0
        %v2802 = vsel %vm2787, %v2726, 0
        %v2804 = vsel %vm2787, %v2728, 0
        %v2806 = vsel %vm2787, %v2730, 0
        %v2808 = vsel %vm2787, %v2732, 0
        %v2810 = vsel %vm2787, %v2734, 0
        %v2812 = vsel %vm2787, %v2736, 0
        %v2814 = vsel %vm2787, %v2738, 0
        %v2816 = vsel %vm2787, %v2740, 0
        %v2818 = vsel %vm2787, %v2742, 0
        %v2820 = vsel %vm2787, %v2744, 0
        %v2822 = vsel %vm2787, %v2746, 0
        %vm2824 = vcmask 1043456
        %v2826 = vsel %vm2824, %v2782, 0
        %2828 = vmatpush.bf16.msra.mxu0 0
        %2829 = vmatpush.bf16.msra.mxu0 0
        %2830 = vmatpush.bf16.msra.mxu0 0
        %2831 = vmatpush.bf16.msra.mxu0 %v2826
        %2832 = vmatpush.bf16.msra.mxu0 %v2781
        %2833 = vmatpush.bf16.msra.mxu0 %v2780
        %2834 = vmatpush.bf16.msra.mxu0 %v2779
        %2835 = vmatpush.bf16.msra.mxu0 %v2778
        %2836 = vmatmul.bf16.gmra.mxu0 %v2788
        %v2837 = vpop.f32.mrf.mxu0
        %v2838 = vadd.f32 %v2758, %v2837
        %v2839 = vpop.f32.mrf.mxu0
        %v2840 = vadd.f32 %v2758, %v2839
        %2841 = vmatmul.bf16.gmra.mxu0 %v2790
        %v2842 = vpop.f32.mrf.mxu0
        %v2843 = vadd.f32 %v2758, %v2842
        %v2844 = vpop.f32.mrf.mxu0
        %v2845 = vadd.f32 %v2758, %v2844
        %2846 = vmatmul.bf16.gmra.mxu0 %v2792
        %v2847 = vpop.f32.mrf.mxu0
        %v2848 = vadd.f32 %v2758, %v2847
        %v2849 = vpop.f32.mrf.mxu0
        %v2850 = vadd.f32 %v2758, %v2849
        %2851 = vmatmul.bf16.gmra.mxu0 %v2794
        %v2852 = vpop.f32.mrf.mxu0
        %v2853 = vadd.f32 %v2758, %v2852
        %v2854 = vpop.f32.mrf.mxu0
        %v2855 = vadd.f32 %v2758, %v2854
        %2856 = vmatmul.bf16.gmra.mxu0 %v2796
        %v2857 = vpop.f32.mrf.mxu0
        %v2858 = vadd.f32 %v2758, %v2857
        %v2859 = vpop.f32.mrf.mxu0
        %v2860 = vadd.f32 %v2758, %v2859
        %2861 = vmatmul.bf16.gmra.mxu0 %v2798
        %v2862 = vpop.f32.mrf.mxu0
        %v2863 = vadd.f32 %v2758, %v2862
        %v2864 = vpop.f32.mrf.mxu0
        %v2865 = vadd.f32 %v2758, %v2864
        %2866 = vmatmul.bf16.gmra.mxu0 %v2800
        %v2867 = vpop.f32.mrf.mxu0
        %v2868 = vadd.f32 %v2758, %v2867
        %v2869 = vpop.f32.mrf.mxu0
        %v2870 = vadd.f32 %v2758, %v2869
        %2871 = vmatmul.bf16.gmra.mxu0 %v2802
        %v2872 = vpop.f32.mrf.mxu0
        %v2873 = vadd.f32 %v2758, %v2872
        %v2874 = vpop.f32.mrf.mxu0
        %v2875 = vadd.f32 %v2758, %v2874
        %2876 = vmatmul.bf16.gmra.mxu0 %v2804
        %v2877 = vpop.f32.mrf.mxu0
        %v2878 = vadd.f32 %v2758, %v2877
        %v2879 = vpop.f32.mrf.mxu0
        %v2880 = vadd.f32 %v2758, %v2879
        %2881 = vmatmul.bf16.gmra.mxu0 %v2806
        %v2882 = vpop.f32.mrf.mxu0
        %v2883 = vadd.f32 %v2758, %v2882
        %v2884 = vpop.f32.mrf.mxu0
        %v2885 = vadd.f32 %v2758, %v2884
        %2886 = vmatmul.bf16.gmra.mxu0 %v2808
        %v2887 = vpop.f32.mrf.mxu0
        %v2888 = vadd.f32 %v2758, %v2887
        %v2889 = vpop.f32.mrf.mxu0
        %v2890 = vadd.f32 %v2758, %v2889
        %2891 = vmatmul.bf16.gmra.mxu0 %v2810
        %v2892 = vpop.f32.mrf.mxu0
        %v2893 = vadd.f32 %v2758, %v2892
        %v2894 = vpop.f32.mrf.mxu0
        %v2895 = vadd.f32 %v2758, %v2894
        %2896 = vmatmul.bf16.gmra.mxu0 %v2812
        %v2897 = vpop.f32.mrf.mxu0
        %v2898 = vadd.f32 %v2758, %v2897
        %v2899 = vpop.f32.mrf.mxu0
        %v2900 = vadd.f32 %v2758, %v2899
        %2901 = vmatmul.bf16.gmra.mxu0 %v2814
        %v2902 = vpop.f32.mrf.mxu0
        %v2903 = vadd.f32 %v2758, %v2902
        %v2904 = vpop.f32.mrf.mxu0
        %v2905 = vadd.f32 %v2758, %v2904
        %2906 = vmatmul.bf16.gmra.mxu0 %v2816
        %v2907 = vpop.f32.mrf.mxu0
        %v2908 = vadd.f32 %v2758, %v2907
        %v2909 = vpop.f32.mrf.mxu0
        %v2910 = vadd.f32 %v2758, %v2909
        %2911 = vmatmul.bf16.gmra.mxu0 %v2818
        %v2912 = vpop.f32.mrf.mxu0
        %v2913 = vadd.f32 %v2758, %v2912
        %v2914 = vpop.f32.mrf.mxu0
        %v2915 = vadd.f32 %v2758, %v2914
        %2916 = vmatmul.bf16.gmra.mxu0 %v2820
        %v2917 = vpop.f32.mrf.mxu0
        %v2918 = vadd.f32 %v2758, %v2917
        %v2919 = vpop.f32.mrf.mxu0
        %v2920 = vadd.f32 %v2758, %v2919
        %2921 = vmatmul.bf16.gmra.mxu0 %v2822
        %v2922 = vpop.f32.mrf.mxu0
        %v2923 = vadd.f32 %v2758, %v2922
        %v2924 = vpop.f32.mrf.mxu0
        %v2925 = vadd.f32 %v2758, %v2924
        %2926 = vdwg.mxu0
        %v2927 = vmax.f32 %v2838, 0.0
        %v2928 = vmax.f32 %v2840, 0.0
        %v2929 = vmax.f32 %v2843, 0.0
        %v2930 = vmax.f32 %v2845, 0.0
        %v2931 = vmax.f32 %v2848, 0.0
        %v2932 = vmax.f32 %v2850, 0.0
        %v2933 = vmax.f32 %v2853, 0.0
        %v2934 = vmax.f32 %v2855, 0.0
        %v2935 = vmax.f32 %v2858, 0.0
        %v2936 = vmax.f32 %v2860, 0.0
        %v2937 = vmax.f32 %v2863, 0.0
        %v2938 = vmax.f32 %v2865, 0.0
        %v2939 = vmax.f32 %v2868, 0.0
        %v2940 = vmax.f32 %v2870, 0.0
        %v2941 = vmax.f32 %v2873, 0.0
        %v2942 = vmax.f32 %v2875, 0.0
        %v2943 = vmax.f32 %v2878, 0.0
        %v2944 = vmax.f32 %v2880, 0.0
        %v2945 = vmax.f32 %v2883, 0.0
        %v2946 = vmax.f32 %v2885, 0.0
        %v2947 = vmax.f32 %v2888, 0.0
        %v2948 = vmax.f32 %v2890, 0.0
        %v2949 = vmax.f32 %v2893, 0.0
        %v2950 = vmax.f32 %v2895, 0.0
        %v2951 = vmax.f32 %v2898, 0.0
        %v2952 = vmax.f32 %v2900, 0.0
        %v2953 = vmax.f32 %v2903, 0.0
        %v2954 = vmax.f32 %v2905, 0.0
        %v2955 = vmax.f32 %v2908, 0.0
        %v2956 = vmax.f32 %v2910, 0.0
        %v2957 = vmax.f32 %v2913, 0.0
        %v2958 = vmax.f32 %v2915, 0.0
        %v2959 = vmax.f32 %v2918, 0.0
        %v2960 = vmax.f32 %v2920, 0.0
        %v2961 = vmax.f32 %v2923, 0.0
        %v2962 = vmax.f32 %v2925, 0.0
        %v2963 = vsel %vm1484, 1, 0
        %v2964 = vsel %vm1485, 1, 0
        %v2965 = vsel %vm1486, 1, 0
        %v2966 = vsel %vm1487, 1, 0
        %v2967 = vsel %vm1488, 1, 0
        %v2968 = vsel %vm1489, 1, 0
        %v2969 = vsel %vm1490, 1, 0
        %v2970 = vsel %vm1491, 1, 0
        %v2971 = vsel %vm1492, 1, 0
        %v2972 = vsel %vm1493, 1, 0
        %v2973 = vsel %vm1494, 1, 0
        %v2974 = vsel %vm1495, 1, 0
        %v2975 = vsel %vm1496, 1, 0
        %v2976 = vsel %vm1497, 1, 0
        %v2977 = vsel %vm1498, 1, 0
        %v2978 = vsel %vm1499, 1, 0
        %v2979 = vsel %vm1500, 1, 0
        %v2980 = vsel %vm1501, 1, 0
        %v2981 = vsel %vm1502, 1, 0
        %v2982 = vsel %vm1503, 1, 0
        %v2983 = vsel %vm1504, 1, 0
        %v2984 = vsel %vm1505, 1, 0
        %v2985 = vsel %vm1506, 1, 0
        %v2986 = vsel %vm1507, 1, 0
        %v2987 = vsel %vm1508, 1, 0
        %v2988 = vsel %vm1509, 1, 0
        %v2989 = vsel %vm1510, 1, 0
        %v2990 = vsel %vm1511, 1, 0
        %v2991 = vsel %vm1512, 1, 0
        %v2992 = vsel %vm1513, 1, 0
        %v2993 = vsel %vm1514, 1, 0
        %v2994 = vsel %vm1515, 1, 0
        %v2995 = vsel %vm1516, 1, 0
        %v2996 = vsel %vm1517, 1, 0
        %v2997 = vsel %vm1518, 1, 0
        %v2998 = vsel %vm1519, 1, 0
        %vm2999 = vcmp.eq.s32.totalorder %v2963, 1
        %vm3000 = vcmp.eq.s32.totalorder %v2964, 1
        %vm3001 = vcmp.eq.s32.totalorder %v2965, 1
        %vm3002 = vcmp.eq.s32.totalorder %v2966, 1
        %vm3003 = vcmp.eq.s32.totalorder %v2967, 1
        %vm3004 = vcmp.eq.s32.totalorder %v2968, 1
        %vm3005 = vcmp.eq.s32.totalorder %v2969, 1
        %vm3006 = vcmp.eq.s32.totalorder %v2970, 1
        %vm3007 = vcmp.eq.s32.totalorder %v2971, 1
        %vm3008 = vcmp.eq.s32.totalorder %v2972, 1
        %vm3009 = vcmp.eq.s32.totalorder %v2973, 1
        %vm3010 = vcmp.eq.s32.totalorder %v2974, 1
        %vm3011 = vcmp.eq.s32.totalorder %v2975, 1
        %vm3012 = vcmp.eq.s32.totalorder %v2976, 1
        %vm3013 = vcmp.eq.s32.totalorder %v2977, 1
        %vm3014 = vcmp.eq.s32.totalorder %v2978, 1
        %vm3015 = vcmp.eq.s32.totalorder %v2979, 1
        %vm3016 = vcmp.eq.s32.totalorder %v2980, 1
        %vm3017 = vcmp.eq.s32.totalorder %v2981, 1
        %vm3018 = vcmp.eq.s32.totalorder %v2982, 1
        %vm3019 = vcmp.eq.s32.totalorder %v2983, 1
        %vm3020 = vcmp.eq.s32.totalorder %v2984, 1
        %vm3021 = vcmp.eq.s32.totalorder %v2985, 1
        %vm3022 = vcmp.eq.s32.totalorder %v2986, 1
        %vm3023 = vcmp.eq.s32.totalorder %v2987, 1
        %vm3024 = vcmp.eq.s32.totalorder %v2988, 1
        %vm3025 = vcmp.eq.s32.totalorder %v2989, 1
        %vm3026 = vcmp.eq.s32.totalorder %v2990, 1
        %vm3027 = vcmp.eq.s32.totalorder %v2991, 1
        %vm3028 = vcmp.eq.s32.totalorder %v2992, 1
        %vm3029 = vcmp.eq.s32.totalorder %v2993, 1
        %vm3030 = vcmp.eq.s32.totalorder %v2994, 1
        %vm3031 = vcmp.eq.s32.totalorder %v2995, 1
        %vm3032 = vcmp.eq.s32.totalorder %v2996, 1
        %vm3033 = vcmp.eq.s32.totalorder %v2997, 1
        %vm3034 = vcmp.eq.s32.totalorder %v2998, 1
        %v3035 = vsel %vm2999, %v2927, 0.0
        %v3036 = vsel %vm3000, %v2928, 0.0
        %v3037 = vsel %vm3001, %v2929, 0.0
        %v3038 = vsel %vm3002, %v2930, 0.0
        %v3039 = vsel %vm3003, %v2931, 0.0
        %v3040 = vsel %vm3004, %v2932, 0.0
        %v3041 = vsel %vm3005, %v2933, 0.0
        %v3042 = vsel %vm3006, %v2934, 0.0
        %v3043 = vsel %vm3007, %v2935, 0.0
        %v3044 = vsel %vm3008, %v2936, 0.0
        %v3045 = vsel %vm3009, %v2937, 0.0
        %v3046 = vsel %vm3010, %v2938, 0.0
        %v3047 = vsel %vm3011, %v2939, 0.0
        %v3048 = vsel %vm3012, %v2940, 0.0
        %v3049 = vsel %vm3013, %v2941, 0.0
        %v3050 = vsel %vm3014, %v2942, 0.0
        %v3051 = vsel %vm3015, %v2943, 0.0
        %v3052 = vsel %vm3016, %v2944, 0.0
        %v3053 = vsel %vm3017, %v2945, 0.0
        %v3054 = vsel %vm3018, %v2946, 0.0
        %v3055 = vsel %vm3019, %v2947, 0.0
        %v3056 = vsel %vm3020, %v2948, 0.0
        %v3057 = vsel %vm3021, %v2949, 0.0
        %v3058 = vsel %vm3022, %v2950, 0.0
        %v3059 = vsel %vm3023, %v2951, 0.0
        %v3060 = vsel %vm3024, %v2952, 0.0
        %v3061 = vsel %vm3025, %v2953, 0.0
        %v3062 = vsel %vm3026, %v2954, 0.0
        %v3063 = vsel %vm3027, %v2955, 0.0
        %v3064 = vsel %vm3028, %v2956, 0.0
        %v3065 = vsel %vm3029, %v2957, 0.0
        %v3066 = vsel %vm3030, %v2958, 0.0
        %v3067 = vsel %vm3031, %v2959, 0.0
        %v3068 = vsel %vm3032, %v2960, 0.0
        %v3069 = vsel %vm3033, %v2961, 0.0
        %v3070 = vsel %vm3034, %v2962, 0.0
        %v3071 = vpack.c.bf16 %v3035, %v3035
        %v3072 = vpack.c.bf16 %v3036, %v3036
        %v3073 = vpack.c.bf16 %v3037, %v3037
        %v3074 = vpack.c.bf16 %v3038, %v3038
        %v3075 = vpack.c.bf16 %v3039, %v3039
        %v3076 = vpack.c.bf16 %v3040, %v3040
        %v3077 = vpack.c.bf16 %v3041, %v3041
        %v3078 = vpack.c.bf16 %v3042, %v3042
        %v3079 = vpack.c.bf16 %v3043, %v3043
        %v3080 = vpack.c.bf16 %v3044, %v3044
        %v3081 = vpack.c.bf16 %v3045, %v3045
        %v3082 = vpack.c.bf16 %v3046, %v3046
        %v3083 = vpack.c.bf16 %v3047, %v3047
        %v3084 = vpack.c.bf16 %v3048, %v3048
        %v3085 = vpack.c.bf16 %v3049, %v3049
        %v3086 = vpack.c.bf16 %v3050, %v3050
        %v3087 = vpack.c.bf16 %v3051, %v3051
        %v3088 = vpack.c.bf16 %v3052, %v3052
        %v3089 = vpack.c.bf16 %v3053, %v3053
        %v3090 = vpack.c.bf16 %v3054, %v3054
        %v3091 = vpack.c.bf16 %v3055, %v3055
        %v3092 = vpack.c.bf16 %v3056, %v3056
        %v3093 = vpack.c.bf16 %v3057, %v3057
        %v3094 = vpack.c.bf16 %v3058, %v3058
        %v3095 = vpack.c.bf16 %v3059, %v3059
        %v3096 = vpack.c.bf16 %v3060, %v3060
        %v3097 = vpack.c.bf16 %v3061, %v3061
        %v3098 = vpack.c.bf16 %v3062, %v3062
        %v3099 = vpack.c.bf16 %v3063, %v3063
        %v3100 = vpack.c.bf16 %v3064, %v3064
        %v3101 = vpack.c.bf16 %v3065, %v3065
        %v3102 = vpack.c.bf16 %v3066, %v3066
        %v3103 = vpack.c.bf16 %v3067, %v3067
        %v3104 = vpack.c.bf16 %v3068, %v3068
        %v3105 = vpack.c.bf16 %v3069, %v3069
        %v3106 = vpack.c.bf16 %v3070, %v3070
        %vm3107 = vcmask 257024
        %3108 = vst.msk [vmem:[#allocation2 + $0x10] sm:$0xf] %vm3107, %v3071
        %3109 = vst.msk [vmem:[#allocation2 + $0x14] sm:$0xf] %vm3107, %v3072
        %3110 = vst.msk [vmem:[#allocation2 + $0x18] sm:$0xf] %vm3107, %v3073
        %3111 = vst.msk [vmem:[#allocation2 + $0x1c] sm:$0xf] %vm3107, %v3074
        %3112 = vst.msk [vmem:[#allocation2 + $0x20] sm:$0xf] %vm3107, %v3075
        %3113 = vst.msk [vmem:[#allocation2 + $0x24] sm:$0xf] %vm3107, %v3076
        %3114 = vst.msk [vmem:[#allocation2 + $0x28] sm:$0xf] %vm3107, %v3077
        %3115 = vst.msk [vmem:[#allocation2 + $0x2c] sm:$0xf] %vm3107, %v3078
        %3116 = vst.msk [vmem:[#allocation2 + $0x30] sm:$0xf] %vm3107, %v3079
        %3117 = vst.msk [vmem:[#allocation2 + $0x34] sm:$0xf] %vm3107, %v3080
        %3118 = vst.msk [vmem:[#allocation2 + $0x38] sm:$0xf] %vm3107, %v3081
        %3119 = vst.msk [vmem:[#allocation2 + $0x3c] sm:$0xf] %vm3107, %v3082
        %3120 = vst.msk [vmem:[#allocation2 + $0x40] sm:$0xf] %vm3107, %v3083
        %3121 = vst.msk [vmem:[#allocation2 + $0x44] sm:$0xf] %vm3107, %v3084
        %3122 = vst.msk [vmem:[#allocation2 + $0x48] sm:$0xf] %vm3107, %v3085
        %3123 = vst.msk [vmem:[#allocation2 + $0x4c] sm:$0xf] %vm3107, %v3086
        %3124 = vst.msk [vmem:[#allocation2 + $0x50] sm:$0xf] %vm3107, %v3087
        %3125 = vst.msk [vmem:[#allocation2 + $0x54] sm:$0xf] %vm3107, %v3088
        %3126 = vst.msk [vmem:[#allocation2 + $0x58] sm:$0xf] %vm3107, %v3089
        %3127 = vst.msk [vmem:[#allocation2 + $0x5c] sm:$0xf] %vm3107, %v3090
        %3128 = vst.msk [vmem:[#allocation2 + $0x60] sm:$0xf] %vm3107, %v3091
        %3129 = vst.msk [vmem:[#allocation2 + $0x64] sm:$0xf] %vm3107, %v3092
        %3130 = vst.msk [vmem:[#allocation2 + $0x68] sm:$0xf] %vm3107, %v3093
        %3131 = vst.msk [vmem:[#allocation2 + $0x6c] sm:$0xf] %vm3107, %v3094
        %3132 = vst.msk [vmem:[#allocation2 + $0x70] sm:$0xf] %vm3107, %v3095
        %3133 = vst.msk [vmem:[#allocation2 + $0x74] sm:$0xf] %vm3107, %v3096
        %3134 = vst.msk [vmem:[#allocation2 + $0x78] sm:$0xf] %vm3107, %v3097
        %3135 = vst.msk [vmem:[#allocation2 + $0x7c] sm:$0xf] %vm3107, %v3098
        %3136 = vst.msk [vmem:[#allocation2 + $0x80] sm:$0xf] %vm3107, %v3099
        %3137 = vst.msk [vmem:[#allocation2 + $0x84] sm:$0xf] %vm3107, %v3100
        %3138 = vst.msk [vmem:[#allocation2 + $0x88] sm:$0xf] %vm3107, %v3101
        %3139 = vst.msk [vmem:[#allocation2 + $0x8c] sm:$0xf] %vm3107, %v3102
        %3140 = vst.msk [vmem:[#allocation2 + $0x90] sm:$0xf] %vm3107, %v3103
        %3141 = vst.msk [vmem:[#allocation2 + $0x94] sm:$0xf] %vm3107, %v3104
        %3142 = vst.msk [vmem:[#allocation2 + $0x98] sm:$0xf] %vm3107, %v3105
        %3143 = vst.msk [vmem:[#allocation2 + $0x9c] sm:$0xf] %vm3107, %v3106
        %v3144 = vld [vmem:[#allocation2 + $0x4] sm:$0xc]
        %v3145 = vld [vmem:[#allocation2 + $0x8] sm:$0xf]
        %v3146 = vld [vmem:[#allocation2 + $0xc] sm:$0xf]
        %v3147 = vld [vmem:[#allocation2 + $0x10] sm:$0xf]
        %v3148 = vld [vmem:[#allocation2 + $0x14] sm:$0xf]
        %v3149 = vld [vmem:[#allocation2 + $0x18] sm:$0xf]
        %v3150 = vld [vmem:[#allocation2 + $0x1c] sm:$0xf]
        %v3151 = vld [vmem:[#allocation2 + $0x20] sm:$0xf]
        %v3152 = vld [vmem:[#allocation2 + $0x24] sm:$0xf]
        %v3153 = vld [vmem:[#allocation2 + $0x28] sm:$0xf]
        %v3154 = vld [vmem:[#allocation2 + $0x2c] sm:$0xf]
        %v3155 = vld [vmem:[#allocation2 + $0x30] sm:$0xf]
        %v3156 = vld [vmem:[#allocation2 + $0x34] sm:$0xf]
        %v3157 = vld [vmem:[#allocation2 + $0x38] sm:$0xf]
        %v3158 = vld [vmem:[#allocation2 + $0x3c] sm:$0xf]
        %v3159 = vld [vmem:[#allocation2 + $0x40] sm:$0xf]
        %v3160 = vld [vmem:[#allocation2 + $0x44] sm:$0xf]
        %v3161 = vld [vmem:[#allocation2 + $0x48] sm:$0xf]
        %v3162 = vld [vmem:[#allocation2 + $0x4c] sm:$0xf]
        %v3163 = vld [vmem:[#allocation2 + $0x50] sm:$0xf]
        %v3164 = vld [vmem:[#allocation2 + $0x54] sm:$0xf]
        %v3165 = vld [vmem:[#allocation2 + $0x58] sm:$0xf]
        %v3166 = vld [vmem:[#allocation2 + $0x5c] sm:$0xf]
        %v3167 = vld [vmem:[#allocation2 + $0x60] sm:$0xf]
        %v3168 = vld [vmem:[#allocation2 + $0x64] sm:$0xf]
        %v3169 = vld [vmem:[#allocation2 + $0x68] sm:$0xf]
        %v3170 = vld [vmem:[#allocation2 + $0x6c] sm:$0xf]
        %v3171 = vld [vmem:[#allocation2 + $0x70] sm:$0xf]
        %v3172 = vld [vmem:[#allocation2 + $0x74] sm:$0xf]
        %v3173 = vld [vmem:[#allocation2 + $0x78] sm:$0xf]
        %v3174 = vld [vmem:[#allocation2 + $0x7c] sm:$0xf]
        %v3175 = vld [vmem:[#allocation2 + $0x80] sm:$0xf]
        %v3176 = vld [vmem:[#allocation2 + $0x84] sm:$0xf]
        %v3177 = vld [vmem:[#allocation2 + $0x88] sm:$0xf]
        %v3178 = vld [vmem:[#allocation2 + $0x8c] sm:$0xf]
        %v3179 = vld [vmem:[#allocation2 + $0x90] sm:$0xf]
        %v3180 = vld [vmem:[#allocation2 + $0x94] sm:$0x7]
        %v3181 = vld [vmem:[#allocation2 + $0x4] sm:$0x8]
        %v3182 = vld [vmem:[#allocation2 + $0x94] sm:$0xf]
        %v3183 = vld [vmem:[#allocation2 + $0xc] sm:$0x8]
        %v3184 = vld [vmem:[#allocation2 + $0x98] sm:$0xf]
        %v3185 = vld [vmem:[#allocation2 + $0x9c] sm:$0xf]
        %v3186 = vld [vmem:[#allocation2 + $0xa0] sm:$0x1]
        %v3187 = vld [vmem:[#allocation2 + $0xa0] sm:$0xf]
        %v3188 = vld [vmem:[#allocation2 + $0xa4] sm:$0xf]
        %v3189 = vld [vmem:[#allocation2 + $0xa8] sm:$0x1]
        %v3190 = vld [vmem:[#allocation2 + $0x18] sm:$0xe]
        %v3191 = vld [vmem:[#allocation2 + $0xa8] sm:$0x3]
        %v3229 = vunpack.c.l.b16 %v3144
        %v3230 = vunpack.c.l.b16 %v3145
        %v3231 = vunpack.c.l.b16 %v3146
        %v3232 = vunpack.c.l.b16 %v3147
        %v3233 = vunpack.c.l.b16 %v3148
        %v3234 = vunpack.c.l.b16 %v3149
        %v3235 = vunpack.c.l.b16 %v3150
        %v3236 = vunpack.c.l.b16 %v3151
        %v3237 = vunpack.c.l.b16 %v3152
        %v3238 = vunpack.c.l.b16 %v3153
        %v3239 = vunpack.c.l.b16 %v3154
        %v3240 = vunpack.c.l.b16 %v3155
        %v3241 = vunpack.c.l.b16 %v3156
        %v3242 = vunpack.c.l.b16 %v3157
        %v3243 = vunpack.c.l.b16 %v3158
        %v3244 = vunpack.c.l.b16 %v3159
        %v3245 = vunpack.c.l.b16 %v3160
        %v3246 = vunpack.c.l.b16 %v3161
        %v3247 = vunpack.c.l.b16 %v3162
        %v3248 = vunpack.c.l.b16 %v3163
        %v3249 = vunpack.c.l.b16 %v3164
        %v3250 = vunpack.c.l.b16 %v3165
        %v3251 = vunpack.c.l.b16 %v3166
        %v3252 = vunpack.c.l.b16 %v3167
        %v3253 = vunpack.c.l.b16 %v3168
        %v3254 = vunpack.c.l.b16 %v3169
        %v3255 = vunpack.c.l.b16 %v3170
        %v3256 = vunpack.c.l.b16 %v3171
        %v3257 = vunpack.c.l.b16 %v3172
        %v3258 = vunpack.c.l.b16 %v3173
        %v3259 = vunpack.c.l.b16 %v3174
        %v3260 = vunpack.c.l.b16 %v3175
        %v3261 = vunpack.c.l.b16 %v3176
        %v3262 = vunpack.c.l.b16 %v3177
        %v3263 = vunpack.c.l.b16 %v3178
        %v3264 = vunpack.c.l.b16 %v3179
        %v3265 = vunpack.c.l.b16 %v3180
        %v3266 = vpack.c.b16 %v3230, %v3229
        %v3267 = vpack.c.b16 %v3232, %v3231
        %v3268 = vpack.c.b16 %v3234, %v3233
        %v3269 = vpack.c.b16 %v3236, %v3235
        %v3270 = vpack.c.b16 %v3238, %v3237
        %v3271 = vpack.c.b16 %v3240, %v3239
        %v3272 = vpack.c.b16 %v3242, %v3241
        %v3273 = vpack.c.b16 %v3244, %v3243
        %v3274 = vpack.c.b16 %v3246, %v3245
        %v3275 = vpack.c.b16 %v3248, %v3247
        %v3276 = vpack.c.b16 %v3250, %v3249
        %v3277 = vpack.c.b16 %v3252, %v3251
        %v3278 = vpack.c.b16 %v3254, %v3253
        %v3279 = vpack.c.b16 %v3256, %v3255
        %v3280 = vpack.c.b16 %v3258, %v3257
        %v3281 = vpack.c.b16 %v3260, %v3259
        %v3282 = vpack.c.b16 %v3262, %v3261
        %v3283 = vpack.c.b16 %v3264, %v3263
        %v3284 = vpack.c.b16 %v3265, %v3265
        %v3286 = vunpack.c.l.b16 %v3181
        %v3287 = vpack.c.b16 %v3230, %v3286
        %v3289 = vshrl.u32 %v3287, 16
        %v3291 = vshll.u32 %v3287, 16
        %v3293 = vrot.slane %v3291, 1
        %v3294 = vor.u32 %v3289, %v3293
        %v3296 = vshll.u32 %v3267, 16
        %v3298 = vrot.slane %v3296, 1
        %v3299 = vsel %vm1708, %v3294, %v3298
        %v3300 = vshrl.u32 %v3267, 16
        %v3302 = vor.u32 %v3300, %v3298
        %v3304 = vshll.u32 %v3268, 16
        %v3306 = vrot.slane %v3304, 1
        %v3307 = vsel %vm1708, %v3302, %v3306
        %v3308 = vshrl.u32 %v3268, 16
        %v3310 = vor.u32 %v3308, %v3306
        %v3312 = vshll.u32 %v3269, 16
        %v3314 = vrot.slane %v3312, 1
        %v3315 = vsel %vm1708, %v3310, %v3314
        %v3316 = vshrl.u32 %v3269, 16
        %v3318 = vor.u32 %v3316, %v3314
        %v3320 = vshll.u32 %v3270, 16
        %v3322 = vrot.slane %v3320, 1
        %v3323 = vsel %vm1708, %v3318, %v3322
        %v3324 = vshrl.u32 %v3270, 16
        %v3326 = vor.u32 %v3324, %v3322
        %v3328 = vshll.u32 %v3271, 16
        %v3330 = vrot.slane %v3328, 1
        %v3331 = vsel %vm1708, %v3326, %v3330
        %v3332 = vshrl.u32 %v3271, 16
        %v3334 = vor.u32 %v3332, %v3330
        %v3336 = vshll.u32 %v3272, 16
        %v3338 = vrot.slane %v3336, 1
        %v3339 = vsel %vm1708, %v3334, %v3338
        %v3340 = vshrl.u32 %v3272, 16
        %v3342 = vor.u32 %v3340, %v3338
        %v3344 = vshll.u32 %v3273, 16
        %v3346 = vrot.slane %v3344, 1
        %v3347 = vsel %vm1708, %v3342, %v3346
        %v3348 = vshrl.u32 %v3273, 16
        %v3350 = vor.u32 %v3348, %v3346
        %v3352 = vshll.u32 %v3274, 16
        %v3354 = vrot.slane %v3352, 1
        %v3355 = vsel %vm1708, %v3350, %v3354
        %v3356 = vshrl.u32 %v3274, 16
        %v3358 = vor.u32 %v3356, %v3354
        %v3360 = vshll.u32 %v3275, 16
        %v3362 = vrot.slane %v3360, 1
        %v3363 = vsel %vm1708, %v3358, %v3362
        %v3364 = vshrl.u32 %v3275, 16
        %v3366 = vor.u32 %v3364, %v3362
        %v3368 = vshll.u32 %v3276, 16
        %v3370 = vrot.slane %v3368, 1
        %v3371 = vsel %vm1708, %v3366, %v3370
        %v3372 = vshrl.u32 %v3276, 16
        %v3374 = vor.u32 %v3372, %v3370
        %v3376 = vshll.u32 %v3277, 16
        %v3378 = vrot.slane %v3376, 1
        %v3379 = vsel %vm1708, %v3374, %v3378
        %v3380 = vshrl.u32 %v3277, 16
        %v3382 = vor.u32 %v3380, %v3378
        %v3384 = vshll.u32 %v3278, 16
        %v3386 = vrot.slane %v3384, 1
        %v3387 = vsel %vm1708, %v3382, %v3386
        %v3388 = vshrl.u32 %v3278, 16
        %v3390 = vor.u32 %v3388, %v3386
        %v3392 = vshll.u32 %v3279, 16
        %v3394 = vrot.slane %v3392, 1
        %v3395 = vsel %vm1708, %v3390, %v3394
        %v3396 = vshrl.u32 %v3279, 16
        %v3398 = vor.u32 %v3396, %v3394
        %v3400 = vshll.u32 %v3280, 16
        %v3402 = vrot.slane %v3400, 1
        %v3403 = vsel %vm1708, %v3398, %v3402
        %v3404 = vshrl.u32 %v3280, 16
        %v3406 = vor.u32 %v3404, %v3402
        %v3408 = vshll.u32 %v3281, 16
        %v3410 = vrot.slane %v3408, 1
        %v3411 = vsel %vm1708, %v3406, %v3410
        %v3412 = vshrl.u32 %v3281, 16
        %v3414 = vor.u32 %v3412, %v3410
        %v3416 = vshll.u32 %v3282, 16
        %v3418 = vrot.slane %v3416, 1
        %v3419 = vsel %vm1708, %v3414, %v3418
        %v3420 = vshrl.u32 %v3282, 16
        %v3422 = vor.u32 %v3420, %v3418
        %v3424 = vshll.u32 %v3283, 16
        %v3426 = vrot.slane %v3424, 1
        %v3427 = vsel %vm1708, %v3422, %v3426
        %v3428 = vshrl.u32 %v3283, 16
        %v3430 = vor.u32 %v3428, %v3426
        %v3432 = vshll.u32 %v3284, 16
        %v3434 = vrot.slane %v3432, 1
        %v3435 = vsel %vm1708, %v3430, %v3434
        %v3436 = vshrl.u32 %v3284, 16
        %v3438 = vor.u32 %v3436, %v3434
        %3439 = vrot.lane.b32.xlu0 %v3299, 32
        %v3440 = vpop.permute.xlu0 %3439
        %3441 = vrot.lane.b32.xlu0 %v3307, 32
        %v3442 = vpop.permute.xlu0 %3441
        %3443 = vrot.lane.b32.xlu0 %v3315, 32
        %v3444 = vpop.permute.xlu0 %3443
        %3445 = vrot.lane.b32.xlu0 %v3323, 32
        %v3446 = vpop.permute.xlu0 %3445
        %3447 = vrot.lane.b32.xlu0 %v3331, 32
        %v3448 = vpop.permute.xlu0 %3447
        %3449 = vrot.lane.b32.xlu0 %v3339, 32
        %v3450 = vpop.permute.xlu0 %3449
        %3451 = vrot.lane.b32.xlu0 %v3347, 32
        %v3452 = vpop.permute.xlu0 %3451
        %3453 = vrot.lane.b32.xlu0 %v3355, 32
        %v3454 = vpop.permute.xlu0 %3453
        %3455 = vrot.lane.b32.xlu0 %v3363, 32
        %v3456 = vpop.permute.xlu0 %3455
        %3457 = vrot.lane.b32.xlu0 %v3371, 32
        %v3458 = vpop.permute.xlu0 %3457
        %3459 = vrot.lane.b32.xlu0 %v3379, 32
        %v3460 = vpop.permute.xlu0 %3459
        %3461 = vrot.lane.b32.xlu0 %v3387, 32
        %v3462 = vpop.permute.xlu0 %3461
        %3463 = vrot.lane.b32.xlu0 %v3395, 32
        %v3464 = vpop.permute.xlu0 %3463
        %3465 = vrot.lane.b32.xlu0 %v3403, 32
        %v3466 = vpop.permute.xlu0 %3465
        %3467 = vrot.lane.b32.xlu0 %v3411, 32
        %v3468 = vpop.permute.xlu0 %3467
        %3469 = vrot.lane.b32.xlu0 %v3419, 32
        %v3470 = vpop.permute.xlu0 %3469
        %3471 = vrot.lane.b32.xlu0 %v3427, 32
        %v3472 = vpop.permute.xlu0 %3471
        %3473 = vrot.lane.b32.xlu0 %v3435, 32
        %v3474 = vpop.permute.xlu0 %3473
        %3475 = vrot.lane.b32.xlu0 %v3438, 32
        %v3476 = vpop.permute.xlu0 %3475
        %v3478 = vunpack.c.l.b16 %v3182
        %v3479 = vpack.c.b16 %v3478, %v3478
        %v3480 = vrot.slane %v3287, 1
        %v3481 = vrot.slane %v3267, 1
        %v3482 = vsel %vm1893, %v3480, %v3481
        %v3483 = vrot.slane %v3268, 1
        %v3484 = vsel %vm1893, %v3481, %v3483
        %v3485 = vrot.slane %v3269, 1
        %v3486 = vsel %vm1893, %v3483, %v3485
        %v3487 = vrot.slane %v3270, 1
        %v3488 = vsel %vm1893, %v3485, %v3487
        %v3489 = vrot.slane %v3271, 1
        %v3490 = vsel %vm1893, %v3487, %v3489
        %v3491 = vrot.slane %v3272, 1
        %v3492 = vsel %vm1893, %v3489, %v3491
        %v3493 = vrot.slane %v3273, 1
        %v3494 = vsel %vm1893, %v3491, %v3493
        %v3495 = vrot.slane %v3274, 1
        %v3496 = vsel %vm1893, %v3493, %v3495
        %v3497 = vrot.slane %v3275, 1
        %v3498 = vsel %vm1893, %v3495, %v3497
        %v3499 = vrot.slane %v3276, 1
        %v3500 = vsel %vm1893, %v3497, %v3499
        %v3501 = vrot.slane %v3277, 1
        %v3502 = vsel %vm1893, %v3499, %v3501
        %v3503 = vrot.slane %v3278, 1
        %v3504 = vsel %vm1893, %v3501, %v3503
        %v3505 = vrot.slane %v3279, 1
        %v3506 = vsel %vm1893, %v3503, %v3505
        %v3507 = vrot.slane %v3280, 1
        %v3508 = vsel %vm1893, %v3505, %v3507
        %v3509 = vrot.slane %v3281, 1
        %v3510 = vsel %vm1893, %v3507, %v3509
        %v3511 = vrot.slane %v3282, 1
        %v3512 = vsel %vm1893, %v3509, %v3511
        %v3513 = vrot.slane %v3283, 1
        %v3514 = vsel %vm1893, %v3511, %v3513
        %v3515 = vrot.slane %v3479, 1
        %v3516 = vsel %vm1893, %v3513, %v3515
        %3517 = vrot.lane.b32.xlu0 %v3482, 64
        %v3518 = vpop.permute.xlu0 %3517
        %3519 = vrot.lane.b32.xlu0 %v3484, 64
        %v3520 = vpop.permute.xlu0 %3519
        %3521 = vrot.lane.b32.xlu0 %v3486, 64
        %v3522 = vpop.permute.xlu0 %3521
        %3523 = vrot.lane.b32.xlu0 %v3488, 64
        %v3524 = vpop.permute.xlu0 %3523
        %3525 = vrot.lane.b32.xlu0 %v3490, 64
        %v3526 = vpop.permute.xlu0 %3525
        %3527 = vrot.lane.b32.xlu0 %v3492, 64
        %v3528 = vpop.permute.xlu0 %3527
        %3529 = vrot.lane.b32.xlu0 %v3494, 64
        %v3530 = vpop.permute.xlu0 %3529
        %3531 = vrot.lane.b32.xlu0 %v3496, 64
        %v3532 = vpop.permute.xlu0 %3531
        %3533 = vrot.lane.b32.xlu0 %v3498, 64
        %v3534 = vpop.permute.xlu0 %3533
        %3535 = vrot.lane.b32.xlu0 %v3500, 64
        %v3536 = vpop.permute.xlu0 %3535
        %3537 = vrot.lane.b32.xlu0 %v3502, 64
        %v3538 = vpop.permute.xlu0 %3537
        %3539 = vrot.lane.b32.xlu0 %v3504, 64
        %v3540 = vpop.permute.xlu0 %3539
        %3541 = vrot.lane.b32.xlu0 %v3506, 64
        %v3542 = vpop.permute.xlu0 %3541
        %3543 = vrot.lane.b32.xlu0 %v3508, 64
        %v3544 = vpop.permute.xlu0 %3543
        %3545 = vrot.lane.b32.xlu0 %v3510, 64
        %v3546 = vpop.permute.xlu0 %3545
        %3547 = vrot.lane.b32.xlu0 %v3512, 64
        %v3548 = vpop.permute.xlu0 %3547
        %3549 = vrot.lane.b32.xlu0 %v3514, 64
        %v3550 = vpop.permute.xlu0 %3549
        %3551 = vrot.lane.b32.xlu0 %v3516, 64
        %v3552 = vpop.permute.xlu0 %3551
        %3553 = vrot.lane.b32.xlu0 %v3515, 64
        %v3554 = vpop.permute.xlu0 %3553
        %v3558 = vunpack.c.l.b16 %v3183
        %v3559 = vunpack.c.l.b16 %v3184
        %v3560 = vunpack.c.l.b16 %v3185
        %v3561 = vpack.c.b16 %v3232, %v3558
        %v3562 = vpack.c.b16 %v3559, %v3478
        %v3563 = vpack.c.b16 %v3560, %v3560
        %v3564 = vrot.slane %v3561, 1
        %v3565 = vsel %vm1893, %v3564, %v3483
        %v3566 = vrot.slane %v3562, 1
        %v3567 = vsel %vm1893, %v3513, %v3566
        %v3568 = vrot.slane %v3563, 1
        %v3569 = vsel %vm1893, %v3566, %v3568
        %3570 = vrot.lane.b32.xlu0 %v3565, 96
        %v3571 = vpop.permute.xlu0 %3570
        %3572 = vrot.lane.b32.xlu0 %v3486, 96
        %v3573 = vpop.permute.xlu0 %3572
        %3574 = vrot.lane.b32.xlu0 %v3488, 96
        %v3575 = vpop.permute.xlu0 %3574
        %3576 = vrot.lane.b32.xlu0 %v3490, 96
        %v3577 = vpop.permute.xlu0 %3576
        %3578 = vrot.lane.b32.xlu0 %v3492, 96
        %v3579 = vpop.permute.xlu0 %3578
        %3580 = vrot.lane.b32.xlu0 %v3494, 96
        %v3581 = vpop.permute.xlu0 %3580
        %3582 = vrot.lane.b32.xlu0 %v3496, 96
        %v3583 = vpop.permute.xlu0 %3582
        %3584 = vrot.lane.b32.xlu0 %v3498, 96
        %v3585 = vpop.permute.xlu0 %3584
        %3586 = vrot.lane.b32.xlu0 %v3500, 96
        %v3587 = vpop.permute.xlu0 %3586
        %3588 = vrot.lane.b32.xlu0 %v3502, 96
        %v3589 = vpop.permute.xlu0 %3588
        %3590 = vrot.lane.b32.xlu0 %v3504, 96
        %v3591 = vpop.permute.xlu0 %3590
        %3592 = vrot.lane.b32.xlu0 %v3506, 96
        %v3593 = vpop.permute.xlu0 %3592
        %3594 = vrot.lane.b32.xlu0 %v3508, 96
        %v3595 = vpop.permute.xlu0 %3594
        %3596 = vrot.lane.b32.xlu0 %v3510, 96
        %v3597 = vpop.permute.xlu0 %3596
        %3598 = vrot.lane.b32.xlu0 %v3512, 96
        %v3599 = vpop.permute.xlu0 %3598
        %3600 = vrot.lane.b32.xlu0 %v3514, 96
        %v3601 = vpop.permute.xlu0 %3600
        %3602 = vrot.lane.b32.xlu0 %v3567, 96
        %v3603 = vpop.permute.xlu0 %3602
        %3604 = vrot.lane.b32.xlu0 %v3569, 96
        %v3605 = vpop.permute.xlu0 %3604
        %3606 = vrot.lane.b32.xlu0 %v3568, 96
        %v3607 = vpop.permute.xlu0 %3606
        %v3608 = vpack.c.b16 %v3233, %v3232
        %v3609 = vpack.c.b16 %v3235, %v3234
        %v3610 = vpack.c.b16 %v3237, %v3236
        %v3611 = vpack.c.b16 %v3239, %v3238
        %v3612 = vpack.c.b16 %v3241, %v3240
        %v3613 = vpack.c.b16 %v3243, %v3242
        %v3614 = vpack.c.b16 %v3245, %v3244
        %v3615 = vpack.c.b16 %v3247, %v3246
        %v3616 = vpack.c.b16 %v3249, %v3248
        %v3617 = vpack.c.b16 %v3251, %v3250
        %v3618 = vpack.c.b16 %v3253, %v3252
        %v3619 = vpack.c.b16 %v3255, %v3254
        %v3620 = vpack.c.b16 %v3257, %v3256
        %v3621 = vpack.c.b16 %v3259, %v3258
        %v3622 = vpack.c.b16 %v3261, %v3260
        %v3623 = vpack.c.b16 %v3263, %v3262
        %v3624 = vpack.c.b16 %v3478, %v3264
        %v3625 = vpack.c.b16 %v3560, %v3559
        %vm3626 = vsmask.f32 2304
        %v3628 = vshrl.u32 %v3608, 16
        %v3630 = vrot.slane %v3628, 5
        %v3631 = vshll.u32 %v3608, 16
        %v3633 = vrot.slane %v3631, 6
        %v3634 = vor.u32 %v3630, %v3633
        %v3636 = vshrl.u32 %v3609, 16
        %v3638 = vrot.slane %v3636, 5
        %v3639 = vshll.u32 %v3609, 16
        %v3641 = vrot.slane %v3639, 6
        %v3642 = vor.u32 %v3638, %v3641
        %v3643 = vsel %vm3626, %v3634, %v3642
        %v3645 = vshrl.u32 %v3610, 16
        %v3647 = vrot.slane %v3645, 5
        %v3648 = vshll.u32 %v3610, 16
        %v3650 = vrot.slane %v3648, 6
        %v3651 = vor.u32 %v3647, %v3650
        %v3652 = vsel %vm3626, %v3642, %v3651
        %v3654 = vshrl.u32 %v3611, 16
        %v3656 = vrot.slane %v3654, 5
        %v3657 = vshll.u32 %v3611, 16
        %v3659 = vrot.slane %v3657, 6
        %v3660 = vor.u32 %v3656, %v3659
        %v3661 = vsel %vm3626, %v3651, %v3660
        %v3663 = vshrl.u32 %v3612, 16
        %v3665 = vrot.slane %v3663, 5
        %v3666 = vshll.u32 %v3612, 16
        %v3668 = vrot.slane %v3666, 6
        %v3669 = vor.u32 %v3665, %v3668
        %v3670 = vsel %vm3626, %v3660, %v3669
        %v3672 = vshrl.u32 %v3613, 16
        %v3674 = vrot.slane %v3672, 5
        %v3675 = vshll.u32 %v3613, 16
        %v3677 = vrot.slane %v3675, 6
        %v3678 = vor.u32 %v3674, %v3677
        %v3679 = vsel %vm3626, %v3669, %v3678
        %v3681 = vshrl.u32 %v3614, 16
        %v3683 = vrot.slane %v3681, 5
        %v3684 = vshll.u32 %v3614, 16
        %v3686 = vrot.slane %v3684, 6
        %v3687 = vor.u32 %v3683, %v3686
        %v3688 = vsel %vm3626, %v3678, %v3687
        %v3690 = vshrl.u32 %v3615, 16
        %v3692 = vrot.slane %v3690, 5
        %v3693 = vshll.u32 %v3615, 16
        %v3695 = vrot.slane %v3693, 6
        %v3696 = vor.u32 %v3692, %v3695
        %v3697 = vsel %vm3626, %v3687, %v3696
        %v3699 = vshrl.u32 %v3616, 16
        %v3701 = vrot.slane %v3699, 5
        %v3702 = vshll.u32 %v3616, 16
        %v3704 = vrot.slane %v3702, 6
        %v3705 = vor.u32 %v3701, %v3704
        %v3706 = vsel %vm3626, %v3696, %v3705
        %v3708 = vshrl.u32 %v3617, 16
        %v3710 = vrot.slane %v3708, 5
        %v3711 = vshll.u32 %v3617, 16
        %v3713 = vrot.slane %v3711, 6
        %v3714 = vor.u32 %v3710, %v3713
        %v3715 = vsel %vm3626, %v3705, %v3714
        %v3717 = vshrl.u32 %v3618, 16
        %v3719 = vrot.slane %v3717, 5
        %v3720 = vshll.u32 %v3618, 16
        %v3722 = vrot.slane %v3720, 6
        %v3723 = vor.u32 %v3719, %v3722
        %v3724 = vsel %vm3626, %v3714, %v3723
        %v3726 = vshrl.u32 %v3619, 16
        %v3728 = vrot.slane %v3726, 5
        %v3729 = vshll.u32 %v3619, 16
        %v3731 = vrot.slane %v3729, 6
        %v3732 = vor.u32 %v3728, %v3731
        %v3733 = vsel %vm3626, %v3723, %v3732
        %v3735 = vshrl.u32 %v3620, 16
        %v3737 = vrot.slane %v3735, 5
        %v3738 = vshll.u32 %v3620, 16
        %v3740 = vrot.slane %v3738, 6
        %v3741 = vor.u32 %v3737, %v3740
        %v3742 = vsel %vm3626, %v3732, %v3741
        %v3744 = vshrl.u32 %v3621, 16
        %v3746 = vrot.slane %v3744, 5
        %v3747 = vshll.u32 %v3621, 16
        %v3749 = vrot.slane %v3747, 6
        %v3750 = vor.u32 %v3746, %v3749
        %v3751 = vsel %vm3626, %v3741, %v3750
        %v3753 = vshrl.u32 %v3622, 16
        %v3755 = vrot.slane %v3753, 5
        %v3756 = vshll.u32 %v3622, 16
        %v3758 = vrot.slane %v3756, 6
        %v3759 = vor.u32 %v3755, %v3758
        %v3760 = vsel %vm3626, %v3750, %v3759
        %v3762 = vshrl.u32 %v3623, 16
        %v3764 = vrot.slane %v3762, 5
        %v3765 = vshll.u32 %v3623, 16
        %v3767 = vrot.slane %v3765, 6
        %v3768 = vor.u32 %v3764, %v3767
        %v3769 = vsel %vm3626, %v3759, %v3768
        %v3771 = vshrl.u32 %v3624, 16
        %v3773 = vrot.slane %v3771, 5
        %v3774 = vshll.u32 %v3624, 16
        %v3776 = vrot.slane %v3774, 6
        %v3777 = vor.u32 %v3773, %v3776
        %v3778 = vsel %vm3626, %v3768, %v3777
        %v3780 = vshrl.u32 %v3625, 16
        %v3782 = vrot.slane %v3780, 5
        %v3783 = vshll.u32 %v3625, 16
        %v3785 = vrot.slane %v3783, 6
        %v3786 = vor.u32 %v3782, %v3785
        %v3787 = vsel %vm3626, %v3777, %v3786
        %v3789 = vunpack.c.l.b16 %v3186
        %v3790 = vpack.c.b16 %v3789, %v3789
        %vm3791 = vcmask 1041408
        %v3792 = vrot.slane %v3608, 6
        %v3793 = vrot.slane %v3609, 6
        %v3794 = vsel %vm3791, %v3792, %v3793
        %v3795 = vrot.slane %v3610, 6
        %v3796 = vsel %vm3791, %v3793, %v3795
        %v3797 = vrot.slane %v3611, 6
        %v3798 = vsel %vm3791, %v3795, %v3797
        %v3799 = vrot.slane %v3612, 6
        %v3800 = vsel %vm3791, %v3797, %v3799
        %v3801 = vrot.slane %v3613, 6
        %v3802 = vsel %vm3791, %v3799, %v3801
        %v3803 = vrot.slane %v3614, 6
        %v3804 = vsel %vm3791, %v3801, %v3803
        %v3805 = vrot.slane %v3615, 6
        %v3806 = vsel %vm3791, %v3803, %v3805
        %v3807 = vrot.slane %v3616, 6
        %v3808 = vsel %vm3791, %v3805, %v3807
        %v3809 = vrot.slane %v3617, 6
        %v3810 = vsel %vm3791, %v3807, %v3809
        %v3811 = vrot.slane %v3618, 6
        %v3812 = vsel %vm3791, %v3809, %v3811
        %v3813 = vrot.slane %v3619, 6
        %v3814 = vsel %vm3791, %v3811, %v3813
        %v3815 = vrot.slane %v3620, 6
        %v3816 = vsel %vm3791, %v3813, %v3815
        %v3817 = vrot.slane %v3621, 6
        %v3818 = vsel %vm3791, %v3815, %v3817
        %v3819 = vrot.slane %v3622, 6
        %v3820 = vsel %vm3791, %v3817, %v3819
        %v3821 = vrot.slane %v3623, 6
        %v3822 = vsel %vm3791, %v3819, %v3821
        %v3823 = vrot.slane %v3624, 6
        %v3824 = vsel %vm3791, %v3821, %v3823
        %v3825 = vrot.slane %v3625, 6
        %v3826 = vsel %vm3791, %v3823, %v3825
        %v3827 = vrot.slane %v3790, 6
        %v3828 = vsel %vm3791, %v3825, %v3827
        %3829 = vrot.lane.b32.xlu0 %v3792, 32
        %v3830 = vpop.permute.xlu0 %3829
        %3831 = vrot.lane.b32.xlu0 %v3794, 32
        %v3832 = vpop.permute.xlu0 %3831
        %3833 = vrot.lane.b32.xlu0 %v3796, 32
        %v3834 = vpop.permute.xlu0 %3833
        %3835 = vrot.lane.b32.xlu0 %v3798, 32
        %v3836 = vpop.permute.xlu0 %3835
        %3837 = vrot.lane.b32.xlu0 %v3800, 32
        %v3838 = vpop.permute.xlu0 %3837
        %3839 = vrot.lane.b32.xlu0 %v3802, 32
        %v3840 = vpop.permute.xlu0 %3839
        %3841 = vrot.lane.b32.xlu0 %v3804, 32
        %v3842 = vpop.permute.xlu0 %3841
        %3843 = vrot.lane.b32.xlu0 %v3806, 32
        %v3844 = vpop.permute.xlu0 %3843
        %3845 = vrot.lane.b32.xlu0 %v3808, 32
        %v3846 = vpop.permute.xlu0 %3845
        %3847 = vrot.lane.b32.xlu0 %v3810, 32
        %v3848 = vpop.permute.xlu0 %3847
        %3849 = vrot.lane.b32.xlu0 %v3812, 32
        %v3850 = vpop.permute.xlu0 %3849
        %3851 = vrot.lane.b32.xlu0 %v3814, 32
        %v3852 = vpop.permute.xlu0 %3851
        %3853 = vrot.lane.b32.xlu0 %v3816, 32
        %v3854 = vpop.permute.xlu0 %3853
        %3855 = vrot.lane.b32.xlu0 %v3818, 32
        %v3856 = vpop.permute.xlu0 %3855
        %3857 = vrot.lane.b32.xlu0 %v3820, 32
        %v3858 = vpop.permute.xlu0 %3857
        %3859 = vrot.lane.b32.xlu0 %v3822, 32
        %v3860 = vpop.permute.xlu0 %3859
        %3861 = vrot.lane.b32.xlu0 %v3824, 32
        %v3862 = vpop.permute.xlu0 %3861
        %3863 = vrot.lane.b32.xlu0 %v3826, 32
        %v3864 = vpop.permute.xlu0 %3863
        %3865 = vrot.lane.b32.xlu0 %v3828, 32
        %v3866 = vpop.permute.xlu0 %3865
        %v3870 = vunpack.c.l.b16 %v3187
        %v3871 = vunpack.c.l.b16 %v3188
        %v3872 = vunpack.c.l.b16 %v3189
        %v3873 = vpack.c.b16 %v3871, %v3870
        %v3874 = vpack.c.b16 %v3872, %v3872
        %v3875 = vrot.slane %v3873, 6
        %v3876 = vsel %vm3791, %v3825, %v3875
        %v3877 = vrot.slane %v3874, 6
        %v3878 = vsel %vm3791, %v3875, %v3877
        %3879 = vrot.lane.b32.xlu0 %v3793, 64
        %v3880 = vpop.permute.xlu0 %3879
        %3881 = vrot.lane.b32.xlu0 %v3796, 64
        %v3882 = vpop.permute.xlu0 %3881
        %3883 = vrot.lane.b32.xlu0 %v3798, 64
        %v3884 = vpop.permute.xlu0 %3883
        %3885 = vrot.lane.b32.xlu0 %v3800, 64
        %v3886 = vpop.permute.xlu0 %3885
        %3887 = vrot.lane.b32.xlu0 %v3802, 64
        %v3888 = vpop.permute.xlu0 %3887
        %3889 = vrot.lane.b32.xlu0 %v3804, 64
        %v3890 = vpop.permute.xlu0 %3889
        %3891 = vrot.lane.b32.xlu0 %v3806, 64
        %v3892 = vpop.permute.xlu0 %3891
        %3893 = vrot.lane.b32.xlu0 %v3808, 64
        %v3894 = vpop.permute.xlu0 %3893
        %3895 = vrot.lane.b32.xlu0 %v3810, 64
        %v3896 = vpop.permute.xlu0 %3895
        %3897 = vrot.lane.b32.xlu0 %v3812, 64
        %v3898 = vpop.permute.xlu0 %3897
        %3899 = vrot.lane.b32.xlu0 %v3814, 64
        %v3900 = vpop.permute.xlu0 %3899
        %3901 = vrot.lane.b32.xlu0 %v3816, 64
        %v3902 = vpop.permute.xlu0 %3901
        %3903 = vrot.lane.b32.xlu0 %v3818, 64
        %v3904 = vpop.permute.xlu0 %3903
        %3905 = vrot.lane.b32.xlu0 %v3820, 64
        %v3906 = vpop.permute.xlu0 %3905
        %3907 = vrot.lane.b32.xlu0 %v3822, 64
        %v3908 = vpop.permute.xlu0 %3907
        %3909 = vrot.lane.b32.xlu0 %v3824, 64
        %v3910 = vpop.permute.xlu0 %3909
        %3911 = vrot.lane.b32.xlu0 %v3826, 64
        %v3912 = vpop.permute.xlu0 %3911
        %3913 = vrot.lane.b32.xlu0 %v3876, 64
        %v3914 = vpop.permute.xlu0 %3913
        %3915 = vrot.lane.b32.xlu0 %v3878, 64
        %v3916 = vpop.permute.xlu0 %3915
        %v3918 = vunpack.c.l.b16 %v3190
        %v3919 = vpack.c.b16 %v3235, %v3918
        %vm3920 = vsmask.f32 1280
        %v3922 = vshrl.u32 %v3919, 16
        %v3924 = vrot.slane %v3922, 6
        %v3925 = vshll.u32 %v3919, 16
        %v3927 = vrot.slane %v3925, 7
        %v3928 = vor.u32 %v3924, %v3927
        %v3929 = vrot.slane %v3645, 6
        %v3930 = vrot.slane %v3648, 7
        %v3931 = vor.u32 %v3929, %v3930
        %v3932 = vsel %vm3920, %v3928, %v3931
        %v3933 = vrot.slane %v3654, 6
        %v3934 = vrot.slane %v3657, 7
        %v3935 = vor.u32 %v3933, %v3934
        %v3936 = vsel %vm3920, %v3931, %v3935
        %v3937 = vrot.slane %v3663, 6
        %v3938 = vrot.slane %v3666, 7
        %v3939 = vor.u32 %v3937, %v3938
        %v3940 = vsel %vm3920, %v3935, %v3939
        %v3941 = vrot.slane %v3672, 6
        %v3942 = vrot.slane %v3675, 7
        %v3943 = vor.u32 %v3941, %v3942
        %v3944 = vsel %vm3920, %v3939, %v3943
        %v3945 = vrot.slane %v3681, 6
        %v3946 = vrot.slane %v3684, 7
        %v3947 = vor.u32 %v3945, %v3946
        %v3948 = vsel %vm3920, %v3943, %v3947
        %v3949 = vrot.slane %v3690, 6
        %v3950 = vrot.slane %v3693, 7
        %v3951 = vor.u32 %v3949, %v3950
        %v3952 = vsel %vm3920, %v3947, %v3951
        %v3953 = vrot.slane %v3699, 6
        %v3954 = vrot.slane %v3702, 7
        %v3955 = vor.u32 %v3953, %v3954
        %v3956 = vsel %vm3920, %v3951, %v3955
        %v3957 = vrot.slane %v3708, 6
        %v3958 = vrot.slane %v3711, 7
        %v3959 = vor.u32 %v3957, %v3958
        %v3960 = vsel %vm3920, %v3955, %v3959
        %v3961 = vrot.slane %v3717, 6
        %v3962 = vrot.slane %v3720, 7
        %v3963 = vor.u32 %v3961, %v3962
        %v3964 = vsel %vm3920, %v3959, %v3963
        %v3965 = vrot.slane %v3726, 6
        %v3966 = vrot.slane %v3729, 7
        %v3967 = vor.u32 %v3965, %v3966
        %v3968 = vsel %vm3920, %v3963, %v3967
        %v3969 = vrot.slane %v3735, 6
        %v3970 = vrot.slane %v3738, 7
        %v3971 = vor.u32 %v3969, %v3970
        %v3972 = vsel %vm3920, %v3967, %v3971
        %v3973 = vrot.slane %v3744, 6
        %v3974 = vrot.slane %v3747, 7
        %v3975 = vor.u32 %v3973, %v3974
        %v3976 = vsel %vm3920, %v3971, %v3975
        %v3977 = vrot.slane %v3753, 6
        %v3978 = vrot.slane %v3756, 7
        %v3979 = vor.u32 %v3977, %v3978
        %v3980 = vsel %vm3920, %v3975, %v3979
        %v3981 = vrot.slane %v3762, 6
        %v3982 = vrot.slane %v3765, 7
        %v3983 = vor.u32 %v3981, %v3982
        %v3984 = vsel %vm3920, %v3979, %v3983
        %v3985 = vrot.slane %v3771, 6
        %v3986 = vrot.slane %v3774, 7
        %v3987 = vor.u32 %v3985, %v3986
        %v3988 = vsel %vm3920, %v3983, %v3987
        %v3989 = vrot.slane %v3780, 6
        %v3990 = vrot.slane %v3783, 7
        %v3991 = vor.u32 %v3989, %v3990
        %v3992 = vsel %vm3920, %v3987, %v3991
        %v3994 = vshrl.u32 %v3873, 16
        %v3996 = vrot.slane %v3994, 6
        %v3997 = vshll.u32 %v3873, 16
        %v3999 = vrot.slane %v3997, 7
        %v4000 = vor.u32 %v3996, %v3999
        %v4001 = vsel %vm3920, %v3991, %v4000
        %v4003 = vshrl.u32 %v3874, 16
        %v4005 = vrot.slane %v4003, 6
        %v4006 = vshll.u32 %v3874, 16
        %v4008 = vrot.slane %v4006, 7
        %v4009 = vor.u32 %v4005, %v4008
        %v4010 = vsel %vm3920, %v4000, %v4009
        %4011 = vrot.lane.b32.xlu0 %v3928, 96
        %v4012 = vpop.permute.xlu0 %4011
        %4013 = vrot.lane.b32.xlu0 %v3932, 96
        %v4014 = vpop.permute.xlu0 %4013
        %4015 = vrot.lane.b32.xlu0 %v3936, 96
        %v4016 = vpop.permute.xlu0 %4015
        %4017 = vrot.lane.b32.xlu0 %v3940, 96
        %v4018 = vpop.permute.xlu0 %4017
        %4019 = vrot.lane.b32.xlu0 %v3944, 96
        %v4020 = vpop.permute.xlu0 %4019
        %4021 = vrot.lane.b32.xlu0 %v3948, 96
        %v4022 = vpop.permute.xlu0 %4021
        %4023 = vrot.lane.b32.xlu0 %v3952, 96
        %v4024 = vpop.permute.xlu0 %4023
        %4025 = vrot.lane.b32.xlu0 %v3956, 96
        %v4026 = vpop.permute.xlu0 %4025
        %4027 = vrot.lane.b32.xlu0 %v3960, 96
        %v4028 = vpop.permute.xlu0 %4027
        %4029 = vrot.lane.b32.xlu0 %v3964, 96
        %v4030 = vpop.permute.xlu0 %4029
        %4031 = vrot.lane.b32.xlu0 %v3968, 96
        %v4032 = vpop.permute.xlu0 %4031
        %4033 = vrot.lane.b32.xlu0 %v3972, 96
        %v4034 = vpop.permute.xlu0 %4033
        %4035 = vrot.lane.b32.xlu0 %v3976, 96
        %v4036 = vpop.permute.xlu0 %4035
        %4037 = vrot.lane.b32.xlu0 %v3980, 96
        %v4038 = vpop.permute.xlu0 %4037
        %4039 = vrot.lane.b32.xlu0 %v3984, 96
        %v4040 = vpop.permute.xlu0 %4039
        %4041 = vrot.lane.b32.xlu0 %v3988, 96
        %v4042 = vpop.permute.xlu0 %4041
        %4043 = vrot.lane.b32.xlu0 %v3992, 96
        %v4044 = vpop.permute.xlu0 %4043
        %4045 = vrot.lane.b32.xlu0 %v4001, 96
        %v4046 = vpop.permute.xlu0 %4045
        %4047 = vrot.lane.b32.xlu0 %v4010, 96
        %v4048 = vpop.permute.xlu0 %4047
        %v4050 = vunpack.c.l.b16 %v3191
        %v4051 = vpack.c.b16 %v4050, %v4050
        %vm4052 = vcmask 1040384
        %v4053 = vrot.slane %v3919, 7
        %v4054 = vrot.slane %v3610, 7
        %v4055 = vsel %vm4052, %v4053, %v4054
        %v4056 = vrot.slane %v3611, 7
        %v4057 = vsel %vm4052, %v4054, %v4056
        %v4058 = vrot.slane %v3612, 7
        %v4059 = vsel %vm4052, %v4056, %v4058
        %v4060 = vrot.slane %v3613, 7
        %v4061 = vsel %vm4052, %v4058, %v4060
        %v4062 = vrot.slane %v3614, 7
        %v4063 = vsel %vm4052, %v4060, %v4062
        %v4064 = vrot.slane %v3615, 7
        %v4065 = vsel %vm4052, %v4062, %v4064
        %v4066 = vrot.slane %v3616, 7
        %v4067 = vsel %vm4052, %v4064, %v4066
        %v4068 = vrot.slane %v3617, 7
        %v4069 = vsel %vm4052, %v4066, %v4068
        %v4070 = vrot.slane %v3618, 7
        %v4071 = vsel %vm4052, %v4068, %v4070
        %v4072 = vrot.slane %v3619, 7
        %v4073 = vsel %vm4052, %v4070, %v4072
        %v4074 = vrot.slane %v3620, 7
        %v4075 = vsel %vm4052, %v4072, %v4074
        %v4076 = vrot.slane %v3621, 7
        %v4077 = vsel %vm4052, %v4074, %v4076
        %v4078 = vrot.slane %v3622, 7
        %v4079 = vsel %vm4052, %v4076, %v4078
        %v4080 = vrot.slane %v3623, 7
        %v4081 = vsel %vm4052, %v4078, %v4080
        %v4082 = vrot.slane %v3624, 7
        %v4083 = vsel %vm4052, %v4080, %v4082
        %v4084 = vrot.slane %v3625, 7
        %v4085 = vsel %vm4052, %v4082, %v4084
        %v4086 = vrot.slane %v3873, 7
        %v4087 = vsel %vm4052, %v4084, %v4086
        %v4088 = vrot.slane %v4051, 7
        %v4089 = vsel %vm4052, %v4086, %v4088
        %v4092 = vsel %vm2562, %v3266, %v3440
        %v4094 = vsel %vm2562, %v3267, %v3442
        %v4096 = vsel %vm2562, %v3268, %v3444
        %v4098 = vsel %vm2562, %v3269, %v3446
        %v4100 = vsel %vm2562, %v3270, %v3448
        %v4102 = vsel %vm2562, %v3271, %v3450
        %v4104 = vsel %vm2562, %v3272, %v3452
        %v4106 = vsel %vm2562, %v3273, %v3454
        %v4108 = vsel %vm2562, %v3274, %v3456
        %v4110 = vsel %vm2562, %v3275, %v3458
        %v4112 = vsel %vm2562, %v3276, %v3460
        %v4114 = vsel %vm2562, %v3277, %v3462
        %v4116 = vsel %vm2562, %v3278, %v3464
        %v4118 = vsel %vm2562, %v3279, %v3466
        %v4120 = vsel %vm2562, %v3280, %v3468
        %v4122 = vsel %vm2562, %v3281, %v3470
        %v4124 = vsel %vm2562, %v3282, %v3472
        %v4126 = vsel %vm2562, %v3283, %v3474
        %v4128 = vsel %vm2562, %v3284, %v3476
        %v4130 = vsel %vm2710, %v4092, %v3518
        %v4132 = vsel %vm2710, %v4094, %v3520
        %v4134 = vsel %vm2710, %v4096, %v3522
        %v4136 = vsel %vm2710, %v4098, %v3524
        %v4138 = vsel %vm2710, %v4100, %v3526
        %v4140 = vsel %vm2710, %v4102, %v3528
        %v4142 = vsel %vm2710, %v4104, %v3530
        %v4144 = vsel %vm2710, %v4106, %v3532
        %v4146 = vsel %vm2710, %v4108, %v3534
        %v4148 = vsel %vm2710, %v4110, %v3536
        %v4150 = vsel %vm2710, %v4112, %v3538
        %v4152 = vsel %vm2710, %v4114, %v3540
        %v4154 = vsel %vm2710, %v4116, %v3542
        %v4156 = vsel %vm2710, %v4118, %v3544
        %v4158 = vsel %vm2710, %v4120, %v3546
        %v4160 = vsel %vm2710, %v4122, %v3548
        %v4162 = vsel %vm2710, %v4124, %v3550
        %v4164 = vsel %vm2710, %v4126, %v3552
        %v4166 = vsel %vm2710, %v4128, %v3554
        %vm4167 = vcmask 785408
        %v4169 = vsel %vm4167, %v4130, %v3571
        %v4171 = vsel %vm4167, %v4132, %v3573
        %v4173 = vsel %vm4167, %v4134, %v3575
        %v4175 = vsel %vm4167, %v4136, %v3577
        %v4177 = vsel %vm4167, %v4138, %v3579
        %v4179 = vsel %vm4167, %v4140, %v3581
        %v4181 = vsel %vm4167, %v4142, %v3583
        %v4183 = vsel %vm4167, %v4144, %v3585
        %v4185 = vsel %vm4167, %v4146, %v3587
        %v4187 = vsel %vm4167, %v4148, %v3589
        %v4189 = vsel %vm4167, %v4150, %v3591
        %v4191 = vsel %vm4167, %v4152, %v3593
        %v4193 = vsel %vm4167, %v4154, %v3595
        %v4195 = vsel %vm4167, %v4156, %v3597
        %v4197 = vsel %vm4167, %v4158, %v3599
        %v4199 = vsel %vm4167, %v4160, %v3601
        %v4201 = vsel %vm4167, %v4162, %v3603
        %v4203 = vsel %vm4167, %v4164, %v3605
        %v4205 = vsel %vm4167, %v4166, %v3607
        %v4208 = vsel %vm2562, %v3634, %v3830
        %v4211 = vsel %vm2562, %v3643, %v3832
        %v4214 = vsel %vm2562, %v3652, %v3834
        %v4217 = vsel %vm2562, %v3661, %v3836
        %v4220 = vsel %vm2562, %v3670, %v3838
        %v4223 = vsel %vm2562, %v3679, %v3840
        %v4226 = vsel %vm2562, %v3688, %v3842
        %v4229 = vsel %vm2562, %v3697, %v3844
        %v4232 = vsel %vm2562, %v3706, %v3846
        %v4235 = vsel %vm2562, %v3715, %v3848
        %v4238 = vsel %vm2562, %v3724, %v3850
        %v4241 = vsel %vm2562, %v3733, %v3852
        %v4244 = vsel %vm2562, %v3742, %v3854
        %v4247 = vsel %vm2562, %v3751, %v3856
        %v4250 = vsel %vm2562, %v3760, %v3858
        %v4253 = vsel %vm2562, %v3769, %v3860
        %v4256 = vsel %vm2562, %v3778, %v3862
        %v4259 = vsel %vm2562, %v3787, %v3864
        %v4262 = vsel %vm2562, %v3786, %v3866
        %v4264 = vsel %vm2710, %v4208, %v3880
        %v4266 = vsel %vm2710, %v4211, %v3882
        %v4268 = vsel %vm2710, %v4214, %v3884
        %v4270 = vsel %vm2710, %v4217, %v3886
        %v4272 = vsel %vm2710, %v4220, %v3888
        %v4274 = vsel %vm2710, %v4223, %v3890
        %v4276 = vsel %vm2710, %v4226, %v3892
        %v4278 = vsel %vm2710, %v4229, %v3894
        %v4280 = vsel %vm2710, %v4232, %v3896
        %v4282 = vsel %vm2710, %v4235, %v3898
        %v4284 = vsel %vm2710, %v4238, %v3900
        %v4286 = vsel %vm2710, %v4241, %v3902
        %v4288 = vsel %vm2710, %v4244, %v3904
        %v4290 = vsel %vm2710, %v4247, %v3906
        %v4292 = vsel %vm2710, %v4250, %v3908
        %v4294 = vsel %vm2710, %v4253, %v3910
        %v4296 = vsel %vm2710, %v4256, %v3912
        %v4298 = vsel %vm2710, %v4259, %v3914
        %v4300 = vsel %vm2710, %v4262, %v3916
        %v4302 = vsel %vm4167, %v4264, %v4012
        %v4304 = vsel %vm4167, %v4266, %v4014
        %v4306 = vsel %vm4167, %v4268, %v4016
        %v4308 = vsel %vm4167, %v4270, %v4018
        %v4310 = vsel %vm4167, %v4272, %v4020
        %v4312 = vsel %vm4167, %v4274, %v4022
        %v4314 = vsel %vm4167, %v4276, %v4024
        %v4316 = vsel %vm4167, %v4278, %v4026
        %v4318 = vsel %vm4167, %v4280, %v4028
        %v4320 = vsel %vm4167, %v4282, %v4030
        %v4322 = vsel %vm4167, %v4284, %v4032
        %v4324 = vsel %vm4167, %v4286, %v4034
        %v4326 = vsel %vm4167, %v4288, %v4036
        %v4328 = vsel %vm4167, %v4290, %v4038
        %v4330 = vsel %vm4167, %v4292, %v4040
        %v4332 = vsel %vm4167, %v4294, %v4042
        %v4334 = vsel %vm4167, %v4296, %v4044
        %v4336 = vsel %vm4167, %v4298, %v4046
        %v4338 = vsel %vm4167, %v4300, %v4048
        %v4339 = vld [vmem:[%s3] sm:$0xf]
        %v4340 = vld [vmem:[%s3 + $0x4] sm:$0xf]
        %v4341 = vld [vmem:[%s3 + $0x8] sm:$0xf]
        %v4342 = vld [vmem:[%s3 + $0xc] sm:$0xf]
        %v4343 = vld [vmem:[%s3 + $0x10] sm:$0xf]
        %v4344 = vld [vmem:[%s3 + $0x14] sm:$0xf]
        %v4345 = vld [vmem:[%s3 + $0x18] sm:$0xf]
        %v4346 = vld [vmem:[%s3 + $0x1c] sm:$0xf]
        %v4347 = vld [vmem:[%s3 + $0x20] sm:$0xf]
        %v4348 = vld [vmem:[%s3 + $0x24] sm:$0xf]
        %v4349 = vld [vmem:[%s3 + $0x28] sm:$0xf]
        %v4350 = vld [vmem:[%s3 + $0x2c] sm:$0xf]
        %v4351 = vld [vmem:[%s3 + $0x30] sm:$0xf]
        %v4352 = vld [vmem:[%s3 + $0x34] sm:$0xf]
        %v4353 = vld [vmem:[%s3 + $0x38] sm:$0xf]
        %v4354 = vld [vmem:[%s3 + $0x3c] sm:$0xf]
        %v4355 = vld [vmem:[%s3 + $0x40] sm:$0xf]
        %v4356 = vld [vmem:[%s3 + $0x44] sm:$0xf]
        %v4357 = vld [vmem:[%s3 + $0x48] sm:$0xf]
        %v4358 = vld [vmem:[%s3 + $0x4c] sm:$0xf]
        %v4359 = vld [vmem:[%s3 + $0x50] sm:$0xf]
        %v4360 = vld [vmem:[%s3 + $0x54] sm:$0xf]
        %v4361 = vld [vmem:[%s3 + $0x58] sm:$0xf]
        %v4362 = vld [vmem:[%s3 + $0x5c] sm:$0xf]
        %v4363 = vld [vmem:[%s3 + $0x60] sm:$0xf]
        %v4364 = vld [vmem:[%s3 + $0x64] sm:$0xf]
        %v4365 = vld [vmem:[%s3 + $0x68] sm:$0xf]
        %v4366 = vld [vmem:[%s3 + $0x6c] sm:$0xf]
        %v4367 = vld [vmem:[%s3 + $0x70] sm:$0xf]
        %v4368 = vld [vmem:[%s3 + $0x74] sm:$0xf]
        %v4369 = vld [vmem:[%s3 + $0x78] sm:$0xf]
        %v4370 = vld [vmem:[%s3 + $0x7c] sm:$0xf]
        %v4371 = vld [vmem:[%s3 + $0x80] sm:$0xf]
        %v4372 = vld [vmem:[%s3 + $0x84] sm:$0xf]
        %v4373 = vld [vmem:[%s3 + $0x88] sm:$0xf]
        %v4374 = vld [vmem:[%s3 + $0x8c] sm:$0xf]
        %v4375 = vld [vmem:[%s4] sm:$0x1]
        %v4377 = vperm.slane %v4375, 0
        %v4379 = vshrl.u32 %v4169, 16
        %v4381 = vrot.slane %v4379, 2
        %v4382 = vshll.u32 %v4169, 16
        %v4384 = vrot.slane %v4382, 3
        %v4385 = vor.u32 %v4381, %v4384
        %v4386 = vshrl.u32 %v4171, 16
        %v4388 = vrot.slane %v4386, 2
        %v4389 = vshll.u32 %v4171, 16
        %v4391 = vrot.slane %v4389, 3
        %v4392 = vor.u32 %v4388, %v4391
        %v4393 = vsel %vm2255, %v4385, %v4392
        %v4394 = vshrl.u32 %v4302, 16
        %v4396 = vrot.slane %v4394, 2
        %v4397 = vshll.u32 %v4302, 16
        %v4399 = vrot.slane %v4397, 3
        %v4400 = vor.u32 %v4396, %v4399
        %v4401 = vshrl.u32 %v4304, 16
        %v4403 = vrot.slane %v4401, 2
        %v4404 = vshll.u32 %v4304, 16
        %v4406 = vrot.slane %v4404, 3
        %v4407 = vor.u32 %v4403, %v4406
        %v4408 = vsel %vm2255, %v4400, %v4407
        %v4410 = vshrl.u32 %v4053, 16
        %v4412 = vrot.slane %v4410, 2
        %v4413 = vshll.u32 %v4053, 16
        %v4415 = vrot.slane %v4413, 3
        %v4416 = vor.u32 %v4412, %v4415
        %v4418 = vshrl.u32 %v4055, 16
        %v4420 = vrot.slane %v4418, 2
        %v4421 = vshll.u32 %v4055, 16
        %v4423 = vrot.slane %v4421, 3
        %v4424 = vor.u32 %v4420, %v4423
        %v4425 = vsel %vm2255, %v4416, %v4424
        %v4426 = vshrl.u32 %v4173, 16
        %v4428 = vrot.slane %v4426, 2
        %v4429 = vshll.u32 %v4173, 16
        %v4431 = vrot.slane %v4429, 3
        %v4432 = vor.u32 %v4428, %v4431
        %v4433 = vsel %vm2255, %v4392, %v4432
        %v4434 = vshrl.u32 %v4306, 16
        %v4436 = vrot.slane %v4434, 2
        %v4437 = vshll.u32 %v4306, 16
        %v4439 = vrot.slane %v4437, 3
        %v4440 = vor.u32 %v4436, %v4439
        %v4441 = vsel %vm2255, %v4407, %v4440
        %v4443 = vshrl.u32 %v4057, 16
        %v4445 = vrot.slane %v4443, 2
        %v4446 = vshll.u32 %v4057, 16
        %v4448 = vrot.slane %v4446, 3
        %v4449 = vor.u32 %v4445, %v4448
        %v4450 = vsel %vm2255, %v4424, %v4449
        %v4451 = vshrl.u32 %v4175, 16
        %v4453 = vrot.slane %v4451, 2
        %v4454 = vshll.u32 %v4175, 16
        %v4456 = vrot.slane %v4454, 3
        %v4457 = vor.u32 %v4453, %v4456
        %v4458 = vsel %vm2255, %v4432, %v4457
        %v4459 = vshrl.u32 %v4308, 16
        %v4461 = vrot.slane %v4459, 2
        %v4462 = vshll.u32 %v4308, 16
        %v4464 = vrot.slane %v4462, 3
        %v4465 = vor.u32 %v4461, %v4464
        %v4466 = vsel %vm2255, %v4440, %v4465
        %v4468 = vshrl.u32 %v4059, 16
        %v4470 = vrot.slane %v4468, 2
        %v4471 = vshll.u32 %v4059, 16
        %v4473 = vrot.slane %v4471, 3
        %v4474 = vor.u32 %v4470, %v4473
        %v4475 = vsel %vm2255, %v4449, %v4474
        %v4476 = vshrl.u32 %v4177, 16
        %v4478 = vrot.slane %v4476, 2
        %v4479 = vshll.u32 %v4177, 16
        %v4481 = vrot.slane %v4479, 3
        %v4482 = vor.u32 %v4478, %v4481
        %v4483 = vsel %vm2255, %v4457, %v4482
        %v4484 = vshrl.u32 %v4310, 16
        %v4486 = vrot.slane %v4484, 2
        %v4487 = vshll.u32 %v4310, 16
        %v4489 = vrot.slane %v4487, 3
        %v4490 = vor.u32 %v4486, %v4489
        %v4491 = vsel %vm2255, %v4465, %v4490
        %v4493 = vshrl.u32 %v4061, 16
        %v4495 = vrot.slane %v4493, 2
        %v4496 = vshll.u32 %v4061, 16
        %v4498 = vrot.slane %v4496, 3
        %v4499 = vor.u32 %v4495, %v4498
        %v4500 = vsel %vm2255, %v4474, %v4499
        %v4501 = vshrl.u32 %v4179, 16
        %v4503 = vrot.slane %v4501, 2
        %v4504 = vshll.u32 %v4179, 16
        %v4506 = vrot.slane %v4504, 3
        %v4507 = vor.u32 %v4503, %v4506
        %v4508 = vsel %vm2255, %v4482, %v4507
        %v4509 = vshrl.u32 %v4312, 16
        %v4511 = vrot.slane %v4509, 2
        %v4512 = vshll.u32 %v4312, 16
        %v4514 = vrot.slane %v4512, 3
        %v4515 = vor.u32 %v4511, %v4514
        %v4516 = vsel %vm2255, %v4490, %v4515
        %v4518 = vshrl.u32 %v4063, 16
        %v4520 = vrot.slane %v4518, 2
        %v4521 = vshll.u32 %v4063, 16
        %v4523 = vrot.slane %v4521, 3
        %v4524 = vor.u32 %v4520, %v4523
        %v4525 = vsel %vm2255, %v4499, %v4524
        %v4526 = vshrl.u32 %v4181, 16
        %v4528 = vrot.slane %v4526, 2
        %v4529 = vshll.u32 %v4181, 16
        %v4531 = vrot.slane %v4529, 3
        %v4532 = vor.u32 %v4528, %v4531
        %v4533 = vsel %vm2255, %v4507, %v4532
        %v4534 = vshrl.u32 %v4314, 16
        %v4536 = vrot.slane %v4534, 2
        %v4537 = vshll.u32 %v4314, 16
        %v4539 = vrot.slane %v4537, 3
        %v4540 = vor.u32 %v4536, %v4539
        %v4541 = vsel %vm2255, %v4515, %v4540
        %v4543 = vshrl.u32 %v4065, 16
        %v4545 = vrot.slane %v4543, 2
        %v4546 = vshll.u32 %v4065, 16
        %v4548 = vrot.slane %v4546, 3
        %v4549 = vor.u32 %v4545, %v4548
        %v4550 = vsel %vm2255, %v4524, %v4549
        %v4551 = vshrl.u32 %v4183, 16
        %v4553 = vrot.slane %v4551, 2
        %v4554 = vshll.u32 %v4183, 16
        %v4556 = vrot.slane %v4554, 3
        %v4557 = vor.u32 %v4553, %v4556
        %v4558 = vsel %vm2255, %v4532, %v4557
        %v4559 = vshrl.u32 %v4316, 16
        %v4561 = vrot.slane %v4559, 2
        %v4562 = vshll.u32 %v4316, 16
        %v4564 = vrot.slane %v4562, 3
        %v4565 = vor.u32 %v4561, %v4564
        %v4566 = vsel %vm2255, %v4540, %v4565
        %v4568 = vshrl.u32 %v4067, 16
        %v4570 = vrot.slane %v4568, 2
        %v4571 = vshll.u32 %v4067, 16
        %v4573 = vrot.slane %v4571, 3
        %v4574 = vor.u32 %v4570, %v4573
        %v4575 = vsel %vm2255, %v4549, %v4574
        %v4576 = vshrl.u32 %v4185, 16
        %v4578 = vrot.slane %v4576, 2
        %v4579 = vshll.u32 %v4185, 16
        %v4581 = vrot.slane %v4579, 3
        %v4582 = vor.u32 %v4578, %v4581
        %v4583 = vsel %vm2255, %v4557, %v4582
        %v4584 = vshrl.u32 %v4318, 16
        %v4586 = vrot.slane %v4584, 2
        %v4587 = vshll.u32 %v4318, 16
        %v4589 = vrot.slane %v4587, 3
        %v4590 = vor.u32 %v4586, %v4589
        %v4591 = vsel %vm2255, %v4565, %v4590
        %v4593 = vshrl.u32 %v4069, 16
        %v4595 = vrot.slane %v4593, 2
        %v4596 = vshll.u32 %v4069, 16
        %v4598 = vrot.slane %v4596, 3
        %v4599 = vor.u32 %v4595, %v4598
        %v4600 = vsel %vm2255, %v4574, %v4599
        %v4601 = vshrl.u32 %v4187, 16
        %v4603 = vrot.slane %v4601, 2
        %v4604 = vshll.u32 %v4187, 16
        %v4606 = vrot.slane %v4604, 3
        %v4607 = vor.u32 %v4603, %v4606
        %v4608 = vsel %vm2255, %v4582, %v4607
        %v4609 = vshrl.u32 %v4320, 16
        %v4611 = vrot.slane %v4609, 2
        %v4612 = vshll.u32 %v4320, 16
        %v4614 = vrot.slane %v4612, 3
        %v4615 = vor.u32 %v4611, %v4614
        %v4616 = vsel %vm2255, %v4590, %v4615
        %v4618 = vshrl.u32 %v4071, 16
        %v4620 = vrot.slane %v4618, 2
        %v4621 = vshll.u32 %v4071, 16
        %v4623 = vrot.slane %v4621, 3
        %v4624 = vor.u32 %v4620, %v4623
        %v4625 = vsel %vm2255, %v4599, %v4624
        %v4626 = vshrl.u32 %v4189, 16
        %v4628 = vrot.slane %v4626, 2
        %v4629 = vshll.u32 %v4189, 16
        %v4631 = vrot.slane %v4629, 3
        %v4632 = vor.u32 %v4628, %v4631
        %v4633 = vsel %vm2255, %v4607, %v4632
        %v4634 = vshrl.u32 %v4322, 16
        %v4636 = vrot.slane %v4634, 2
        %v4637 = vshll.u32 %v4322, 16
        %v4639 = vrot.slane %v4637, 3
        %v4640 = vor.u32 %v4636, %v4639
        %v4641 = vsel %vm2255, %v4615, %v4640
        %v4643 = vshrl.u32 %v4073, 16
        %v4645 = vrot.slane %v4643, 2
        %v4646 = vshll.u32 %v4073, 16
        %v4648 = vrot.slane %v4646, 3
        %v4649 = vor.u32 %v4645, %v4648
        %v4650 = vsel %vm2255, %v4624, %v4649
        %v4651 = vshrl.u32 %v4191, 16
        %v4653 = vrot.slane %v4651, 2
        %v4654 = vshll.u32 %v4191, 16
        %v4656 = vrot.slane %v4654, 3
        %v4657 = vor.u32 %v4653, %v4656
        %v4658 = vsel %vm2255, %v4632, %v4657
        %v4659 = vshrl.u32 %v4324, 16
        %v4661 = vrot.slane %v4659, 2
        %v4662 = vshll.u32 %v4324, 16
        %v4664 = vrot.slane %v4662, 3
        %v4665 = vor.u32 %v4661, %v4664
        %v4666 = vsel %vm2255, %v4640, %v4665
        %v4668 = vshrl.u32 %v4075, 16
        %v4670 = vrot.slane %v4668, 2
        %v4671 = vshll.u32 %v4075, 16
        %v4673 = vrot.slane %v4671, 3
        %v4674 = vor.u32 %v4670, %v4673
        %v4675 = vsel %vm2255, %v4649, %v4674
        %v4676 = vshrl.u32 %v4193, 16
        %v4678 = vrot.slane %v4676, 2
        %v4679 = vshll.u32 %v4193, 16
        %v4681 = vrot.slane %v4679, 3
        %v4682 = vor.u32 %v4678, %v4681
        %v4683 = vsel %vm2255, %v4657, %v4682
        %v4684 = vshrl.u32 %v4326, 16
        %v4686 = vrot.slane %v4684, 2
        %v4687 = vshll.u32 %v4326, 16
        %v4689 = vrot.slane %v4687, 3
        %v4690 = vor.u32 %v4686, %v4689
        %v4691 = vsel %vm2255, %v4665, %v4690
        %v4693 = vshrl.u32 %v4077, 16
        %v4695 = vrot.slane %v4693, 2
        %v4696 = vshll.u32 %v4077, 16
        %v4698 = vrot.slane %v4696, 3
        %v4699 = vor.u32 %v4695, %v4698
        %v4700 = vsel %vm2255, %v4674, %v4699
        %v4701 = vshrl.u32 %v4195, 16
        %v4703 = vrot.slane %v4701, 2
        %v4704 = vshll.u32 %v4195, 16
        %v4706 = vrot.slane %v4704, 3
        %v4707 = vor.u32 %v4703, %v4706
        %v4708 = vsel %vm2255, %v4682, %v4707
        %v4709 = vshrl.u32 %v4328, 16
        %v4711 = vrot.slane %v4709, 2
        %v4712 = vshll.u32 %v4328, 16
        %v4714 = vrot.slane %v4712, 3
        %v4715 = vor.u32 %v4711, %v4714
        %v4716 = vsel %vm2255, %v4690, %v4715
        %v4718 = vshrl.u32 %v4079, 16
        %v4720 = vrot.slane %v4718, 2
        %v4721 = vshll.u32 %v4079, 16
        %v4723 = vrot.slane %v4721, 3
        %v4724 = vor.u32 %v4720, %v4723
        %v4725 = vsel %vm2255, %v4699, %v4724
        %v4726 = vshrl.u32 %v4197, 16
        %v4728 = vrot.slane %v4726, 2
        %v4729 = vshll.u32 %v4197, 16
        %v4731 = vrot.slane %v4729, 3
        %v4732 = vor.u32 %v4728, %v4731
        %v4733 = vsel %vm2255, %v4707, %v4732
        %v4734 = vshrl.u32 %v4330, 16
        %v4736 = vrot.slane %v4734, 2
        %v4737 = vshll.u32 %v4330, 16
        %v4739 = vrot.slane %v4737, 3
        %v4740 = vor.u32 %v4736, %v4739
        %v4741 = vsel %vm2255, %v4715, %v4740
        %v4743 = vshrl.u32 %v4081, 16
        %v4745 = vrot.slane %v4743, 2
        %v4746 = vshll.u32 %v4081, 16
        %v4748 = vrot.slane %v4746, 3
        %v4749 = vor.u32 %v4745, %v4748
        %v4750 = vsel %vm2255, %v4724, %v4749
        %v4751 = vshrl.u32 %v4199, 16
        %v4753 = vrot.slane %v4751, 2
        %v4754 = vshll.u32 %v4199, 16
        %v4756 = vrot.slane %v4754, 3
        %v4757 = vor.u32 %v4753, %v4756
        %v4758 = vsel %vm2255, %v4732, %v4757
        %v4759 = vshrl.u32 %v4332, 16
        %v4761 = vrot.slane %v4759, 2
        %v4762 = vshll.u32 %v4332, 16
        %v4764 = vrot.slane %v4762, 3
        %v4765 = vor.u32 %v4761, %v4764
        %v4766 = vsel %vm2255, %v4740, %v4765
        %v4768 = vshrl.u32 %v4083, 16
        %v4770 = vrot.slane %v4768, 2
        %v4771 = vshll.u32 %v4083, 16
        %v4773 = vrot.slane %v4771, 3
        %v4774 = vor.u32 %v4770, %v4773
        %v4775 = vsel %vm2255, %v4749, %v4774
        %v4776 = vshrl.u32 %v4201, 16
        %v4778 = vrot.slane %v4776, 2
        %v4779 = vshll.u32 %v4201, 16
        %v4781 = vrot.slane %v4779, 3
        %v4782 = vor.u32 %v4778, %v4781
        %v4783 = vsel %vm2255, %v4757, %v4782
        %v4784 = vshrl.u32 %v4334, 16
        %v4786 = vrot.slane %v4784, 2
        %v4787 = vshll.u32 %v4334, 16
        %v4789 = vrot.slane %v4787, 3
        %v4790 = vor.u32 %v4786, %v4789
        %v4791 = vsel %vm2255, %v4765, %v4790
        %v4793 = vshrl.u32 %v4085, 16
        %v4795 = vrot.slane %v4793, 2
        %v4796 = vshll.u32 %v4085, 16
        %v4798 = vrot.slane %v4796, 3
        %v4799 = vor.u32 %v4795, %v4798
        %v4800 = vsel %vm2255, %v4774, %v4799
        %v4801 = vshrl.u32 %v4203, 16
        %v4803 = vrot.slane %v4801, 2
        %v4804 = vshll.u32 %v4203, 16
        %v4806 = vrot.slane %v4804, 3
        %v4807 = vor.u32 %v4803, %v4806
        %v4808 = vsel %vm2255, %v4782, %v4807
        %v4809 = vshrl.u32 %v4336, 16
        %v4811 = vrot.slane %v4809, 2
        %v4812 = vshll.u32 %v4336, 16
        %v4814 = vrot.slane %v4812, 3
        %v4815 = vor.u32 %v4811, %v4814
        %v4816 = vsel %vm2255, %v4790, %v4815
        %v4818 = vshrl.u32 %v4087, 16
        %v4820 = vrot.slane %v4818, 2
        %v4821 = vshll.u32 %v4087, 16
        %v4823 = vrot.slane %v4821, 3
        %v4824 = vor.u32 %v4820, %v4823
        %v4825 = vsel %vm2255, %v4799, %v4824
        %v4826 = vshrl.u32 %v4205, 16
        %v4828 = vrot.slane %v4826, 2
        %v4829 = vshll.u32 %v4205, 16
        %v4831 = vrot.slane %v4829, 3
        %v4832 = vor.u32 %v4828, %v4831
        %v4833 = vsel %vm2255, %v4807, %v4832
        %v4834 = vshrl.u32 %v4338, 16
        %v4836 = vrot.slane %v4834, 2
        %v4837 = vshll.u32 %v4338, 16
        %v4839 = vrot.slane %v4837, 3
        %v4840 = vor.u32 %v4836, %v4839
        %v4841 = vsel %vm2255, %v4815, %v4840
        %v4843 = vshrl.u32 %v4089, 16
        %v4845 = vrot.slane %v4843, 2
        %v4846 = vshll.u32 %v4089, 16
        %v4848 = vrot.slane %v4846, 3
        %v4849 = vor.u32 %v4845, %v4848
        %v4850 = vsel %vm2255, %v4824, %v4849
        %v4923 = vunpack.c.l.b16 %v4339
        %v4924 = vunpack.c.l.b16 %v4340
        %v4925 = vunpack.c.l.b16 %v4341
        %v4926 = vunpack.c.l.b16 %v4342
        %v4927 = vunpack.c.l.b16 %v4343
        %v4928 = vunpack.c.l.b16 %v4344
        %v4929 = vunpack.c.l.b16 %v4345
        %v4930 = vunpack.c.l.b16 %v4346
        %v4931 = vunpack.c.l.b16 %v4347
        %v4932 = vunpack.c.l.b16 %v4348
        %v4933 = vunpack.c.l.b16 %v4349
        %v4934 = vunpack.c.l.b16 %v4350
        %v4935 = vunpack.c.l.b16 %v4351
        %v4936 = vunpack.c.l.b16 %v4352
        %v4937 = vunpack.c.l.b16 %v4353
        %v4938 = vunpack.c.l.b16 %v4354
        %v4939 = vunpack.c.l.b16 %v4355
        %v4940 = vunpack.c.l.b16 %v4356
        %v4941 = vunpack.c.l.b16 %v4357
        %v4942 = vunpack.c.l.b16 %v4358
        %v4943 = vunpack.c.l.b16 %v4359
        %v4944 = vunpack.c.l.b16 %v4360
        %v4945 = vunpack.c.l.b16 %v4361
        %v4946 = vunpack.c.l.b16 %v4362
        %v4947 = vunpack.c.l.b16 %v4363
        %v4948 = vunpack.c.l.b16 %v4364
        %v4949 = vunpack.c.l.b16 %v4365
        %v4950 = vunpack.c.l.b16 %v4366
        %v4951 = vunpack.c.l.b16 %v4367
        %v4952 = vunpack.c.l.b16 %v4368
        %v4953 = vunpack.c.l.b16 %v4369
        %v4954 = vunpack.c.l.b16 %v4370
        %v4955 = vunpack.c.l.b16 %v4371
        %v4956 = vunpack.c.l.b16 %v4372
        %v4957 = vunpack.c.l.b16 %v4373
        %v4958 = vunpack.c.l.b16 %v4374
        %v4959 = vpack.c.b16 %v4924, %v4923
        %v4960 = vpack.c.b16 %v4926, %v4925
        %v4961 = vpack.c.b16 %v4928, %v4927
        %v4962 = vpack.c.b16 %v4930, %v4929
        %v4963 = vpack.c.b16 %v4932, %v4931
        %v4964 = vpack.c.b16 %v4934, %v4933
        %v4965 = vpack.c.b16 %v4936, %v4935
        %v4966 = vpack.c.b16 %v4938, %v4937
        %v4967 = vpack.c.b16 %v4940, %v4939
        %v4968 = vpack.c.b16 %v4942, %v4941
        %v4969 = vpack.c.b16 %v4944, %v4943
        %v4970 = vpack.c.b16 %v4946, %v4945
        %v4971 = vpack.c.b16 %v4948, %v4947
        %v4972 = vpack.c.b16 %v4950, %v4949
        %v4973 = vpack.c.b16 %v4952, %v4951
        %v4974 = vpack.c.b16 %v4954, %v4953
        %v4975 = vpack.c.b16 %v4956, %v4955
        %v4976 = vpack.c.b16 %v4958, %v4957
        %v4996 = vsel %vm2562, %v4425, 0
        %v4999 = vsel %vm2562, %v4450, 0
        %v5002 = vsel %vm2562, %v4475, 0
        %v5005 = vsel %vm2562, %v4500, 0
        %v5008 = vsel %vm2562, %v4525, 0
        %v5011 = vsel %vm2562, %v4550, 0
        %v5014 = vsel %vm2562, %v4575, 0
        %v5017 = vsel %vm2562, %v4600, 0
        %v5020 = vsel %vm2562, %v4625, 0
        %v5023 = vsel %vm2562, %v4650, 0
        %v5026 = vsel %vm2562, %v4675, 0
        %v5029 = vsel %vm2562, %v4700, 0
        %v5032 = vsel %vm2562, %v4725, 0
        %v5035 = vsel %vm2562, %v4750, 0
        %v5038 = vsel %vm2562, %v4775, 0
        %v5041 = vsel %vm2562, %v4800, 0
        %v5044 = vsel %vm2562, %v4825, 0
        %v5047 = vsel %vm2562, %v4850, 0
        %5049 = vmatpush.bf16.msra.mxu0 %v4966
        %5050 = vmatpush.bf16.msra.mxu0 %v4965
        %5051 = vmatpush.bf16.msra.mxu0 %v4964
        %5052 = vmatpush.bf16.msra.mxu0 %v4963
        %5053 = vmatpush.bf16.msra.mxu0 %v4962
        %5054 = vmatpush.bf16.msra.mxu0 %v4961
        %5055 = vmatpush.bf16.msra.mxu0 %v4960
        %5056 = vmatpush.bf16.msra.mxu0 %v4959
        %5057 = vmatmul.bf16.gmra.mxu0 %v4393
        %v5058 = vpop.f32.mrf.mxu0
        %v5059 = vadd.f32 %v4377, %v5058
        %v5060 = vpop.f32.mrf.mxu0
        %v5061 = vadd.f32 %v4377, %v5060
        %5062 = vmatmul.bf16.gmra.mxu0 %v4433
        %v5063 = vpop.f32.mrf.mxu0
        %v5064 = vadd.f32 %v4377, %v5063
        %v5065 = vpop.f32.mrf.mxu0
        %v5066 = vadd.f32 %v4377, %v5065
        %5067 = vmatmul.bf16.gmra.mxu0 %v4458
        %v5068 = vpop.f32.mrf.mxu0
        %v5069 = vadd.f32 %v4377, %v5068
        %v5070 = vpop.f32.mrf.mxu0
        %v5071 = vadd.f32 %v4377, %v5070
        %5072 = vmatmul.bf16.gmra.mxu0 %v4483
        %v5073 = vpop.f32.mrf.mxu0
        %v5074 = vadd.f32 %v4377, %v5073
        %v5075 = vpop.f32.mrf.mxu0
        %v5076 = vadd.f32 %v4377, %v5075
        %5077 = vmatmul.bf16.gmra.mxu0 %v4508
        %v5078 = vpop.f32.mrf.mxu0
        %v5079 = vadd.f32 %v4377, %v5078
        %v5080 = vpop.f32.mrf.mxu0
        %v5081 = vadd.f32 %v4377, %v5080
        %5082 = vmatmul.bf16.gmra.mxu0 %v4533
        %v5083 = vpop.f32.mrf.mxu0
        %v5084 = vadd.f32 %v4377, %v5083
        %v5085 = vpop.f32.mrf.mxu0
        %v5086 = vadd.f32 %v4377, %v5085
        %5087 = vmatmul.bf16.gmra.mxu0 %v4558
        %v5088 = vpop.f32.mrf.mxu0
        %v5089 = vadd.f32 %v4377, %v5088
        %v5090 = vpop.f32.mrf.mxu0
        %v5091 = vadd.f32 %v4377, %v5090
        %5092 = vmatmul.bf16.gmra.mxu0 %v4583
        %v5093 = vpop.f32.mrf.mxu0
        %v5094 = vadd.f32 %v4377, %v5093
        %v5095 = vpop.f32.mrf.mxu0
        %v5096 = vadd.f32 %v4377, %v5095
        %5097 = vmatmul.bf16.gmra.mxu0 %v4608
        %v5098 = vpop.f32.mrf.mxu0
        %v5099 = vadd.f32 %v4377, %v5098
        %v5100 = vpop.f32.mrf.mxu0
        %v5101 = vadd.f32 %v4377, %v5100
        %5102 = vmatmul.bf16.gmra.mxu0 %v4633
        %v5103 = vpop.f32.mrf.mxu0
        %v5104 = vadd.f32 %v4377, %v5103
        %v5105 = vpop.f32.mrf.mxu0
        %v5106 = vadd.f32 %v4377, %v5105
        %5107 = vmatmul.bf16.gmra.mxu0 %v4658
        %v5108 = vpop.f32.mrf.mxu0
        %v5109 = vadd.f32 %v4377, %v5108
        %v5110 = vpop.f32.mrf.mxu0
        %v5111 = vadd.f32 %v4377, %v5110
        %5112 = vmatmul.bf16.gmra.mxu0 %v4683
        %v5113 = vpop.f32.mrf.mxu0
        %v5114 = vadd.f32 %v4377, %v5113
        %v5115 = vpop.f32.mrf.mxu0
        %v5116 = vadd.f32 %v4377, %v5115
        %5117 = vmatmul.bf16.gmra.mxu0 %v4708
        %v5118 = vpop.f32.mrf.mxu0
        %v5119 = vadd.f32 %v4377, %v5118
        %v5120 = vpop.f32.mrf.mxu0
        %v5121 = vadd.f32 %v4377, %v5120
        %5122 = vmatmul.bf16.gmra.mxu0 %v4733
        %v5123 = vpop.f32.mrf.mxu0
        %v5124 = vadd.f32 %v4377, %v5123
        %v5125 = vpop.f32.mrf.mxu0
        %v5126 = vadd.f32 %v4377, %v5125
        %5127 = vmatmul.bf16.gmra.mxu0 %v4758
        %v5128 = vpop.f32.mrf.mxu0
        %v5129 = vadd.f32 %v4377, %v5128
        %v5130 = vpop.f32.mrf.mxu0
        %v5131 = vadd.f32 %v4377, %v5130
        %5132 = vmatmul.bf16.gmra.mxu0 %v4783
        %v5133 = vpop.f32.mrf.mxu0
        %v5134 = vadd.f32 %v4377, %v5133
        %v5135 = vpop.f32.mrf.mxu0
        %v5136 = vadd.f32 %v4377, %v5135
        %5137 = vmatmul.bf16.gmra.mxu0 %v4808
        %v5138 = vpop.f32.mrf.mxu0
        %v5139 = vadd.f32 %v4377, %v5138
        %v5140 = vpop.f32.mrf.mxu0
        %v5141 = vadd.f32 %v4377, %v5140
        %5142 = vmatmul.bf16.gmra.mxu0 %v4833
        %v5143 = vpop.f32.mrf.mxu0
        %v5144 = vadd.f32 %v4377, %v5143
        %v5145 = vpop.f32.mrf.mxu0
        %v5146 = vadd.f32 %v4377, %v5145
        %5147 = vdwg.mxu0
        %5148 = vmatpush.bf16.msra.mxu0 %v4974
        %5149 = vmatpush.bf16.msra.mxu0 %v4973
        %5150 = vmatpush.bf16.msra.mxu0 %v4972
        %5151 = vmatpush.bf16.msra.mxu0 %v4971
        %5152 = vmatpush.bf16.msra.mxu0 %v4970
        %5153 = vmatpush.bf16.msra.mxu0 %v4969
        %5154 = vmatpush.bf16.msra.mxu0 %v4968
        %5155 = vmatpush.bf16.msra.mxu0 %v4967
        %5156 = vmatmul.bf16.gmra.mxu0 %v4408
        %v5157 = vpop.f32.mrf.mxu0
        %v5158 = vadd.f32 %v5059, %v5157
        %v5159 = vpop.f32.mrf.mxu0
        %v5160 = vadd.f32 %v5061, %v5159
        %5161 = vmatmul.bf16.gmra.mxu0 %v4441
        %v5162 = vpop.f32.mrf.mxu0
        %v5163 = vadd.f32 %v5064, %v5162
        %v5164 = vpop.f32.mrf.mxu0
        %v5165 = vadd.f32 %v5066, %v5164
        %5166 = vmatmul.bf16.gmra.mxu0 %v4466
        %v5167 = vpop.f32.mrf.mxu0
        %v5168 = vadd.f32 %v5069, %v5167
        %v5169 = vpop.f32.mrf.mxu0
        %v5170 = vadd.f32 %v5071, %v5169
        %5171 = vmatmul.bf16.gmra.mxu0 %v4491
        %v5172 = vpop.f32.mrf.mxu0
        %v5173 = vadd.f32 %v5074, %v5172
        %v5174 = vpop.f32.mrf.mxu0
        %v5175 = vadd.f32 %v5076, %v5174
        %5176 = vmatmul.bf16.gmra.mxu0 %v4516
        %v5177 = vpop.f32.mrf.mxu0
        %v5178 = vadd.f32 %v5079, %v5177
        %v5179 = vpop.f32.mrf.mxu0
        %v5180 = vadd.f32 %v5081, %v5179
        %5181 = vmatmul.bf16.gmra.mxu0 %v4541
        %v5182 = vpop.f32.mrf.mxu0
        %v5183 = vadd.f32 %v5084, %v5182
        %v5184 = vpop.f32.mrf.mxu0
        %v5185 = vadd.f32 %v5086, %v5184
        %5186 = vmatmul.bf16.gmra.mxu0 %v4566
        %v5187 = vpop.f32.mrf.mxu0
        %v5188 = vadd.f32 %v5089, %v5187
        %v5189 = vpop.f32.mrf.mxu0
        %v5190 = vadd.f32 %v5091, %v5189
        %5191 = vmatmul.bf16.gmra.mxu0 %v4591
        %v5192 = vpop.f32.mrf.mxu0
        %v5193 = vadd.f32 %v5094, %v5192
        %v5194 = vpop.f32.mrf.mxu0
        %v5195 = vadd.f32 %v5096, %v5194
        %5196 = vmatmul.bf16.gmra.mxu0 %v4616
        %v5197 = vpop.f32.mrf.mxu0
        %v5198 = vadd.f32 %v5099, %v5197
        %v5199 = vpop.f32.mrf.mxu0
        %v5200 = vadd.f32 %v5101, %v5199
        %5201 = vmatmul.bf16.gmra.mxu0 %v4641
        %v5202 = vpop.f32.mrf.mxu0
        %v5203 = vadd.f32 %v5104, %v5202
        %v5204 = vpop.f32.mrf.mxu0
        %v5205 = vadd.f32 %v5106, %v5204
        %5206 = vmatmul.bf16.gmra.mxu0 %v4666
        %v5207 = vpop.f32.mrf.mxu0
        %v5208 = vadd.f32 %v5109, %v5207
        %v5209 = vpop.f32.mrf.mxu0
        %v5210 = vadd.f32 %v5111, %v5209
        %5211 = vmatmul.bf16.gmra.mxu0 %v4691
        %v5212 = vpop.f32.mrf.mxu0
        %v5213 = vadd.f32 %v5114, %v5212
        %v5214 = vpop.f32.mrf.mxu0
        %v5215 = vadd.f32 %v5116, %v5214
        %5216 = vmatmul.bf16.gmra.mxu0 %v4716
        %v5217 = vpop.f32.mrf.mxu0
        %v5218 = vadd.f32 %v5119, %v5217
        %v5219 = vpop.f32.mrf.mxu0
        %v5220 = vadd.f32 %v5121, %v5219
        %5221 = vmatmul.bf16.gmra.mxu0 %v4741
        %v5222 = vpop.f32.mrf.mxu0
        %v5223 = vadd.f32 %v5124, %v5222
        %v5224 = vpop.f32.mrf.mxu0
        %v5225 = vadd.f32 %v5126, %v5224
        %5226 = vmatmul.bf16.gmra.mxu0 %v4766
        %v5227 = vpop.f32.mrf.mxu0
        %v5228 = vadd.f32 %v5129, %v5227
        %v5229 = vpop.f32.mrf.mxu0
        %v5230 = vadd.f32 %v5131, %v5229
        %5231 = vmatmul.bf16.gmra.mxu0 %v4791
        %v5232 = vpop.f32.mrf.mxu0
        %v5233 = vadd.f32 %v5134, %v5232
        %v5234 = vpop.f32.mrf.mxu0
        %v5235 = vadd.f32 %v5136, %v5234
        %5236 = vmatmul.bf16.gmra.mxu0 %v4816
        %v5237 = vpop.f32.mrf.mxu0
        %v5238 = vadd.f32 %v5139, %v5237
        %v5239 = vpop.f32.mrf.mxu0
        %v5240 = vadd.f32 %v5141, %v5239
        %5241 = vmatmul.bf16.gmra.mxu0 %v4841
        %v5242 = vpop.f32.mrf.mxu0
        %v5243 = vadd.f32 %v5144, %v5242
        %v5244 = vpop.f32.mrf.mxu0
        %v5245 = vadd.f32 %v5146, %v5244
        %5246 = vdwg.mxu0
        %5247 = vmatpush.bf16.msra.mxu0 0
        %5248 = vmatpush.bf16.msra.mxu0 0
        %5249 = vmatpush.bf16.msra.mxu0 0
        %5250 = vmatpush.bf16.msra.mxu0 0
        %5251 = vmatpush.bf16.msra.mxu0 0
        %5252 = vmatpush.bf16.msra.mxu0 0
        %5253 = vmatpush.bf16.msra.mxu0 %v4976
        %5254 = vmatpush.bf16.msra.mxu0 %v4975
        %5255 = vmatmul.bf16.gmra.mxu0 %v4996
        %v5256 = vpop.f32.mrf.mxu0
        %v5257 = vadd.f32 %v5158, %v5256
        %v5258 = vpop.f32.mrf.mxu0
        %v5259 = vadd.f32 %v5160, %v5258
        %5260 = vmatmul.bf16.gmra.mxu0 %v4999
        %v5261 = vpop.f32.mrf.mxu0
        %v5262 = vadd.f32 %v5163, %v5261
        %v5263 = vpop.f32.mrf.mxu0
        %v5264 = vadd.f32 %v5165, %v5263
        %5265 = vmatmul.bf16.gmra.mxu0 %v5002
        %v5266 = vpop.f32.mrf.mxu0
        %v5267 = vadd.f32 %v5168, %v5266
        %v5268 = vpop.f32.mrf.mxu0
        %v5269 = vadd.f32 %v5170, %v5268
        %5270 = vmatmul.bf16.gmra.mxu0 %v5005
        %v5271 = vpop.f32.mrf.mxu0
        %v5272 = vadd.f32 %v5173, %v5271
        %v5273 = vpop.f32.mrf.mxu0
        %v5274 = vadd.f32 %v5175, %v5273
        %5275 = vmatmul.bf16.gmra.mxu0 %v5008
        %v5276 = vpop.f32.mrf.mxu0
        %v5277 = vadd.f32 %v5178, %v5276
        %v5278 = vpop.f32.mrf.mxu0
        %v5279 = vadd.f32 %v5180, %v5278
        %5280 = vmatmul.bf16.gmra.mxu0 %v5011
        %v5281 = vpop.f32.mrf.mxu0
        %v5282 = vadd.f32 %v5183, %v5281
        %v5283 = vpop.f32.mrf.mxu0
        %v5284 = vadd.f32 %v5185, %v5283
        %5285 = vmatmul.bf16.gmra.mxu0 %v5014
        %v5286 = vpop.f32.mrf.mxu0
        %v5287 = vadd.f32 %v5188, %v5286
        %v5288 = vpop.f32.mrf.mxu0
        %v5289 = vadd.f32 %v5190, %v5288
        %5290 = vmatmul.bf16.gmra.mxu0 %v5017
        %v5291 = vpop.f32.mrf.mxu0
        %v5292 = vadd.f32 %v5193, %v5291
        %v5293 = vpop.f32.mrf.mxu0
        %v5294 = vadd.f32 %v5195, %v5293
        %5295 = vmatmul.bf16.gmra.mxu0 %v5020
        %v5296 = vpop.f32.mrf.mxu0
        %v5297 = vadd.f32 %v5198, %v5296
        %v5298 = vpop.f32.mrf.mxu0
        %v5299 = vadd.f32 %v5200, %v5298
        %5300 = vmatmul.bf16.gmra.mxu0 %v5023
        %v5301 = vpop.f32.mrf.mxu0
        %v5302 = vadd.f32 %v5203, %v5301
        %v5303 = vpop.f32.mrf.mxu0
        %v5304 = vadd.f32 %v5205, %v5303
        %5305 = vmatmul.bf16.gmra.mxu0 %v5026
        %v5306 = vpop.f32.mrf.mxu0
        %v5307 = vadd.f32 %v5208, %v5306
        %v5308 = vpop.f32.mrf.mxu0
        %v5309 = vadd.f32 %v5210, %v5308
        %5310 = vmatmul.bf16.gmra.mxu0 %v5029
        %v5311 = vpop.f32.mrf.mxu0
        %v5312 = vadd.f32 %v5213, %v5311
        %v5313 = vpop.f32.mrf.mxu0
        %v5314 = vadd.f32 %v5215, %v5313
        %5315 = vmatmul.bf16.gmra.mxu0 %v5032
        %v5316 = vpop.f32.mrf.mxu0
        %v5317 = vadd.f32 %v5218, %v5316
        %v5318 = vpop.f32.mrf.mxu0
        %v5319 = vadd.f32 %v5220, %v5318
        %5320 = vmatmul.bf16.gmra.mxu0 %v5035
        %v5321 = vpop.f32.mrf.mxu0
        %v5322 = vadd.f32 %v5223, %v5321
        %v5323 = vpop.f32.mrf.mxu0
        %v5324 = vadd.f32 %v5225, %v5323
        %5325 = vmatmul.bf16.gmra.mxu0 %v5038
        %v5326 = vpop.f32.mrf.mxu0
        %v5327 = vadd.f32 %v5228, %v5326
        %v5328 = vpop.f32.mrf.mxu0
        %v5329 = vadd.f32 %v5230, %v5328
        %5330 = vmatmul.bf16.gmra.mxu0 %v5041
        %v5331 = vpop.f32.mrf.mxu0
        %v5332 = vadd.f32 %v5233, %v5331
        %v5333 = vpop.f32.mrf.mxu0
        %v5334 = vadd.f32 %v5235, %v5333
        %5335 = vmatmul.bf16.gmra.mxu0 %v5044
        %v5336 = vpop.f32.mrf.mxu0
        %v5337 = vadd.f32 %v5238, %v5336
        %v5338 = vpop.f32.mrf.mxu0
        %v5339 = vadd.f32 %v5240, %v5338
        %5340 = vmatmul.bf16.gmra.mxu0 %v5047
        %v5341 = vpop.f32.mrf.mxu0
        %v5342 = vadd.f32 %v5243, %v5341
        %v5343 = vpop.f32.mrf.mxu0
        %v5344 = vadd.f32 %v5245, %v5343
        %5345 = vdwg.mxu0
        %v5346 = vmax.f32 %v5257, 0.0
        %v5347 = vmax.f32 %v5259, 0.0
        %v5348 = vmax.f32 %v5262, 0.0
        %v5349 = vmax.f32 %v5264, 0.0
        %v5350 = vmax.f32 %v5267, 0.0
        %v5351 = vmax.f32 %v5269, 0.0
        %v5352 = vmax.f32 %v5272, 0.0
        %v5353 = vmax.f32 %v5274, 0.0
        %v5354 = vmax.f32 %v5277, 0.0
        %v5355 = vmax.f32 %v5279, 0.0
        %v5356 = vmax.f32 %v5282, 0.0
        %v5357 = vmax.f32 %v5284, 0.0
        %v5358 = vmax.f32 %v5287, 0.0
        %v5359 = vmax.f32 %v5289, 0.0
        %v5360 = vmax.f32 %v5292, 0.0
        %v5361 = vmax.f32 %v5294, 0.0
        %v5362 = vmax.f32 %v5297, 0.0
        %v5363 = vmax.f32 %v5299, 0.0
        %v5364 = vmax.f32 %v5302, 0.0
        %v5365 = vmax.f32 %v5304, 0.0
        %v5366 = vmax.f32 %v5307, 0.0
        %v5367 = vmax.f32 %v5309, 0.0
        %v5368 = vmax.f32 %v5312, 0.0
        %v5369 = vmax.f32 %v5314, 0.0
        %v5370 = vmax.f32 %v5317, 0.0
        %v5371 = vmax.f32 %v5319, 0.0
        %v5372 = vmax.f32 %v5322, 0.0
        %v5373 = vmax.f32 %v5324, 0.0
        %v5374 = vmax.f32 %v5327, 0.0
        %v5375 = vmax.f32 %v5329, 0.0
        %v5376 = vmax.f32 %v5332, 0.0
        %v5377 = vmax.f32 %v5334, 0.0
        %v5378 = vmax.f32 %v5337, 0.0
        %v5379 = vmax.f32 %v5339, 0.0
        %v5380 = vmax.f32 %v5342, 0.0
        %v5381 = vmax.f32 %v5344, 0.0
        %v5382 = vsel %vm2999, %v5346, 0.0
        %v5383 = vsel %vm3000, %v5347, 0.0
        %v5384 = vsel %vm3001, %v5348, 0.0
        %v5385 = vsel %vm3002, %v5349, 0.0
        %v5386 = vsel %vm3003, %v5350, 0.0
        %v5387 = vsel %vm3004, %v5351, 0.0
        %v5388 = vsel %vm3005, %v5352, 0.0
        %v5389 = vsel %vm3006, %v5353, 0.0
        %v5390 = vsel %vm3007, %v5354, 0.0
        %v5391 = vsel %vm3008, %v5355, 0.0
        %v5392 = vsel %vm3009, %v5356, 0.0
        %v5393 = vsel %vm3010, %v5357, 0.0
        %v5394 = vsel %vm3011, %v5358, 0.0
        %v5395 = vsel %vm3012, %v5359, 0.0
        %v5396 = vsel %vm3013, %v5360, 0.0
        %v5397 = vsel %vm3014, %v5361, 0.0
        %v5398 = vsel %vm3015, %v5362, 0.0
        %v5399 = vsel %vm3016, %v5363, 0.0
        %v5400 = vsel %vm3017, %v5364, 0.0
        %v5401 = vsel %vm3018, %v5365, 0.0
        %v5402 = vsel %vm3019, %v5366, 0.0
        %v5403 = vsel %vm3020, %v5367, 0.0
        %v5404 = vsel %vm3021, %v5368, 0.0
        %v5405 = vsel %vm3022, %v5369, 0.0
        %v5406 = vsel %vm3023, %v5370, 0.0
        %v5407 = vsel %vm3024, %v5371, 0.0
        %v5408 = vsel %vm3025, %v5372, 0.0
        %v5409 = vsel %vm3026, %v5373, 0.0
        %v5410 = vsel %vm3027, %v5374, 0.0
        %v5411 = vsel %vm3028, %v5375, 0.0
        %v5412 = vsel %vm3029, %v5376, 0.0
        %v5413 = vsel %vm3030, %v5377, 0.0
        %v5414 = vsel %vm3031, %v5378, 0.0
        %v5415 = vsel %vm3032, %v5379, 0.0
        %v5416 = vsel %vm3033, %v5380, 0.0
        %v5417 = vsel %vm3034, %v5381, 0.0
        %v5418 = vadd.f32 %v5382, %v5383
        %v5419 = vadd.f32 %v5418, %v5384
        %v5420 = vadd.f32 %v5419, %v5385
        %v5421 = vadd.f32 %v5420, %v5386
        %v5422 = vadd.f32 %v5421, %v5387
        %v5423 = vadd.f32 %v5422, %v5388
        %v5424 = vadd.f32 %v5423, %v5389
        %v5425 = vadd.f32 %v5424, %v5390
        %v5426 = vadd.f32 %v5425, %v5391
        %v5427 = vadd.f32 %v5426, %v5392
        %v5428 = vadd.f32 %v5427, %v5393
        %v5429 = vadd.f32 %v5428, %v5394
        %v5430 = vadd.f32 %v5429, %v5395
        %v5431 = vadd.f32 %v5430, %v5396
        %v5432 = vadd.f32 %v5431, %v5397
        %v5433 = vadd.f32 %v5432, %v5398
        %v5434 = vadd.f32 %v5433, %v5399
        %v5435 = vadd.f32 %v5434, %v5400
        %v5436 = vadd.f32 %v5435, %v5401
        %v5437 = vadd.f32 %v5436, %v5402
        %v5438 = vadd.f32 %v5437, %v5403
        %v5439 = vadd.f32 %v5438, %v5404
        %v5440 = vadd.f32 %v5439, %v5405
        %v5441 = vadd.f32 %v5440, %v5406
        %v5442 = vadd.f32 %v5441, %v5407
        %v5443 = vadd.f32 %v5442, %v5408
        %v5444 = vadd.f32 %v5443, %v5409
        %v5445 = vadd.f32 %v5444, %v5410
        %v5446 = vadd.f32 %v5445, %v5411
        %v5447 = vadd.f32 %v5446, %v5412
        %v5448 = vadd.f32 %v5447, %v5413
        %v5449 = vadd.f32 %v5448, %v5414
        %v5450 = vadd.f32 %v5449, %v5415
        %v5451 = vadd.f32 %v5450, %v5416
        %v5452 = vadd.f32 %v5451, %v5417
        %v5453 = vrot.slane %v5452, 4
        %v5454 = vadd.f32 %v5452, %v5453
        %v5455 = vrot.slane %v5454, 2
        %v5456 = vadd.f32 %v5454, %v5455
        %v5457 = vrot.slane %v5456, 1
        %v5458 = vadd.f32 %v5456, %v5457
        %v5459 = vmul.f32 %v5458, 0.00390625
        %5460 = vst [vmem:[%s216] sm:$0x1] %v5459
        %s5461 = sand.u32 %s137, 1
        %s5462 = scalar_lea.sflag [#allocation4], %s5461
        %s5463 = sand.u32 %s137, 1
        %s5464 = scalar_lea.vmem [#allocation3], %s5463
        // Predicated region
        $region45: #{prototypical_network_forward.1} parent=39 // pred_check
          %p5465 = pneg %p147
        $region46: #{prototypical_network_forward.1} parent=39 // pred_check_branch
          %5467 = sbr.rel (%p5465) target = $region48
        $region47: #{prototypical_network_forward.1} parent=39 // pred_region
          %5469 = vsyncadd %s5462, 0
          %s5470 = scalar_lea.hbm %s5, %s19
          %s5472 = sshll.u32 %s5464, 4
          %s5473 = int_to_ptr.vmem [resolvable:$true] %s5472
          %s5474 = sshll.u32 %s5470, 4
          %s5475 = int_to_ptr.hbm [resolvable:$true] %s5474
          %5477 = dma.vmem_to_hbm [thread:$0]  %s5473, 16, %s5475, %s5462
        $region48: #{prototypical_network_forward.1} parent=39 // pred_fallthru
          _
      $region40: #{prototypical_network_forward.1} parent=5 // pred_fallthru
        _
      %p5478 = scmp.le.s32.totalorder 2, %s14
      // Predicated region
      $region49: #{prototypical_network_forward.1} parent=5 // pred_check
        %p5479 = pneg %p5478
      $region50: #{prototypical_network_forward.1} parent=5 // pred_check_branch
        %5481 = sbr.rel (%p5479) target = $region52
      $region51: #{prototypical_network_forward.1} parent=5 // pred_region
        %s5482 = ssub.s32 %s14, 2
        // Predicated region
        $region53: #{prototypical_network_forward.1} parent=51 // pred_check
          %p5483 = pneg %p153
        $region54: #{prototypical_network_forward.1} parent=51 // pred_check_branch
          %5485 = sbr.rel (%p5483) target = $region56
        $region55: #{prototypical_network_forward.1} parent=51 // pred_region
          %s5486 = sand.u32 %s138, 1
          %s5487 = scalar_lea.sflag [#allocation4], %s5486
          %s5488 = sand.u32 %s138, 1
          %s5489 = scalar_lea.vmem [#allocation3], %s5488
          %5491 = dma.done %s5487, 16
        $region56: #{prototypical_network_forward.1} parent=51 // pred_fallthru
          _
      $region52: #{prototypical_network_forward.1} parent=5 // pred_fallthru
        _
    $region6: #{prototypical_network_forward.1} parent=1 // loop_footer
      %s18 = sadd.s32 1, %s14
    $region7: #{prototypical_network_forward.1} parent=1 // loop_footer_branch
      %13 = sbr.rel target = $region3
    $region8: #{prototypical_network_forward.1} parent=1 // loop_exit
      _
    %5492 = vsyncpa [#allocation4], 1
    %s5493 = scalar_lea.sflag [#allocation4], 1
    %5494 = vsyncpa %s5493, 1

</llo_original>
